<compile_context>
chip_gen: v6e
topology: v6e:2x2x1
jax: 0.10.0
libtpu: 0.0.40
codegen_flags: <defaults>
</compile_context>

<pallas_src>
from functools import partial

import jax
import jax.numpy as jnp
import numpy as np
from jax.experimental import pallas as pl
from jax.experimental.pallas import tpu as pltpu

FEAT = 2048      # ResNet50 pooled feature dim (hard-coded in the module)
W_EMBED = 384    # all-MiniLM-L6-v2 word_embedding_dimension


def _fused_kernel(wx_ref, w1_ref, bd_ref, img_ref, out_ref):
    # w_sequential: ReLU(words @ W1 + b1).  bf16 MXU operands, f32 accumulate.
    w_seq = jnp.dot(wx_ref[...], w1_ref[...],
                    preferred_element_type=jnp.float32)          # (B_w, FEAT) f32
    w_seq = jnp.maximum(w_seq + bd_ref[0:1, :], 0.0)

    # Fold dot_w into w_seq (B_w*FEAT elems, not the larger img tensor), then
    # cast once to bf16 so the second contraction also runs on the MXU.
    ws = (w_seq * bd_ref[1:2, :]).astype(jnp.bfloat16)           # (B_w, FEAT) bf16

    # out[b, n] = sum_d ws[b, d] * img[b, n, d]  — batched MXU contraction
    # (same 'b?d,b?d->b??' pattern as the flash-attention worked example).
    out3 = jnp.einsum("bmd,bnd->bmn", ws[:, None, :], img_ref[...],
                      preferred_element_type=jnp.float32)        # (B_w, 1, N)
    out_ref[...] = out3[:, 0, :]


@partial(jax.jit, static_argnames=("num_img_samp",))
def model_forward(word_emb, img_feats, kparams, *, num_img_samp):
    """word_emb:  (B_w, W_EMBED)   sentence-transformer encodings (float32)
       img_feats: (B_w * num_img_samp, FEAT) ResNet50 pooled features (float32)
       kparams:   dict with pre-packed kernel params:
                    'w1_bf16'   (W_EMBED, FEAT) bfloat16  — cast once at build
                    'bias_dotw' (2, FEAT) float32         — row 0 = b1, row 1 = dot_w
       returns:   (B_w, num_img_samp) float32 — same as Model.forward output."""
    w1_bf16 = kparams["w1_bf16"]
    bias_dotw = kparams["bias_dotw"]
    B_w = word_emb.shape[0]

    # Tiny per-call glue (fuses under jit): bf16 MXU streams + the row-major
    # regroup matching the torch loop index i*num_img_samp + j.
    wx_bf16 = word_emb.astype(jnp.bfloat16)
    img3 = img_feats.astype(jnp.bfloat16).reshape(B_w, num_img_samp, FEAT)

    # VMEM scaling guard: the grid-less call keeps every operand fully resident.
    # If img3 (or B_w) ever grows past this, switch to a row-tile grid over B_w
    # with dimension_semantics=("parallel",) so v7x's 2 TensorCores both work.
    vmem_bytes = (wx_bf16.size * 2 + w1_bf16.size * 2 + bias_dotw.size * 4
                  + img3.size * 2 + B_w * num_img_samp * 4)
    assert vmem_bytes < 16 * 1024 * 1024, (
        "inputs no longer VMEM-resident; add a B_w row-tile grid")

    return pl.pallas_call(
        _fused_kernel,
        out_shape=jax.ShapeDtypeStruct((B_w, num_img_samp), jnp.float32),
        compiler_params=pltpu.CompilerParams(
            vmem_limit_bytes=32 * 1024 * 1024),
    )(wx_bf16, w1_bf16, bias_dotw, img3)


def make_params(key):
    """Master f32 params (torch.nn.Linear default init; dot_w ~ randn) plus the
    pre-packed kernel-side params (bf16 W1, stacked bias/dot_w)."""
    k1, k2, k3 = jax.random.split(key, 3)
    bound = 1.0 / np.sqrt(W_EMBED)
    master = {
        "w1": jax.random.uniform(k1, (W_EMBED, FEAT), jnp.float32, -bound, bound),
        "b1": jax.random.uniform(k2, (1, FEAT), jnp.float32, -bound, bound),
        "dot_w": jax.random.normal(k3, (1, FEAT), jnp.float32),
    }
    kernel_params = {
        # Cast the big weight to bf16 ONCE here — never per forward call.
        "w1_bf16": master["w1"].astype(jnp.bfloat16),
        # b1 and dot_w packed into a single (2, FEAT) f32 operand.
        "bias_dotw": jnp.concatenate([master["b1"], master["dot_w"]], axis=0),
    }
    return master, kernel_params


if __name__ == "__main__":
    key = jax.random.PRNGKey(0)
    kp, k4, k5 = jax.random.split(key, 3)

    B_w, num_img_samp = 2, 4                       # 2 word samples, 4 images each
    master, kernel_params = make_params(kp)

    # Synthetic "encoder outputs" standing in for SentenceTransformer / ResNet50.
    word_emb = jax.random.normal(k4, (B_w, W_EMBED), jnp.float32)
    img_feats = jax.random.normal(k5, (B_w * num_img_samp, FEAT), jnp.float32)

    out = model_forward(word_emb, img_feats, kernel_params,
                        num_img_samp=num_img_samp)
    out = jax.block_until_ready(out)

    # Pure-JAX f32 reference for the same forward pass.  The kernel uses bf16
    # operands for both MXU contractions (f32 accumulate), so tolerances are
    # loosened accordingly.
    w_seq_ref = jnp.maximum(word_emb @ master["w1"] + master["b1"], 0.0)
    ref = jnp.einsum(
        "bnd,bd->bn",
        img_feats.reshape(B_w, num_img_samp, FEAT),
        w_seq_ref * master["dot_w"],
    )
    np.testing.assert_allclose(np.asarray(out), np.asarray(ref),
                               rtol=3e-2, atol=5e-1)

    print("KERNEL_OK")
</pallas_src>

<mosaic_0001>
module attributes {stable_mosaic.version = 11 : i64} {
  func.func @_fused_kernel(%arg0: memref<2x384xbf16, #tpu.memory_space<vmem>>, %arg1: memref<384x2048xbf16, #tpu.memory_space<vmem>>, %arg2: memref<2x2048xf32, #tpu.memory_space<vmem>>, %arg3: memref<2x4x2048xbf16, #tpu.memory_space<vmem>>, %arg4: memref<2x4xf32, #tpu.memory_space<vmem>>) attributes {dimension_semantics = [], scalar_prefetch = 0 : i64, scratch_operands = 0 : i64, tpu.core_type = #tpu.core_type<tc>} {
    %c0 = arith.constant 0 : index
    %c0_0 = arith.constant 0 : index
    %0 = vector.load %arg0[%c0, %c0_0] : memref<2x384xbf16, #tpu.memory_space<vmem>>, vector<2x384xbf16>
    %c0_1 = arith.constant 0 : index
    %c0_2 = arith.constant 0 : index
    %1 = vector.load %arg1[%c0_1, %c0_2] : memref<384x2048xbf16, #tpu.memory_space<vmem>>, vector<384x2048xbf16>
    %cst = arith.constant dense<0.000000e+00> : vector<2x2048xf32>
    %2 = tpu.matmul %0, %1, %cst {dimension_numbers = #tpu.dot_dimension_numbers<[1], [0], [0], [1], [0, 0, 1, 1], [], []>} : vector<2x384xbf16>, vector<384x2048xbf16>, vector<2x2048xf32> -> vector<2x2048xf32>
    %c0_3 = arith.constant 0 : index
    %c0_4 = arith.constant 0 : index
    %3 = vector.load %arg2[%c0_3, %c0_4] : memref<2x2048xf32, #tpu.memory_space<vmem>>, vector<1x2048xf32>
    %4 = vector.broadcast %3 : vector<1x2048xf32> to vector<2x2048xf32>
    %5 = arith.addf %2, %4 : vector<2x2048xf32>
    %cst_5 = arith.constant 0.000000e+00 : f32
    %6 = vector.broadcast %cst_5 : f32 to vector<2x2048xf32>
    %7 = arith.maximumf %5, %6 : vector<2x2048xf32>
    %c1 = arith.constant 1 : index
    %c0_6 = arith.constant 0 : index
    %8 = vector.load %arg2[%c1, %c0_6] : memref<2x2048xf32, #tpu.memory_space<vmem>>, vector<1x2048xf32>
    %9 = vector.broadcast %8 : vector<1x2048xf32> to vector<2x2048xf32>
    %10 = arith.mulf %7, %9 : vector<2x2048xf32>
    %11 = arith.truncf %10 : vector<2x2048xf32> to vector<2x2048xbf16>
    %12 = vector.shape_cast %11 : vector<2x2048xbf16> to vector<2x1x2048xbf16>
    %c0_7 = arith.constant 0 : index
    %c0_8 = arith.constant 0 : index
    %c0_9 = arith.constant 0 : index
    %13 = vector.load %arg3[%c0_7, %c0_8, %c0_9] : memref<2x4x2048xbf16, #tpu.memory_space<vmem>>, vector<2x4x2048xbf16>
    "tpu.trace_start"() <{level = 10 : i32, message = "bmd,bnd->bmn"}> : () -> ()
    %cst_10 = arith.constant dense<0.000000e+00> : vector<2x1x4xf32>
    %14 = tpu.matmul %12, %13, %cst_10 {dimension_numbers = #tpu.dot_dimension_numbers<[2], [2], [1], [1], [0, 0, 0, 1, 1, 1], [0], [0]>} : vector<2x1x2048xbf16>, vector<2x4x2048xbf16>, vector<2x1x4xf32> -> vector<2x1x4xf32>
    "tpu.trace_stop"() : () -> ()
    %15 = vector.shape_cast %14 : vector<2x1x4xf32> to vector<2x4xf32>
    %c0_11 = arith.constant 0 : index
    %c0_12 = arith.constant 0 : index
    %16 = vector.load %arg4[%c0_11, %c0_12] : memref<2x4xf32, #tpu.memory_space<vmem>>, vector<2x4xf32>
    tpu.vector_store %arg4[%c0_11, %c0_12], %15 {strides = array<i32>} : memref<2x4xf32, #tpu.memory_space<vmem>>, vector<2x4xf32>,
    return
  }
}

</mosaic_0001>

<llo_original>
// kernel: model_forward.1
$region0: #{model_forward.1}
  #allocation0 [shape = 'u32[]', space=smem, size = 0x4, offset = 0x4, fixed_abs, tag = 'smem constant byte address 0x4 - core index']
  #allocation1 [shape = 'u32[144,128]{1,0:T(1,128)}', space=vmem, size = 0x12000, scoped, tag = 'internal scratch']
  %s0 = inlined_call_operand.vmem [shape: bf16[2,384], index: 0, kind: input, shape index: {}]
  %s1 = inlined_call_operand.hbm [shape: bf16[384,2048], index: 1, kind: input, shape index: {}]
  %s2 = inlined_call_operand.hbm [shape: f32[2,2048], index: 2, kind: input, shape index: {}]
  %s3 = inlined_call_operand.vmem [shape: bf16[2,4,2048], index: 3, kind: input, shape index: {}]
  %s4 = inlined_call_operand.hbm [shape: f32[2,4], index: 4, kind: output, shape index: {}]
  %s5 = sld [smem:[#allocation0]]
  $region34: #{model_forward.1} parent=0
    _
  %s7 = ssub.s32 1, %s5
  %s8 = scalar_select 0, %s7, %s5
  $region1: #{model_forward.1} parent=0
    #allocation2 [shape = 'u8[1572864]{0}', space=vmem, size = 0x180000, scoped, tag = 'input window, operand 1, single buffered']
    #allocation3 [shape = 's32[1]{0}', space=sflag, size = 0x4, scoped, tag = 'scoped memory for model_forward.1']
    #allocation4 [shape = 's32[1]{0}', space=sflag, size = 0x4, scoped, tag = 'scoped memory for model_forward.1']
    #allocation5 [shape = 'u8[16384]{0}', space=vmem, size = 0x4000, scoped, tag = 'input window, operand 2, single buffered']
    #allocation6 [shape = 's32[1]{0}', space=sflag, size = 0x4, scoped, tag = 'scoped memory for model_forward.1']
    #allocation7 [shape = 'u8[1024]{0}', space=vmem, size = 0x400, scoped, tag = 'output window, operand 0, single buffered']
    %9 = vsyncpa [#allocation3], 0
    %10 = vsyncpa [#allocation6], 0
    %11 = vsyncpa [#allocation4], 0
    // Predicated region
    $region2: #{model_forward.1} parent=1 // pred_check
      _
    $region3: #{model_forward.1} parent=1 // pred_check_branch
      %13 = sbr.rel (0) target = $region5
    $region4: #{model_forward.1} parent=1 // pred_region
      _
    $region5: #{model_forward.1} parent=1 // pred_fallthru
      _
    // Predicated region
    $region6: #{model_forward.1} parent=1 // pred_check
      _
    $region7: #{model_forward.1} parent=1 // pred_check_branch
      %15 = sbr.rel (0) target = $region9
    $region8: #{model_forward.1} parent=1 // pred_region
      %s17 = ssub.s32 49152, 49152
      %18 = vsyncadd [#allocation3], %s17
      %s19 = sshll.u32 [#allocation2], 4
      %s20 = int_to_ptr.vmem [resolvable:$true] %s19
      %25 = dma.hbm_to_vmem [thread:$0]  %s1, 49152, %s20, [#allocation3], 1024, 1024, 64
    $region9: #{model_forward.1} parent=1 // pred_fallthru
      _
    // Predicated region
    $region10: #{model_forward.1} parent=1 // pred_check
      _
    $region11: #{model_forward.1} parent=1 // pred_check_branch
      %27 = sbr.rel (0) target = $region13
    $region12: #{model_forward.1} parent=1 // pred_region
      %s29 = ssub.s32 512, 512
      %30 = vsyncadd [#allocation6], %s29
      %s32 = sshll.u32 [#allocation5], 4
      %s33 = int_to_ptr.vmem [resolvable:$true] %s32
      %35 = dma.hbm_to_vmem [thread:$0]  %s2, 512, %s33, [#allocation6]
    $region13: #{model_forward.1} parent=1 // pred_fallthru
      _
    // Predicated region
    $region14: #{model_forward.1} parent=1 // pred_check
      _
    $region15: #{model_forward.1} parent=1 // pred_check_branch
      %37 = sbr.rel (0) target = $region17
    $region16: #{model_forward.1} parent=1 // pred_region
      _
    $region17: #{model_forward.1} parent=1 // pred_fallthru
      _
    // Predicated region
    $region18: #{model_forward.1} parent=1 // pred_check
      _
    $region19: #{model_forward.1} parent=1 // pred_check_branch
      %39 = sbr.rel (0) target = $region21
    $region20: #{model_forward.1} parent=1 // pred_region
      %40 = dma.done [#allocation3], 49152
    $region21: #{model_forward.1} parent=1 // pred_fallthru
      _
    // Predicated region
    $region22: #{model_forward.1} parent=1 // pred_check
      _
    $region23: #{model_forward.1} parent=1 // pred_check_branch
      %42 = sbr.rel (0) target = $region25
    $region24: #{model_forward.1} parent=1 // pred_region
      %43 = dma.done [#allocation6], 512
    $region25: #{model_forward.1} parent=1 // pred_fallthru
      _
    %v45 = vld [vmem:[%s0] sm:$0x7]
    %v46 = vld [vmem:[#allocation2] sm:$0xff]
    %v47 = vld [vmem:[#allocation2 + $0x8] sm:$0xff]
    %v48 = vld [vmem:[#allocation2 + $0x10] sm:$0xff]
    %v49 = vld [vmem:[#allocation2 + $0x18] sm:$0xff]
    %v50 = vld [vmem:[#allocation2 + $0x20] sm:$0xff]
    %v51 = vld [vmem:[#allocation2 + $0x28] sm:$0xff]
    %v52 = vld [vmem:[#allocation2 + $0x30] sm:$0xff]
    %v53 = vld [vmem:[#allocation2 + $0x38] sm:$0xff]
    %v54 = vld [vmem:[#allocation2 + $0x40] sm:$0xff]
    %v55 = vld [vmem:[#allocation2 + $0x48] sm:$0xff]
    %v56 = vld [vmem:[#allocation2 + $0x50] sm:$0xff]
    %v57 = vld [vmem:[#allocation2 + $0x58] sm:$0xff]
    %v58 = vld [vmem:[#allocation2 + $0x60] sm:$0xff]
    %v59 = vld [vmem:[#allocation2 + $0x68] sm:$0xff]
    %v60 = vld [vmem:[#allocation2 + $0x70] sm:$0xff]
    %v61 = vld [vmem:[#allocation2 + $0x78] sm:$0xff]
    %v62 = vld [vmem:[#allocation2 + $0x80] sm:$0xff]
    %v63 = vld [vmem:[#allocation2 + $0x88] sm:$0xff]
    %v64 = vld [vmem:[#allocation2 + $0x90] sm:$0xff]
    %v65 = vld [vmem:[#allocation2 + $0x98] sm:$0xff]
    %v66 = vld [vmem:[#allocation2 + $0xa0] sm:$0xff]
    %v67 = vld [vmem:[#allocation2 + $0xa8] sm:$0xff]
    %v68 = vld [vmem:[#allocation2 + $0xb0] sm:$0xff]
    %v69 = vld [vmem:[#allocation2 + $0xb8] sm:$0xff]
    %v70 = vld [vmem:[#allocation2 + $0xc0] sm:$0xff]
    %v71 = vld [vmem:[#allocation2 + $0xc8] sm:$0xff]
    %v72 = vld [vmem:[#allocation2 + $0xd0] sm:$0xff]
    %v73 = vld [vmem:[#allocation2 + $0xd8] sm:$0xff]
    %v74 = vld [vmem:[#allocation2 + $0xe0] sm:$0xff]
    %v75 = vld [vmem:[#allocation2 + $0xe8] sm:$0xff]
    %v76 = vld [vmem:[#allocation2 + $0xf0] sm:$0xff]
    %v77 = vld [vmem:[#allocation2 + $0xf8] sm:$0xff]
    %v78 = vld [vmem:[#allocation2 + $0x100] sm:$0xff]
    %v79 = vld [vmem:[#allocation2 + $0x108] sm:$0xff]
    %v80 = vld [vmem:[#allocation2 + $0x110] sm:$0xff]
    %v81 = vld [vmem:[#allocation2 + $0x118] sm:$0xff]
    %v82 = vld [vmem:[#allocation2 + $0x120] sm:$0xff]
    %v83 = vld [vmem:[#allocation2 + $0x128] sm:$0xff]
    %v84 = vld [vmem:[#allocation2 + $0x130] sm:$0xff]
    %v85 = vld [vmem:[#allocation2 + $0x138] sm:$0xff]
    %v86 = vld [vmem:[#allocation2 + $0x140] sm:$0xff]
    %v87 = vld [vmem:[#allocation2 + $0x148] sm:$0xff]
    %v88 = vld [vmem:[#allocation2 + $0x150] sm:$0xff]
    %v89 = vld [vmem:[#allocation2 + $0x158] sm:$0xff]
    %v90 = vld [vmem:[#allocation2 + $0x160] sm:$0xff]
    %v91 = vld [vmem:[#allocation2 + $0x168] sm:$0xff]
    %v92 = vld [vmem:[#allocation2 + $0x170] sm:$0xff]
    %v93 = vld [vmem:[#allocation2 + $0x178] sm:$0xff]
    %v94 = vld [vmem:[#allocation2 + $0x180] sm:$0xff]
    %v95 = vld [vmem:[#allocation2 + $0x188] sm:$0xff]
    %v96 = vld [vmem:[#allocation2 + $0x190] sm:$0xff]
    %v97 = vld [vmem:[#allocation2 + $0x198] sm:$0xff]
    %v98 = vld [vmem:[#allocation2 + $0x1a0] sm:$0xff]
    %v99 = vld [vmem:[#allocation2 + $0x1a8] sm:$0xff]
    %v100 = vld [vmem:[#allocation2 + $0x1b0] sm:$0xff]
    %v101 = vld [vmem:[#allocation2 + $0x1b8] sm:$0xff]
    %v102 = vld [vmem:[#allocation2 + $0x1c0] sm:$0xff]
    %v103 = vld [vmem:[#allocation2 + $0x1c8] sm:$0xff]
    %v104 = vld [vmem:[#allocation2 + $0x1d0] sm:$0xff]
    %v105 = vld [vmem:[#allocation2 + $0x1d8] sm:$0xff]
    %v106 = vld [vmem:[#allocation2 + $0x1e0] sm:$0xff]
    %v107 = vld [vmem:[#allocation2 + $0x1e8] sm:$0xff]
    %v108 = vld [vmem:[#allocation2 + $0x1f0] sm:$0xff]
    %v109 = vld [vmem:[#allocation2 + $0x1f8] sm:$0xff]
    %v110 = vld [vmem:[#allocation2 + $0x200] sm:$0xff]
    %v111 = vld [vmem:[#allocation2 + $0x208] sm:$0xff]
    %v112 = vld [vmem:[#allocation2 + $0x210] sm:$0xff]
    %v113 = vld [vmem:[#allocation2 + $0x218] sm:$0xff]
    %v114 = vld [vmem:[#allocation2 + $0x220] sm:$0xff]
    %v115 = vld [vmem:[#allocation2 + $0x228] sm:$0xff]
    %v116 = vld [vmem:[#allocation2 + $0x230] sm:$0xff]
    %v117 = vld [vmem:[#allocation2 + $0x238] sm:$0xff]
    %v118 = vld [vmem:[#allocation2 + $0x240] sm:$0xff]
    %v119 = vld [vmem:[#allocation2 + $0x248] sm:$0xff]
    %v120 = vld [vmem:[#allocation2 + $0x250] sm:$0xff]
    %v121 = vld [vmem:[#allocation2 + $0x258] sm:$0xff]
    %v122 = vld [vmem:[#allocation2 + $0x260] sm:$0xff]
    %v123 = vld [vmem:[#allocation2 + $0x268] sm:$0xff]
    %v124 = vld [vmem:[#allocation2 + $0x270] sm:$0xff]
    %v125 = vld [vmem:[#allocation2 + $0x278] sm:$0xff]
    %v126 = vld [vmem:[#allocation2 + $0x280] sm:$0xff]
    %v127 = vld [vmem:[#allocation2 + $0x288] sm:$0xff]
    %v128 = vld [vmem:[#allocation2 + $0x290] sm:$0xff]
    %v129 = vld [vmem:[#allocation2 + $0x298] sm:$0xff]
    %v130 = vld [vmem:[#allocation2 + $0x2a0] sm:$0xff]
    %v131 = vld [vmem:[#allocation2 + $0x2a8] sm:$0xff]
    %v132 = vld [vmem:[#allocation2 + $0x2b0] sm:$0xff]
    %v133 = vld [vmem:[#allocation2 + $0x2b8] sm:$0xff]
    %v134 = vld [vmem:[#allocation2 + $0x2c0] sm:$0xff]
    %v135 = vld [vmem:[#allocation2 + $0x2c8] sm:$0xff]
    %v136 = vld [vmem:[#allocation2 + $0x2d0] sm:$0xff]
    %v137 = vld [vmem:[#allocation2 + $0x2d8] sm:$0xff]
    %v138 = vld [vmem:[#allocation2 + $0x2e0] sm:$0xff]
    %v139 = vld [vmem:[#allocation2 + $0x2e8] sm:$0xff]
    %v140 = vld [vmem:[#allocation2 + $0x2f0] sm:$0xff]
    %v141 = vld [vmem:[#allocation2 + $0x2f8] sm:$0xff]
    %v142 = vld [vmem:[#allocation2 + $0x300] sm:$0xff]
    %v143 = vld [vmem:[#allocation2 + $0x308] sm:$0xff]
    %v144 = vld [vmem:[#allocation2 + $0x310] sm:$0xff]
    %v145 = vld [vmem:[#allocation2 + $0x318] sm:$0xff]
    %v146 = vld [vmem:[#allocation2 + $0x320] sm:$0xff]
    %v147 = vld [vmem:[#allocation2 + $0x328] sm:$0xff]
    %v148 = vld [vmem:[#allocation2 + $0x330] sm:$0xff]
    %v149 = vld [vmem:[#allocation2 + $0x338] sm:$0xff]
    %v150 = vld [vmem:[#allocation2 + $0x340] sm:$0xff]
    %v151 = vld [vmem:[#allocation2 + $0x348] sm:$0xff]
    %v152 = vld [vmem:[#allocation2 + $0x350] sm:$0xff]
    %v153 = vld [vmem:[#allocation2 + $0x358] sm:$0xff]
    %v154 = vld [vmem:[#allocation2 + $0x360] sm:$0xff]
    %v155 = vld [vmem:[#allocation2 + $0x368] sm:$0xff]
    %v156 = vld [vmem:[#allocation2 + $0x370] sm:$0xff]
    %v157 = vld [vmem:[#allocation2 + $0x378] sm:$0xff]
    %v158 = vld [vmem:[#allocation2 + $0x380] sm:$0xff]
    %v159 = vld [vmem:[#allocation2 + $0x388] sm:$0xff]
    %v160 = vld [vmem:[#allocation2 + $0x390] sm:$0xff]
    %v161 = vld [vmem:[#allocation2 + $0x398] sm:$0xff]
    %v162 = vld [vmem:[#allocation2 + $0x3a0] sm:$0xff]
    %v163 = vld [vmem:[#allocation2 + $0x3a8] sm:$0xff]
    %v164 = vld [vmem:[#allocation2 + $0x3b0] sm:$0xff]
    %v165 = vld [vmem:[#allocation2 + $0x3b8] sm:$0xff]
    %v166 = vld [vmem:[#allocation2 + $0x3c0] sm:$0xff]
    %v167 = vld [vmem:[#allocation2 + $0x3c8] sm:$0xff]
    %v168 = vld [vmem:[#allocation2 + $0x3d0] sm:$0xff]
    %v169 = vld [vmem:[#allocation2 + $0x3d8] sm:$0xff]
    %v170 = vld [vmem:[#allocation2 + $0x3e0] sm:$0xff]
    %v171 = vld [vmem:[#allocation2 + $0x3e8] sm:$0xff]
    %v172 = vld [vmem:[#allocation2 + $0x3f0] sm:$0xff]
    %v173 = vld [vmem:[#allocation2 + $0x3f8] sm:$0xff]
    %v174 = vld [vmem:[#allocation2 + $0x400] sm:$0xff]
    %v175 = vld [vmem:[#allocation2 + $0x408] sm:$0xff]
    %v176 = vld [vmem:[#allocation2 + $0x410] sm:$0xff]
    %v177 = vld [vmem:[#allocation2 + $0x418] sm:$0xff]
    %v178 = vld [vmem:[#allocation2 + $0x420] sm:$0xff]
    %v179 = vld [vmem:[#allocation2 + $0x428] sm:$0xff]
    %v180 = vld [vmem:[#allocation2 + $0x430] sm:$0xff]
    %v181 = vld [vmem:[#allocation2 + $0x438] sm:$0xff]
    %v182 = vld [vmem:[#allocation2 + $0x440] sm:$0xff]
    %v183 = vld [vmem:[#allocation2 + $0x448] sm:$0xff]
    %v184 = vld [vmem:[#allocation2 + $0x450] sm:$0xff]
    %v185 = vld [vmem:[#allocation2 + $0x458] sm:$0xff]
    %v186 = vld [vmem:[#allocation2 + $0x460] sm:$0xff]
    %v187 = vld [vmem:[#allocation2 + $0x468] sm:$0xff]
    %v188 = vld [vmem:[#allocation2 + $0x470] sm:$0xff]
    %v189 = vld [vmem:[#allocation2 + $0x478] sm:$0xff]
    %v190 = vld [vmem:[#allocation2 + $0x480] sm:$0xff]
    %v191 = vld [vmem:[#allocation2 + $0x488] sm:$0xff]
    %v192 = vld [vmem:[#allocation2 + $0x490] sm:$0xff]
    %v193 = vld [vmem:[#allocation2 + $0x498] sm:$0xff]
    %v194 = vld [vmem:[#allocation2 + $0x4a0] sm:$0xff]
    %v195 = vld [vmem:[#allocation2 + $0x4a8] sm:$0xff]
    %v196 = vld [vmem:[#allocation2 + $0x4b0] sm:$0xff]
    %v197 = vld [vmem:[#allocation2 + $0x4b8] sm:$0xff]
    %v198 = vld [vmem:[#allocation2 + $0x4c0] sm:$0xff]
    %v199 = vld [vmem:[#allocation2 + $0x4c8] sm:$0xff]
    %v200 = vld [vmem:[#allocation2 + $0x4d0] sm:$0xff]
    %v201 = vld [vmem:[#allocation2 + $0x4d8] sm:$0xff]
    %v202 = vld [vmem:[#allocation2 + $0x4e0] sm:$0xff]
    %v203 = vld [vmem:[#allocation2 + $0x4e8] sm:$0xff]
    %v204 = vld [vmem:[#allocation2 + $0x4f0] sm:$0xff]
    %v205 = vld [vmem:[#allocation2 + $0x4f8] sm:$0xff]
    %v206 = vld [vmem:[#allocation2 + $0x500] sm:$0xff]
    %v207 = vld [vmem:[#allocation2 + $0x508] sm:$0xff]
    %v208 = vld [vmem:[#allocation2 + $0x510] sm:$0xff]
    %v209 = vld [vmem:[#allocation2 + $0x518] sm:$0xff]
    %v210 = vld [vmem:[#allocation2 + $0x520] sm:$0xff]
    %v211 = vld [vmem:[#allocation2 + $0x528] sm:$0xff]
    %v212 = vld [vmem:[#allocation2 + $0x530] sm:$0xff]
    %v213 = vld [vmem:[#allocation2 + $0x538] sm:$0xff]
    %v214 = vld [vmem:[#allocation2 + $0x540] sm:$0xff]
    %v215 = vld [vmem:[#allocation2 + $0x548] sm:$0xff]
    %v216 = vld [vmem:[#allocation2 + $0x550] sm:$0xff]
    %v217 = vld [vmem:[#allocation2 + $0x558] sm:$0xff]
    %v218 = vld [vmem:[#allocation2 + $0x560] sm:$0xff]
    %v219 = vld [vmem:[#allocation2 + $0x568] sm:$0xff]
    %v220 = vld [vmem:[#allocation2 + $0x570] sm:$0xff]
    %v221 = vld [vmem:[#allocation2 + $0x578] sm:$0xff]
    %v222 = vld [vmem:[#allocation2 + $0x580] sm:$0xff]
    %v223 = vld [vmem:[#allocation2 + $0x588] sm:$0xff]
    %v224 = vld [vmem:[#allocation2 + $0x590] sm:$0xff]
    %v225 = vld [vmem:[#allocation2 + $0x598] sm:$0xff]
    %v226 = vld [vmem:[#allocation2 + $0x5a0] sm:$0xff]
    %v227 = vld [vmem:[#allocation2 + $0x5a8] sm:$0xff]
    %v228 = vld [vmem:[#allocation2 + $0x5b0] sm:$0xff]
    %v229 = vld [vmem:[#allocation2 + $0x5b8] sm:$0xff]
    %v230 = vld [vmem:[#allocation2 + $0x5c0] sm:$0xff]
    %v231 = vld [vmem:[#allocation2 + $0x5c8] sm:$0xff]
    %v232 = vld [vmem:[#allocation2 + $0x5d0] sm:$0xff]
    %v233 = vld [vmem:[#allocation2 + $0x5d8] sm:$0xff]
    %v234 = vld [vmem:[#allocation2 + $0x5e0] sm:$0xff]
    %v235 = vld [vmem:[#allocation2 + $0x5e8] sm:$0xff]
    %v236 = vld [vmem:[#allocation2 + $0x5f0] sm:$0xff]
    %v237 = vld [vmem:[#allocation2 + $0x5f8] sm:$0xff]
    %v238 = vld [vmem:[#allocation2 + $0x600] sm:$0xff]
    %v239 = vld [vmem:[#allocation2 + $0x608] sm:$0xff]
    %v240 = vld [vmem:[#allocation2 + $0x610] sm:$0xff]
    %v241 = vld [vmem:[#allocation2 + $0x618] sm:$0xff]
    %v242 = vld [vmem:[#allocation2 + $0x620] sm:$0xff]
    %v243 = vld [vmem:[#allocation2 + $0x628] sm:$0xff]
    %v244 = vld [vmem:[#allocation2 + $0x630] sm:$0xff]
    %v245 = vld [vmem:[#allocation2 + $0x638] sm:$0xff]
    %v246 = vld [vmem:[#allocation2 + $0x640] sm:$0xff]
    %v247 = vld [vmem:[#allocation2 + $0x648] sm:$0xff]
    %v248 = vld [vmem:[#allocation2 + $0x650] sm:$0xff]
    %v249 = vld [vmem:[#allocation2 + $0x658] sm:$0xff]
    %v250 = vld [vmem:[#allocation2 + $0x660] sm:$0xff]
    %v251 = vld [vmem:[#allocation2 + $0x668] sm:$0xff]
    %v252 = vld [vmem:[#allocation2 + $0x670] sm:$0xff]
    %v253 = vld [vmem:[#allocation2 + $0x678] sm:$0xff]
    %v254 = vld [vmem:[#allocation2 + $0x680] sm:$0xff]
    %v255 = vld [vmem:[#allocation2 + $0x688] sm:$0xff]
    %v256 = vld [vmem:[#allocation2 + $0x690] sm:$0xff]
    %v257 = vld [vmem:[#allocation2 + $0x698] sm:$0xff]
    %v258 = vld [vmem:[#allocation2 + $0x6a0] sm:$0xff]
    %v259 = vld [vmem:[#allocation2 + $0x6a8] sm:$0xff]
    %v260 = vld [vmem:[#allocation2 + $0x6b0] sm:$0xff]
    %v261 = vld [vmem:[#allocation2 + $0x6b8] sm:$0xff]
    %v262 = vld [vmem:[#allocation2 + $0x6c0] sm:$0xff]
    %v263 = vld [vmem:[#allocation2 + $0x6c8] sm:$0xff]
    %v264 = vld [vmem:[#allocation2 + $0x6d0] sm:$0xff]
    %v265 = vld [vmem:[#allocation2 + $0x6d8] sm:$0xff]
    %v266 = vld [vmem:[#allocation2 + $0x6e0] sm:$0xff]
    %v267 = vld [vmem:[#allocation2 + $0x6e8] sm:$0xff]
    %v268 = vld [vmem:[#allocation2 + $0x6f0] sm:$0xff]
    %v269 = vld [vmem:[#allocation2 + $0x6f8] sm:$0xff]
    %v270 = vld [vmem:[#allocation2 + $0x700] sm:$0xff]
    %v271 = vld [vmem:[#allocation2 + $0x708] sm:$0xff]
    %v272 = vld [vmem:[#allocation2 + $0x710] sm:$0xff]
    %v273 = vld [vmem:[#allocation2 + $0x718] sm:$0xff]
    %v274 = vld [vmem:[#allocation2 + $0x720] sm:$0xff]
    %v275 = vld [vmem:[#allocation2 + $0x728] sm:$0xff]
    %v276 = vld [vmem:[#allocation2 + $0x730] sm:$0xff]
    %v277 = vld [vmem:[#allocation2 + $0x738] sm:$0xff]
    %v278 = vld [vmem:[#allocation2 + $0x740] sm:$0xff]
    %v279 = vld [vmem:[#allocation2 + $0x748] sm:$0xff]
    %v280 = vld [vmem:[#allocation2 + $0x750] sm:$0xff]
    %v281 = vld [vmem:[#allocation2 + $0x758] sm:$0xff]
    %v282 = vld [vmem:[#allocation2 + $0x760] sm:$0xff]
    %v283 = vld [vmem:[#allocation2 + $0x768] sm:$0xff]
    %v284 = vld [vmem:[#allocation2 + $0x770] sm:$0xff]
    %v285 = vld [vmem:[#allocation2 + $0x778] sm:$0xff]
    %v286 = vld [vmem:[#allocation2 + $0x780] sm:$0xff]
    %v287 = vld [vmem:[#allocation2 + $0x788] sm:$0xff]
    %v288 = vld [vmem:[#allocation2 + $0x790] sm:$0xff]
    %v289 = vld [vmem:[#allocation2 + $0x798] sm:$0xff]
    %v290 = vld [vmem:[#allocation2 + $0x7a0] sm:$0xff]
    %v291 = vld [vmem:[#allocation2 + $0x7a8] sm:$0xff]
    %v292 = vld [vmem:[#allocation2 + $0x7b0] sm:$0xff]
    %v293 = vld [vmem:[#allocation2 + $0x7b8] sm:$0xff]
    %v294 = vld [vmem:[#allocation2 + $0x7c0] sm:$0xff]
    %v295 = vld [vmem:[#allocation2 + $0x7c8] sm:$0xff]
    %v296 = vld [vmem:[#allocation2 + $0x7d0] sm:$0xff]
    %v297 = vld [vmem:[#allocation2 + $0x7d8] sm:$0xff]
    %v298 = vld [vmem:[#allocation2 + $0x7e0] sm:$0xff]
    %v299 = vld [vmem:[#allocation2 + $0x7e8] sm:$0xff]
    %v300 = vld [vmem:[#allocation2 + $0x7f0] sm:$0xff]
    %v301 = vld [vmem:[#allocation2 + $0x7f8] sm:$0xff]
    %v302 = vld [vmem:[#allocation2 + $0x800] sm:$0xff]
    %v303 = vld [vmem:[#allocation2 + $0x808] sm:$0xff]
    %v304 = vld [vmem:[#allocation2 + $0x810] sm:$0xff]
    %v305 = vld [vmem:[#allocation2 + $0x818] sm:$0xff]
    %v306 = vld [vmem:[#allocation2 + $0x820] sm:$0xff]
    %v307 = vld [vmem:[#allocation2 + $0x828] sm:$0xff]
    %v308 = vld [vmem:[#allocation2 + $0x830] sm:$0xff]
    %v309 = vld [vmem:[#allocation2 + $0x838] sm:$0xff]
    %v310 = vld [vmem:[#allocation2 + $0x840] sm:$0xff]
    %v311 = vld [vmem:[#allocation2 + $0x848] sm:$0xff]
    %v312 = vld [vmem:[#allocation2 + $0x850] sm:$0xff]
    %v313 = vld [vmem:[#allocation2 + $0x858] sm:$0xff]
    %v314 = vld [vmem:[#allocation2 + $0x860] sm:$0xff]
    %v315 = vld [vmem:[#allocation2 + $0x868] sm:$0xff]
    %v316 = vld [vmem:[#allocation2 + $0x870] sm:$0xff]
    %v317 = vld [vmem:[#allocation2 + $0x878] sm:$0xff]
    %v318 = vld [vmem:[#allocation2 + $0x880] sm:$0xff]
    %v319 = vld [vmem:[#allocation2 + $0x888] sm:$0xff]
    %v320 = vld [vmem:[#allocation2 + $0x890] sm:$0xff]
    %v321 = vld [vmem:[#allocation2 + $0x898] sm:$0xff]
    %v322 = vld [vmem:[#allocation2 + $0x8a0] sm:$0xff]
    %v323 = vld [vmem:[#allocation2 + $0x8a8] sm:$0xff]
    %v324 = vld [vmem:[#allocation2 + $0x8b0] sm:$0xff]
    %v325 = vld [vmem:[#allocation2 + $0x8b8] sm:$0xff]
    %v326 = vld [vmem:[#allocation2 + $0x8c0] sm:$0xff]
    %v327 = vld [vmem:[#allocation2 + $0x8c8] sm:$0xff]
    %v328 = vld [vmem:[#allocation2 + $0x8d0] sm:$0xff]
    %v329 = vld [vmem:[#allocation2 + $0x8d8] sm:$0xff]
    %v330 = vld [vmem:[#allocation2 + $0x8e0] sm:$0xff]
    %v331 = vld [vmem:[#allocation2 + $0x8e8] sm:$0xff]
    %v332 = vld [vmem:[#allocation2 + $0x8f0] sm:$0xff]
    %v333 = vld [vmem:[#allocation2 + $0x8f8] sm:$0xff]
    %v334 = vld [vmem:[#allocation2 + $0x900] sm:$0xff]
    %v335 = vld [vmem:[#allocation2 + $0x908] sm:$0xff]
    %v336 = vld [vmem:[#allocation2 + $0x910] sm:$0xff]
    %v337 = vld [vmem:[#allocation2 + $0x918] sm:$0xff]
    %v338 = vld [vmem:[#allocation2 + $0x920] sm:$0xff]
    %v339 = vld [vmem:[#allocation2 + $0x928] sm:$0xff]
    %v340 = vld [vmem:[#allocation2 + $0x930] sm:$0xff]
    %v341 = vld [vmem:[#allocation2 + $0x938] sm:$0xff]
    %v342 = vld [vmem:[#allocation2 + $0x940] sm:$0xff]
    %v343 = vld [vmem:[#allocation2 + $0x948] sm:$0xff]
    %v344 = vld [vmem:[#allocation2 + $0x950] sm:$0xff]
    %v345 = vld [vmem:[#allocation2 + $0x958] sm:$0xff]
    %v346 = vld [vmem:[#allocation2 + $0x960] sm:$0xff]
    %v347 = vld [vmem:[#allocation2 + $0x968] sm:$0xff]
    %v348 = vld [vmem:[#allocation2 + $0x970] sm:$0xff]
    %v349 = vld [vmem:[#allocation2 + $0x978] sm:$0xff]
    %v350 = vld [vmem:[#allocation2 + $0x980] sm:$0xff]
    %v351 = vld [vmem:[#allocation2 + $0x988] sm:$0xff]
    %v352 = vld [vmem:[#allocation2 + $0x990] sm:$0xff]
    %v353 = vld [vmem:[#allocation2 + $0x998] sm:$0xff]
    %v354 = vld [vmem:[#allocation2 + $0x9a0] sm:$0xff]
    %v355 = vld [vmem:[#allocation2 + $0x9a8] sm:$0xff]
    %v356 = vld [vmem:[#allocation2 + $0x9b0] sm:$0xff]
    %v357 = vld [vmem:[#allocation2 + $0x9b8] sm:$0xff]
    %v358 = vld [vmem:[#allocation2 + $0x9c0] sm:$0xff]
    %v359 = vld [vmem:[#allocation2 + $0x9c8] sm:$0xff]
    %v360 = vld [vmem:[#allocation2 + $0x9d0] sm:$0xff]
    %v361 = vld [vmem:[#allocation2 + $0x9d8] sm:$0xff]
    %v362 = vld [vmem:[#allocation2 + $0x9e0] sm:$0xff]
    %v363 = vld [vmem:[#allocation2 + $0x9e8] sm:$0xff]
    %v364 = vld [vmem:[#allocation2 + $0x9f0] sm:$0xff]
    %v365 = vld [vmem:[#allocation2 + $0x9f8] sm:$0xff]
    %v366 = vld [vmem:[#allocation2 + $0xa00] sm:$0xff]
    %v367 = vld [vmem:[#allocation2 + $0xa08] sm:$0xff]
    %v368 = vld [vmem:[#allocation2 + $0xa10] sm:$0xff]
    %v369 = vld [vmem:[#allocation2 + $0xa18] sm:$0xff]
    %v370 = vld [vmem:[#allocation2 + $0xa20] sm:$0xff]
    %v371 = vld [vmem:[#allocation2 + $0xa28] sm:$0xff]
    %v372 = vld [vmem:[#allocation2 + $0xa30] sm:$0xff]
    %v373 = vld [vmem:[#allocation2 + $0xa38] sm:$0xff]
    %v374 = vld [vmem:[#allocation2 + $0xa40] sm:$0xff]
    %v375 = vld [vmem:[#allocation2 + $0xa48] sm:$0xff]
    %v376 = vld [vmem:[#allocation2 + $0xa50] sm:$0xff]
    %v377 = vld [vmem:[#allocation2 + $0xa58] sm:$0xff]
    %v378 = vld [vmem:[#allocation2 + $0xa60] sm:$0xff]
    %v379 = vld [vmem:[#allocation2 + $0xa68] sm:$0xff]
    %v380 = vld [vmem:[#allocation2 + $0xa70] sm:$0xff]
    %v381 = vld [vmem:[#allocation2 + $0xa78] sm:$0xff]
    %v382 = vld [vmem:[#allocation2 + $0xa80] sm:$0xff]
    %v383 = vld [vmem:[#allocation2 + $0xa88] sm:$0xff]
    %v384 = vld [vmem:[#allocation2 + $0xa90] sm:$0xff]
    %v385 = vld [vmem:[#allocation2 + $0xa98] sm:$0xff]
    %v386 = vld [vmem:[#allocation2 + $0xaa0] sm:$0xff]
    %v387 = vld [vmem:[#allocation2 + $0xaa8] sm:$0xff]
    %v388 = vld [vmem:[#allocation2 + $0xab0] sm:$0xff]
    %v389 = vld [vmem:[#allocation2 + $0xab8] sm:$0xff]
    %v390 = vld [vmem:[#allocation2 + $0xac0] sm:$0xff]
    %v391 = vld [vmem:[#allocation2 + $0xac8] sm:$0xff]
    %v392 = vld [vmem:[#allocation2 + $0xad0] sm:$0xff]
    %v393 = vld [vmem:[#allocation2 + $0xad8] sm:$0xff]
    %v394 = vld [vmem:[#allocation2 + $0xae0] sm:$0xff]
    %v395 = vld [vmem:[#allocation2 + $0xae8] sm:$0xff]
    %v396 = vld [vmem:[#allocation2 + $0xaf0] sm:$0xff]
    %v397 = vld [vmem:[#allocation2 + $0xaf8] sm:$0xff]
    %v398 = vld [vmem:[#allocation2 + $0xb00] sm:$0xff]
    %v399 = vld [vmem:[#allocation2 + $0xb08] sm:$0xff]
    %v400 = vld [vmem:[#allocation2 + $0xb10] sm:$0xff]
    %v401 = vld [vmem:[#allocation2 + $0xb18] sm:$0xff]
    %v402 = vld [vmem:[#allocation2 + $0xb20] sm:$0xff]
    %v403 = vld [vmem:[#allocation2 + $0xb28] sm:$0xff]
    %v404 = vld [vmem:[#allocation2 + $0xb30] sm:$0xff]
    %v405 = vld [vmem:[#allocation2 + $0xb38] sm:$0xff]
    %v406 = vld [vmem:[#allocation2 + $0xb40] sm:$0xff]
    %v407 = vld [vmem:[#allocation2 + $0xb48] sm:$0xff]
    %v408 = vld [vmem:[#allocation2 + $0xb50] sm:$0xff]
    %v409 = vld [vmem:[#allocation2 + $0xb58] sm:$0xff]
    %v410 = vld [vmem:[#allocation2 + $0xb60] sm:$0xff]
    %v411 = vld [vmem:[#allocation2 + $0xb68] sm:$0xff]
    %v412 = vld [vmem:[#allocation2 + $0xb70] sm:$0xff]
    %v413 = vld [vmem:[#allocation2 + $0xb78] sm:$0xff]
    %v414 = vld [vmem:[#allocation2 + $0xb80] sm:$0xff]
    %v415 = vld [vmem:[#allocation2 + $0xb88] sm:$0xff]
    %v416 = vld [vmem:[#allocation2 + $0xb90] sm:$0xff]
    %v417 = vld [vmem:[#allocation2 + $0xb98] sm:$0xff]
    %v418 = vld [vmem:[#allocation2 + $0xba0] sm:$0xff]
    %v419 = vld [vmem:[#allocation2 + $0xba8] sm:$0xff]
    %v420 = vld [vmem:[#allocation2 + $0xbb0] sm:$0xff]
    %v421 = vld [vmem:[#allocation2 + $0xbb8] sm:$0xff]
    %v422 = vld [vmem:[#allocation2 + $0xbc0] sm:$0xff]
    %v423 = vld [vmem:[#allocation2 + $0xbc8] sm:$0xff]
    %v424 = vld [vmem:[#allocation2 + $0xbd0] sm:$0xff]
    %v425 = vld [vmem:[#allocation2 + $0xbd8] sm:$0xff]
    %v426 = vld [vmem:[#allocation2 + $0xbe0] sm:$0xff]
    %v427 = vld [vmem:[#allocation2 + $0xbe8] sm:$0xff]
    %v428 = vld [vmem:[#allocation2 + $0xbf0] sm:$0xff]
    %v429 = vld [vmem:[#allocation2 + $0xbf8] sm:$0xff]
    %v430 = vld [vmem:[#allocation5] ss:$2 sm:$0xff]
    %s431 = scalar_lea.vmem [#allocation5], 16
    %v432 = vld [vmem:[%s431] ss:$2 sm:$0xff]
    %v435 = vlaneseq
    %v436 = vshrl.u32 %v435, 7
    %v437 = vsub.s32 0, %v436
    %v438 = vrot.slane %v430, %v437
    %v439 = vlaneseq
    %v440 = vshrl.u32 %v439, 7
    %v441 = vsub.s32 1, %v440
    %v442 = vrot.slane %v430, %v441
    %v443 = vlaneseq
    %v444 = vshrl.u32 %v443, 7
    %v445 = vsub.s32 2, %v444
    %v446 = vrot.slane %v430, %v445
    %v447 = vlaneseq
    %v448 = vshrl.u32 %v447, 7
    %v449 = vsub.s32 3, %v448
    %v450 = vrot.slane %v430, %v449
    %v451 = vlaneseq
    %v452 = vshrl.u32 %v451, 7
    %v453 = vsub.s32 4, %v452
    %v454 = vrot.slane %v430, %v453
    %v455 = vlaneseq
    %v456 = vshrl.u32 %v455, 7
    %v457 = vsub.s32 5, %v456
    %v458 = vrot.slane %v430, %v457
    %v459 = vlaneseq
    %v460 = vshrl.u32 %v459, 7
    %v461 = vsub.s32 6, %v460
    %v462 = vrot.slane %v430, %v461
    %v463 = vlaneseq
    %v464 = vshrl.u32 %v463, 7
    %v465 = vsub.s32 7, %v464
    %v466 = vrot.slane %v430, %v465
    %v467 = vlaneseq
    %v468 = vshrl.u32 %v467, 7
    %v469 = vsub.s32 0, %v468
    %v470 = vrot.slane %v432, %v469
    %v471 = vlaneseq
    %v472 = vshrl.u32 %v471, 7
    %v473 = vsub.s32 1, %v472
    %v474 = vrot.slane %v432, %v473
    %v475 = vlaneseq
    %v476 = vshrl.u32 %v475, 7
    %v477 = vsub.s32 2, %v476
    %v478 = vrot.slane %v432, %v477
    %v479 = vlaneseq
    %v480 = vshrl.u32 %v479, 7
    %v481 = vsub.s32 3, %v480
    %v482 = vrot.slane %v432, %v481
    %v483 = vlaneseq
    %v484 = vshrl.u32 %v483, 7
    %v485 = vsub.s32 4, %v484
    %v486 = vrot.slane %v432, %v485
    %v487 = vlaneseq
    %v488 = vshrl.u32 %v487, 7
    %v489 = vsub.s32 5, %v488
    %v490 = vrot.slane %v432, %v489
    %v491 = vlaneseq
    %v492 = vshrl.u32 %v491, 7
    %v493 = vsub.s32 6, %v492
    %v494 = vrot.slane %v432, %v493
    %v495 = vlaneseq
    %v496 = vshrl.u32 %v495, 7
    %v497 = vsub.s32 7, %v496
    %v498 = vrot.slane %v432, %v497
    %v517 = vunpack.c.l.s4 1966171168
    %v518 = vunpack.c.0.s8 %v517
    %v519 = vlaneseq
    %v520 = vshrl.u32 %v519, 7
    %v521 = vsub.s32 %v518, %v520
    %v522 = vrot.slane %v45, %v521
    %v523 = vcombine.high %v522, %v522
    %v525 = vunpack.c.l.s4 1966171168
    %v526 = vunpack.c.0.s8 %v525
    %v527 = vlaneseq
    %v528 = vshrl.u32 %v527, 7
    %v529 = vsub.s32 %v526, %v528
    %v530 = vrot.slane %v522, %v529
    %v532 = vunpack.c.l.s4 1966171168
    %v533 = vunpack.c.0.s8 %v532
    %v534 = vlaneseq
    %v535 = vshrl.u32 %v534, 7
    %v536 = vsub.s32 %v533, %v535
    %v537 = vrot.slane %v523, %v536
    %v538 = vcombine.high %v530, %v530
    %v926 = vunpack.c.l.b16 %v46
    %v927 = vunpack.c.h.b16 %v46
    %v928 = vunpack.c.l.b16 %v47
    %v929 = vunpack.c.h.b16 %v47
    %v930 = vunpack.c.l.b16 %v48
    %v931 = vunpack.c.h.b16 %v48
    %v932 = vunpack.c.l.b16 %v49
    %v933 = vunpack.c.h.b16 %v49
    %v934 = vunpack.c.l.b16 %v50
    %v935 = vunpack.c.h.b16 %v50
    %v936 = vunpack.c.l.b16 %v51
    %v937 = vunpack.c.h.b16 %v51
    %v938 = vunpack.c.l.b16 %v52
    %v939 = vunpack.c.h.b16 %v52
    %v940 = vunpack.c.l.b16 %v53
    %v941 = vunpack.c.h.b16 %v53
    %v942 = vunpack.c.l.b16 %v54
    %v943 = vunpack.c.h.b16 %v54
    %v944 = vunpack.c.l.b16 %v55
    %v945 = vunpack.c.h.b16 %v55
    %v946 = vunpack.c.l.b16 %v56
    %v947 = vunpack.c.h.b16 %v56
    %v948 = vunpack.c.l.b16 %v57
    %v949 = vunpack.c.h.b16 %v57
    %v950 = vunpack.c.l.b16 %v58
    %v951 = vunpack.c.h.b16 %v58
    %v952 = vunpack.c.l.b16 %v59
    %v953 = vunpack.c.h.b16 %v59
    %v954 = vunpack.c.l.b16 %v60
    %v955 = vunpack.c.h.b16 %v60
    %v956 = vunpack.c.l.b16 %v61
    %v957 = vunpack.c.h.b16 %v61
    %v958 = vunpack.c.l.b16 %v62
    %v959 = vunpack.c.h.b16 %v62
    %v960 = vunpack.c.l.b16 %v63
    %v961 = vunpack.c.h.b16 %v63
    %v962 = vunpack.c.l.b16 %v64
    %v963 = vunpack.c.h.b16 %v64
    %v964 = vunpack.c.l.b16 %v65
    %v965 = vunpack.c.h.b16 %v65
    %v966 = vunpack.c.l.b16 %v66
    %v967 = vunpack.c.h.b16 %v66
    %v968 = vunpack.c.l.b16 %v67
    %v969 = vunpack.c.h.b16 %v67
    %v970 = vunpack.c.l.b16 %v68
    %v971 = vunpack.c.h.b16 %v68
    %v972 = vunpack.c.l.b16 %v69
    %v973 = vunpack.c.h.b16 %v69
    %v974 = vunpack.c.l.b16 %v70
    %v975 = vunpack.c.h.b16 %v70
    %v976 = vunpack.c.l.b16 %v71
    %v977 = vunpack.c.h.b16 %v71
    %v978 = vunpack.c.l.b16 %v72
    %v979 = vunpack.c.h.b16 %v72
    %v980 = vunpack.c.l.b16 %v73
    %v981 = vunpack.c.h.b16 %v73
    %v982 = vunpack.c.l.b16 %v74
    %v983 = vunpack.c.h.b16 %v74
    %v984 = vunpack.c.l.b16 %v75
    %v985 = vunpack.c.h.b16 %v75
    %v986 = vunpack.c.l.b16 %v76
    %v987 = vunpack.c.h.b16 %v76
    %v988 = vunpack.c.l.b16 %v77
    %v989 = vunpack.c.h.b16 %v77
    %v990 = vunpack.c.l.b16 %v78
    %v991 = vunpack.c.h.b16 %v78
    %v992 = vunpack.c.l.b16 %v79
    %v993 = vunpack.c.h.b16 %v79
    %v994 = vunpack.c.l.b16 %v80
    %v995 = vunpack.c.h.b16 %v80
    %v996 = vunpack.c.l.b16 %v81
    %v997 = vunpack.c.h.b16 %v81
    %v998 = vunpack.c.l.b16 %v82
    %v999 = vunpack.c.h.b16 %v82
    %v1000 = vunpack.c.l.b16 %v83
    %v1001 = vunpack.c.h.b16 %v83
    %v1002 = vunpack.c.l.b16 %v84
    %v1003 = vunpack.c.h.b16 %v84
    %v1004 = vunpack.c.l.b16 %v85
    %v1005 = vunpack.c.h.b16 %v85
    %v1006 = vunpack.c.l.b16 %v86
    %v1007 = vunpack.c.h.b16 %v86
    %v1008 = vunpack.c.l.b16 %v87
    %v1009 = vunpack.c.h.b16 %v87
    %v1010 = vunpack.c.l.b16 %v88
    %v1011 = vunpack.c.h.b16 %v88
    %v1012 = vunpack.c.l.b16 %v89
    %v1013 = vunpack.c.h.b16 %v89
    %v1014 = vunpack.c.l.b16 %v90
    %v1015 = vunpack.c.h.b16 %v90
    %v1016 = vunpack.c.l.b16 %v91
    %v1017 = vunpack.c.h.b16 %v91
    %v1018 = vunpack.c.l.b16 %v92
    %v1019 = vunpack.c.h.b16 %v92
    %v1020 = vunpack.c.l.b16 %v93
    %v1021 = vunpack.c.h.b16 %v93
    %v1022 = vunpack.c.l.b16 %v94
    %v1023 = vunpack.c.h.b16 %v94
    %v1024 = vunpack.c.l.b16 %v95
    %v1025 = vunpack.c.h.b16 %v95
    %v1026 = vunpack.c.l.b16 %v96
    %v1027 = vunpack.c.h.b16 %v96
    %v1028 = vunpack.c.l.b16 %v97
    %v1029 = vunpack.c.h.b16 %v97
    %v1030 = vunpack.c.l.b16 %v98
    %v1031 = vunpack.c.h.b16 %v98
    %v1032 = vunpack.c.l.b16 %v99
    %v1033 = vunpack.c.h.b16 %v99
    %v1034 = vunpack.c.l.b16 %v100
    %v1035 = vunpack.c.h.b16 %v100
    %v1036 = vunpack.c.l.b16 %v101
    %v1037 = vunpack.c.h.b16 %v101
    %v1038 = vunpack.c.l.b16 %v102
    %v1039 = vunpack.c.h.b16 %v102
    %v1040 = vunpack.c.l.b16 %v103
    %v1041 = vunpack.c.h.b16 %v103
    %v1042 = vunpack.c.l.b16 %v104
    %v1043 = vunpack.c.h.b16 %v104
    %v1044 = vunpack.c.l.b16 %v105
    %v1045 = vunpack.c.h.b16 %v105
    %v1046 = vunpack.c.l.b16 %v106
    %v1047 = vunpack.c.h.b16 %v106
    %v1048 = vunpack.c.l.b16 %v107
    %v1049 = vunpack.c.h.b16 %v107
    %v1050 = vunpack.c.l.b16 %v108
    %v1051 = vunpack.c.h.b16 %v108
    %v1052 = vunpack.c.l.b16 %v109
    %v1053 = vunpack.c.h.b16 %v109
    %v1054 = vunpack.c.l.b16 %v110
    %v1055 = vunpack.c.h.b16 %v110
    %v1056 = vunpack.c.l.b16 %v111
    %v1057 = vunpack.c.h.b16 %v111
    %v1058 = vunpack.c.l.b16 %v112
    %v1059 = vunpack.c.h.b16 %v112
    %v1060 = vunpack.c.l.b16 %v113
    %v1061 = vunpack.c.h.b16 %v113
    %v1062 = vunpack.c.l.b16 %v114
    %v1063 = vunpack.c.h.b16 %v114
    %v1064 = vunpack.c.l.b16 %v115
    %v1065 = vunpack.c.h.b16 %v115
    %v1066 = vunpack.c.l.b16 %v116
    %v1067 = vunpack.c.h.b16 %v116
    %v1068 = vunpack.c.l.b16 %v117
    %v1069 = vunpack.c.h.b16 %v117
    %v1070 = vunpack.c.l.b16 %v118
    %v1071 = vunpack.c.h.b16 %v118
    %v1072 = vunpack.c.l.b16 %v119
    %v1073 = vunpack.c.h.b16 %v119
    %v1074 = vunpack.c.l.b16 %v120
    %v1075 = vunpack.c.h.b16 %v120
    %v1076 = vunpack.c.l.b16 %v121
    %v1077 = vunpack.c.h.b16 %v121
    %v1078 = vunpack.c.l.b16 %v122
    %v1079 = vunpack.c.h.b16 %v122
    %v1080 = vunpack.c.l.b16 %v123
    %v1081 = vunpack.c.h.b16 %v123
    %v1082 = vunpack.c.l.b16 %v124
    %v1083 = vunpack.c.h.b16 %v124
    %v1084 = vunpack.c.l.b16 %v125
    %v1085 = vunpack.c.h.b16 %v125
    %v1086 = vunpack.c.l.b16 %v126
    %v1087 = vunpack.c.h.b16 %v126
    %v1088 = vunpack.c.l.b16 %v127
    %v1089 = vunpack.c.h.b16 %v127
    %v1090 = vunpack.c.l.b16 %v128
    %v1091 = vunpack.c.h.b16 %v128
    %v1092 = vunpack.c.l.b16 %v129
    %v1093 = vunpack.c.h.b16 %v129
    %v1094 = vunpack.c.l.b16 %v130
    %v1095 = vunpack.c.h.b16 %v130
    %v1096 = vunpack.c.l.b16 %v131
    %v1097 = vunpack.c.h.b16 %v131
    %v1098 = vunpack.c.l.b16 %v132
    %v1099 = vunpack.c.h.b16 %v132
    %v1100 = vunpack.c.l.b16 %v133
    %v1101 = vunpack.c.h.b16 %v133
    %v1102 = vunpack.c.l.b16 %v134
    %v1103 = vunpack.c.h.b16 %v134
    %v1104 = vunpack.c.l.b16 %v135
    %v1105 = vunpack.c.h.b16 %v135
    %v1106 = vunpack.c.l.b16 %v136
    %v1107 = vunpack.c.h.b16 %v136
    %v1108 = vunpack.c.l.b16 %v137
    %v1109 = vunpack.c.h.b16 %v137
    %v1110 = vunpack.c.l.b16 %v138
    %v1111 = vunpack.c.h.b16 %v138
    %v1112 = vunpack.c.l.b16 %v139
    %v1113 = vunpack.c.h.b16 %v139
    %v1114 = vunpack.c.l.b16 %v140
    %v1115 = vunpack.c.h.b16 %v140
    %v1116 = vunpack.c.l.b16 %v141
    %v1117 = vunpack.c.h.b16 %v141
    %v1118 = vunpack.c.l.b16 %v142
    %v1119 = vunpack.c.h.b16 %v142
    %v1120 = vunpack.c.l.b16 %v143
    %v1121 = vunpack.c.h.b16 %v143
    %v1122 = vunpack.c.l.b16 %v144
    %v1123 = vunpack.c.h.b16 %v144
    %v1124 = vunpack.c.l.b16 %v145
    %v1125 = vunpack.c.h.b16 %v145
    %v1126 = vunpack.c.l.b16 %v146
    %v1127 = vunpack.c.h.b16 %v146
    %v1128 = vunpack.c.l.b16 %v147
    %v1129 = vunpack.c.h.b16 %v147
    %v1130 = vunpack.c.l.b16 %v148
    %v1131 = vunpack.c.h.b16 %v148
    %v1132 = vunpack.c.l.b16 %v149
    %v1133 = vunpack.c.h.b16 %v149
    %v1134 = vunpack.c.l.b16 %v150
    %v1135 = vunpack.c.h.b16 %v150
    %v1136 = vunpack.c.l.b16 %v151
    %v1137 = vunpack.c.h.b16 %v151
    %v1138 = vunpack.c.l.b16 %v152
    %v1139 = vunpack.c.h.b16 %v152
    %v1140 = vunpack.c.l.b16 %v153
    %v1141 = vunpack.c.h.b16 %v153
    %v1142 = vunpack.c.l.b16 %v154
    %v1143 = vunpack.c.h.b16 %v154
    %v1144 = vunpack.c.l.b16 %v155
    %v1145 = vunpack.c.h.b16 %v155
    %v1146 = vunpack.c.l.b16 %v156
    %v1147 = vunpack.c.h.b16 %v156
    %v1148 = vunpack.c.l.b16 %v157
    %v1149 = vunpack.c.h.b16 %v157
    %v1150 = vunpack.c.l.b16 %v158
    %v1151 = vunpack.c.h.b16 %v158
    %v1152 = vunpack.c.l.b16 %v159
    %v1153 = vunpack.c.h.b16 %v159
    %v1154 = vunpack.c.l.b16 %v160
    %v1155 = vunpack.c.h.b16 %v160
    %v1156 = vunpack.c.l.b16 %v161
    %v1157 = vunpack.c.h.b16 %v161
    %v1158 = vunpack.c.l.b16 %v162
    %v1159 = vunpack.c.h.b16 %v162
    %v1160 = vunpack.c.l.b16 %v163
    %v1161 = vunpack.c.h.b16 %v163
    %v1162 = vunpack.c.l.b16 %v164
    %v1163 = vunpack.c.h.b16 %v164
    %v1164 = vunpack.c.l.b16 %v165
    %v1165 = vunpack.c.h.b16 %v165
    %v1166 = vunpack.c.l.b16 %v166
    %v1167 = vunpack.c.h.b16 %v166
    %v1168 = vunpack.c.l.b16 %v167
    %v1169 = vunpack.c.h.b16 %v167
    %v1170 = vunpack.c.l.b16 %v168
    %v1171 = vunpack.c.h.b16 %v168
    %v1172 = vunpack.c.l.b16 %v169
    %v1173 = vunpack.c.h.b16 %v169
    %v1174 = vunpack.c.l.b16 %v170
    %v1175 = vunpack.c.h.b16 %v170
    %v1176 = vunpack.c.l.b16 %v171
    %v1177 = vunpack.c.h.b16 %v171
    %v1178 = vunpack.c.l.b16 %v172
    %v1179 = vunpack.c.h.b16 %v172
    %v1180 = vunpack.c.l.b16 %v173
    %v1181 = vunpack.c.h.b16 %v173
    %v1182 = vunpack.c.l.b16 %v174
    %v1183 = vunpack.c.h.b16 %v174
    %v1184 = vunpack.c.l.b16 %v175
    %v1185 = vunpack.c.h.b16 %v175
    %v1186 = vunpack.c.l.b16 %v176
    %v1187 = vunpack.c.h.b16 %v176
    %v1188 = vunpack.c.l.b16 %v177
    %v1189 = vunpack.c.h.b16 %v177
    %v1190 = vunpack.c.l.b16 %v178
    %v1191 = vunpack.c.h.b16 %v178
    %v1192 = vunpack.c.l.b16 %v179
    %v1193 = vunpack.c.h.b16 %v179
    %v1194 = vunpack.c.l.b16 %v180
    %v1195 = vunpack.c.h.b16 %v180
    %v1196 = vunpack.c.l.b16 %v181
    %v1197 = vunpack.c.h.b16 %v181
    %v1198 = vunpack.c.l.b16 %v182
    %v1199 = vunpack.c.h.b16 %v182
    %v1200 = vunpack.c.l.b16 %v183
    %v1201 = vunpack.c.h.b16 %v183
    %v1202 = vunpack.c.l.b16 %v184
    %v1203 = vunpack.c.h.b16 %v184
    %v1204 = vunpack.c.l.b16 %v185
    %v1205 = vunpack.c.h.b16 %v185
    %v1206 = vunpack.c.l.b16 %v186
    %v1207 = vunpack.c.h.b16 %v186
    %v1208 = vunpack.c.l.b16 %v187
    %v1209 = vunpack.c.h.b16 %v187
    %v1210 = vunpack.c.l.b16 %v188
    %v1211 = vunpack.c.h.b16 %v188
    %v1212 = vunpack.c.l.b16 %v189
    %v1213 = vunpack.c.h.b16 %v189
    %v1214 = vunpack.c.l.b16 %v190
    %v1215 = vunpack.c.h.b16 %v190
    %v1216 = vunpack.c.l.b16 %v191
    %v1217 = vunpack.c.h.b16 %v191
    %v1218 = vunpack.c.l.b16 %v192
    %v1219 = vunpack.c.h.b16 %v192
    %v1220 = vunpack.c.l.b16 %v193
    %v1221 = vunpack.c.h.b16 %v193
    %v1222 = vunpack.c.l.b16 %v194
    %v1223 = vunpack.c.h.b16 %v194
    %v1224 = vunpack.c.l.b16 %v195
    %v1225 = vunpack.c.h.b16 %v195
    %v1226 = vunpack.c.l.b16 %v196
    %v1227 = vunpack.c.h.b16 %v196
    %v1228 = vunpack.c.l.b16 %v197
    %v1229 = vunpack.c.h.b16 %v197
    %v1230 = vunpack.c.l.b16 %v198
    %v1231 = vunpack.c.h.b16 %v198
    %v1232 = vunpack.c.l.b16 %v199
    %v1233 = vunpack.c.h.b16 %v199
    %v1234 = vunpack.c.l.b16 %v200
    %v1235 = vunpack.c.h.b16 %v200
    %v1236 = vunpack.c.l.b16 %v201
    %v1237 = vunpack.c.h.b16 %v201
    %v1238 = vunpack.c.l.b16 %v202
    %v1239 = vunpack.c.h.b16 %v202
    %v1240 = vunpack.c.l.b16 %v203
    %v1241 = vunpack.c.h.b16 %v203
    %v1242 = vunpack.c.l.b16 %v204
    %v1243 = vunpack.c.h.b16 %v204
    %v1244 = vunpack.c.l.b16 %v205
    %v1245 = vunpack.c.h.b16 %v205
    %v1246 = vunpack.c.l.b16 %v206
    %v1247 = vunpack.c.h.b16 %v206
    %v1248 = vunpack.c.l.b16 %v207
    %v1249 = vunpack.c.h.b16 %v207
    %v1250 = vunpack.c.l.b16 %v208
    %v1251 = vunpack.c.h.b16 %v208
    %v1252 = vunpack.c.l.b16 %v209
    %v1253 = vunpack.c.h.b16 %v209
    %v1254 = vunpack.c.l.b16 %v210
    %v1255 = vunpack.c.h.b16 %v210
    %v1256 = vunpack.c.l.b16 %v211
    %v1257 = vunpack.c.h.b16 %v211
    %v1258 = vunpack.c.l.b16 %v212
    %v1259 = vunpack.c.h.b16 %v212
    %v1260 = vunpack.c.l.b16 %v213
    %v1261 = vunpack.c.h.b16 %v213
    %v1262 = vunpack.c.l.b16 %v214
    %v1263 = vunpack.c.h.b16 %v214
    %v1264 = vunpack.c.l.b16 %v215
    %v1265 = vunpack.c.h.b16 %v215
    %v1266 = vunpack.c.l.b16 %v216
    %v1267 = vunpack.c.h.b16 %v216
    %v1268 = vunpack.c.l.b16 %v217
    %v1269 = vunpack.c.h.b16 %v217
    %v1270 = vunpack.c.l.b16 %v218
    %v1271 = vunpack.c.h.b16 %v218
    %v1272 = vunpack.c.l.b16 %v219
    %v1273 = vunpack.c.h.b16 %v219
    %v1274 = vunpack.c.l.b16 %v220
    %v1275 = vunpack.c.h.b16 %v220
    %v1276 = vunpack.c.l.b16 %v221
    %v1277 = vunpack.c.h.b16 %v221
    %v1278 = vunpack.c.l.b16 %v222
    %v1279 = vunpack.c.h.b16 %v222
    %v1280 = vunpack.c.l.b16 %v223
    %v1281 = vunpack.c.h.b16 %v223
    %v1282 = vunpack.c.l.b16 %v224
    %v1283 = vunpack.c.h.b16 %v224
    %v1284 = vunpack.c.l.b16 %v225
    %v1285 = vunpack.c.h.b16 %v225
    %v1286 = vunpack.c.l.b16 %v226
    %v1287 = vunpack.c.h.b16 %v226
    %v1288 = vunpack.c.l.b16 %v227
    %v1289 = vunpack.c.h.b16 %v227
    %v1290 = vunpack.c.l.b16 %v228
    %v1291 = vunpack.c.h.b16 %v228
    %v1292 = vunpack.c.l.b16 %v229
    %v1293 = vunpack.c.h.b16 %v229
    %v1294 = vunpack.c.l.b16 %v230
    %v1295 = vunpack.c.h.b16 %v230
    %v1296 = vunpack.c.l.b16 %v231
    %v1297 = vunpack.c.h.b16 %v231
    %v1298 = vunpack.c.l.b16 %v232
    %v1299 = vunpack.c.h.b16 %v232
    %v1300 = vunpack.c.l.b16 %v233
    %v1301 = vunpack.c.h.b16 %v233
    %v1302 = vunpack.c.l.b16 %v234
    %v1303 = vunpack.c.h.b16 %v234
    %v1304 = vunpack.c.l.b16 %v235
    %v1305 = vunpack.c.h.b16 %v235
    %v1306 = vunpack.c.l.b16 %v236
    %v1307 = vunpack.c.h.b16 %v236
    %v1308 = vunpack.c.l.b16 %v237
    %v1309 = vunpack.c.h.b16 %v237
    %v1310 = vunpack.c.l.b16 %v238
    %v1311 = vunpack.c.h.b16 %v238
    %v1312 = vunpack.c.l.b16 %v239
    %v1313 = vunpack.c.h.b16 %v239
    %v1314 = vunpack.c.l.b16 %v240
    %v1315 = vunpack.c.h.b16 %v240
    %v1316 = vunpack.c.l.b16 %v241
    %v1317 = vunpack.c.h.b16 %v241
    %v1318 = vunpack.c.l.b16 %v242
    %v1319 = vunpack.c.h.b16 %v242
    %v1320 = vunpack.c.l.b16 %v243
    %v1321 = vunpack.c.h.b16 %v243
    %v1322 = vunpack.c.l.b16 %v244
    %v1323 = vunpack.c.h.b16 %v244
    %v1324 = vunpack.c.l.b16 %v245
    %v1325 = vunpack.c.h.b16 %v245
    %v1326 = vunpack.c.l.b16 %v246
    %v1327 = vunpack.c.h.b16 %v246
    %v1328 = vunpack.c.l.b16 %v247
    %v1329 = vunpack.c.h.b16 %v247
    %v1330 = vunpack.c.l.b16 %v248
    %v1331 = vunpack.c.h.b16 %v248
    %v1332 = vunpack.c.l.b16 %v249
    %v1333 = vunpack.c.h.b16 %v249
    %v1334 = vunpack.c.l.b16 %v250
    %v1335 = vunpack.c.h.b16 %v250
    %v1336 = vunpack.c.l.b16 %v251
    %v1337 = vunpack.c.h.b16 %v251
    %v1338 = vunpack.c.l.b16 %v252
    %v1339 = vunpack.c.h.b16 %v252
    %v1340 = vunpack.c.l.b16 %v253
    %v1341 = vunpack.c.h.b16 %v253
    %v1342 = vunpack.c.l.b16 %v254
    %v1343 = vunpack.c.h.b16 %v254
    %v1344 = vunpack.c.l.b16 %v255
    %v1345 = vunpack.c.h.b16 %v255
    %v1346 = vunpack.c.l.b16 %v256
    %v1347 = vunpack.c.h.b16 %v256
    %v1348 = vunpack.c.l.b16 %v257
    %v1349 = vunpack.c.h.b16 %v257
    %v1350 = vunpack.c.l.b16 %v258
    %v1351 = vunpack.c.h.b16 %v258
    %v1352 = vunpack.c.l.b16 %v259
    %v1353 = vunpack.c.h.b16 %v259
    %v1354 = vunpack.c.l.b16 %v260
    %v1355 = vunpack.c.h.b16 %v260
    %v1356 = vunpack.c.l.b16 %v261
    %v1357 = vunpack.c.h.b16 %v261
    %v1358 = vunpack.c.l.b16 %v262
    %v1359 = vunpack.c.h.b16 %v262
    %v1360 = vunpack.c.l.b16 %v263
    %v1361 = vunpack.c.h.b16 %v263
    %v1362 = vunpack.c.l.b16 %v264
    %v1363 = vunpack.c.h.b16 %v264
    %v1364 = vunpack.c.l.b16 %v265
    %v1365 = vunpack.c.h.b16 %v265
    %v1366 = vunpack.c.l.b16 %v266
    %v1367 = vunpack.c.h.b16 %v266
    %v1368 = vunpack.c.l.b16 %v267
    %v1369 = vunpack.c.h.b16 %v267
    %v1370 = vunpack.c.l.b16 %v268
    %v1371 = vunpack.c.h.b16 %v268
    %v1372 = vunpack.c.l.b16 %v269
    %v1373 = vunpack.c.h.b16 %v269
    %v1374 = vunpack.c.l.b16 %v270
    %v1375 = vunpack.c.h.b16 %v270
    %v1376 = vunpack.c.l.b16 %v271
    %v1377 = vunpack.c.h.b16 %v271
    %v1378 = vunpack.c.l.b16 %v272
    %v1379 = vunpack.c.h.b16 %v272
    %v1380 = vunpack.c.l.b16 %v273
    %v1381 = vunpack.c.h.b16 %v273
    %v1382 = vunpack.c.l.b16 %v274
    %v1383 = vunpack.c.h.b16 %v274
    %v1384 = vunpack.c.l.b16 %v275
    %v1385 = vunpack.c.h.b16 %v275
    %v1386 = vunpack.c.l.b16 %v276
    %v1387 = vunpack.c.h.b16 %v276
    %v1388 = vunpack.c.l.b16 %v277
    %v1389 = vunpack.c.h.b16 %v277
    %v1390 = vunpack.c.l.b16 %v278
    %v1391 = vunpack.c.h.b16 %v278
    %v1392 = vunpack.c.l.b16 %v279
    %v1393 = vunpack.c.h.b16 %v279
    %v1394 = vunpack.c.l.b16 %v280
    %v1395 = vunpack.c.h.b16 %v280
    %v1396 = vunpack.c.l.b16 %v281
    %v1397 = vunpack.c.h.b16 %v281
    %v1398 = vunpack.c.l.b16 %v282
    %v1399 = vunpack.c.h.b16 %v282
    %v1400 = vunpack.c.l.b16 %v283
    %v1401 = vunpack.c.h.b16 %v283
    %v1402 = vunpack.c.l.b16 %v284
    %v1403 = vunpack.c.h.b16 %v284
    %v1404 = vunpack.c.l.b16 %v285
    %v1405 = vunpack.c.h.b16 %v285
    %v1406 = vunpack.c.l.b16 %v286
    %v1407 = vunpack.c.h.b16 %v286
    %v1408 = vunpack.c.l.b16 %v287
    %v1409 = vunpack.c.h.b16 %v287
    %v1410 = vunpack.c.l.b16 %v288
    %v1411 = vunpack.c.h.b16 %v288
    %v1412 = vunpack.c.l.b16 %v289
    %v1413 = vunpack.c.h.b16 %v289
    %v1414 = vunpack.c.l.b16 %v290
    %v1415 = vunpack.c.h.b16 %v290
    %v1416 = vunpack.c.l.b16 %v291
    %v1417 = vunpack.c.h.b16 %v291
    %v1418 = vunpack.c.l.b16 %v292
    %v1419 = vunpack.c.h.b16 %v292
    %v1420 = vunpack.c.l.b16 %v293
    %v1421 = vunpack.c.h.b16 %v293
    %v1422 = vunpack.c.l.b16 %v294
    %v1423 = vunpack.c.h.b16 %v294
    %v1424 = vunpack.c.l.b16 %v295
    %v1425 = vunpack.c.h.b16 %v295
    %v1426 = vunpack.c.l.b16 %v296
    %v1427 = vunpack.c.h.b16 %v296
    %v1428 = vunpack.c.l.b16 %v297
    %v1429 = vunpack.c.h.b16 %v297
    %v1430 = vunpack.c.l.b16 %v298
    %v1431 = vunpack.c.h.b16 %v298
    %v1432 = vunpack.c.l.b16 %v299
    %v1433 = vunpack.c.h.b16 %v299
    %v1434 = vunpack.c.l.b16 %v300
    %v1435 = vunpack.c.h.b16 %v300
    %v1436 = vunpack.c.l.b16 %v301
    %v1437 = vunpack.c.h.b16 %v301
    %v1438 = vunpack.c.l.b16 %v302
    %v1439 = vunpack.c.h.b16 %v302
    %v1440 = vunpack.c.l.b16 %v303
    %v1441 = vunpack.c.h.b16 %v303
    %v1442 = vunpack.c.l.b16 %v304
    %v1443 = vunpack.c.h.b16 %v304
    %v1444 = vunpack.c.l.b16 %v305
    %v1445 = vunpack.c.h.b16 %v305
    %v1446 = vunpack.c.l.b16 %v306
    %v1447 = vunpack.c.h.b16 %v306
    %v1448 = vunpack.c.l.b16 %v307
    %v1449 = vunpack.c.h.b16 %v307
    %v1450 = vunpack.c.l.b16 %v308
    %v1451 = vunpack.c.h.b16 %v308
    %v1452 = vunpack.c.l.b16 %v309
    %v1453 = vunpack.c.h.b16 %v309
    %v1454 = vunpack.c.l.b16 %v310
    %v1455 = vunpack.c.h.b16 %v310
    %v1456 = vunpack.c.l.b16 %v311
    %v1457 = vunpack.c.h.b16 %v311
    %v1458 = vunpack.c.l.b16 %v312
    %v1459 = vunpack.c.h.b16 %v312
    %v1460 = vunpack.c.l.b16 %v313
    %v1461 = vunpack.c.h.b16 %v313
    %v1462 = vunpack.c.l.b16 %v314
    %v1463 = vunpack.c.h.b16 %v314
    %v1464 = vunpack.c.l.b16 %v315
    %v1465 = vunpack.c.h.b16 %v315
    %v1466 = vunpack.c.l.b16 %v316
    %v1467 = vunpack.c.h.b16 %v316
    %v1468 = vunpack.c.l.b16 %v317
    %v1469 = vunpack.c.h.b16 %v317
    %v1470 = vunpack.c.l.b16 %v318
    %v1471 = vunpack.c.h.b16 %v318
    %v1472 = vunpack.c.l.b16 %v319
    %v1473 = vunpack.c.h.b16 %v319
    %v1474 = vunpack.c.l.b16 %v320
    %v1475 = vunpack.c.h.b16 %v320
    %v1476 = vunpack.c.l.b16 %v321
    %v1477 = vunpack.c.h.b16 %v321
    %v1478 = vunpack.c.l.b16 %v322
    %v1479 = vunpack.c.h.b16 %v322
    %v1480 = vunpack.c.l.b16 %v323
    %v1481 = vunpack.c.h.b16 %v323
    %v1482 = vunpack.c.l.b16 %v324
    %v1483 = vunpack.c.h.b16 %v324
    %v1484 = vunpack.c.l.b16 %v325
    %v1485 = vunpack.c.h.b16 %v325
    %v1486 = vunpack.c.l.b16 %v326
    %v1487 = vunpack.c.h.b16 %v326
    %v1488 = vunpack.c.l.b16 %v327
    %v1489 = vunpack.c.h.b16 %v327
    %v1490 = vunpack.c.l.b16 %v328
    %v1491 = vunpack.c.h.b16 %v328
    %v1492 = vunpack.c.l.b16 %v329
    %v1493 = vunpack.c.h.b16 %v329
    %v1494 = vunpack.c.l.b16 %v330
    %v1495 = vunpack.c.h.b16 %v330
    %v1496 = vunpack.c.l.b16 %v331
    %v1497 = vunpack.c.h.b16 %v331
    %v1498 = vunpack.c.l.b16 %v332
    %v1499 = vunpack.c.h.b16 %v332
    %v1500 = vunpack.c.l.b16 %v333
    %v1501 = vunpack.c.h.b16 %v333
    %v1502 = vunpack.c.l.b16 %v334
    %v1503 = vunpack.c.h.b16 %v334
    %v1504 = vunpack.c.l.b16 %v335
    %v1505 = vunpack.c.h.b16 %v335
    %v1506 = vunpack.c.l.b16 %v336
    %v1507 = vunpack.c.h.b16 %v336
    %v1508 = vunpack.c.l.b16 %v337
    %v1509 = vunpack.c.h.b16 %v337
    %v1510 = vunpack.c.l.b16 %v338
    %v1511 = vunpack.c.h.b16 %v338
    %v1512 = vunpack.c.l.b16 %v339
    %v1513 = vunpack.c.h.b16 %v339
    %v1514 = vunpack.c.l.b16 %v340
    %v1515 = vunpack.c.h.b16 %v340
    %v1516 = vunpack.c.l.b16 %v341
    %v1517 = vunpack.c.h.b16 %v341
    %v1518 = vunpack.c.l.b16 %v342
    %v1519 = vunpack.c.h.b16 %v342
    %v1520 = vunpack.c.l.b16 %v343
    %v1521 = vunpack.c.h.b16 %v343
    %v1522 = vunpack.c.l.b16 %v344
    %v1523 = vunpack.c.h.b16 %v344
    %v1524 = vunpack.c.l.b16 %v345
    %v1525 = vunpack.c.h.b16 %v345
    %v1526 = vunpack.c.l.b16 %v346
    %v1527 = vunpack.c.h.b16 %v346
    %v1528 = vunpack.c.l.b16 %v347
    %v1529 = vunpack.c.h.b16 %v347
    %v1530 = vunpack.c.l.b16 %v348
    %v1531 = vunpack.c.h.b16 %v348
    %v1532 = vunpack.c.l.b16 %v349
    %v1533 = vunpack.c.h.b16 %v349
    %v1534 = vunpack.c.l.b16 %v350
    %v1535 = vunpack.c.h.b16 %v350
    %v1536 = vunpack.c.l.b16 %v351
    %v1537 = vunpack.c.h.b16 %v351
    %v1538 = vunpack.c.l.b16 %v352
    %v1539 = vunpack.c.h.b16 %v352
    %v1540 = vunpack.c.l.b16 %v353
    %v1541 = vunpack.c.h.b16 %v353
    %v1542 = vunpack.c.l.b16 %v354
    %v1543 = vunpack.c.h.b16 %v354
    %v1544 = vunpack.c.l.b16 %v355
    %v1545 = vunpack.c.h.b16 %v355
    %v1546 = vunpack.c.l.b16 %v356
    %v1547 = vunpack.c.h.b16 %v356
    %v1548 = vunpack.c.l.b16 %v357
    %v1549 = vunpack.c.h.b16 %v357
    %v1550 = vunpack.c.l.b16 %v358
    %v1551 = vunpack.c.h.b16 %v358
    %v1552 = vunpack.c.l.b16 %v359
    %v1553 = vunpack.c.h.b16 %v359
    %v1554 = vunpack.c.l.b16 %v360
    %v1555 = vunpack.c.h.b16 %v360
    %v1556 = vunpack.c.l.b16 %v361
    %v1557 = vunpack.c.h.b16 %v361
    %v1558 = vunpack.c.l.b16 %v362
    %v1559 = vunpack.c.h.b16 %v362
    %v1560 = vunpack.c.l.b16 %v363
    %v1561 = vunpack.c.h.b16 %v363
    %v1562 = vunpack.c.l.b16 %v364
    %v1563 = vunpack.c.h.b16 %v364
    %v1564 = vunpack.c.l.b16 %v365
    %v1565 = vunpack.c.h.b16 %v365
    %v1566 = vunpack.c.l.b16 %v366
    %v1567 = vunpack.c.h.b16 %v366
    %v1568 = vunpack.c.l.b16 %v367
    %v1569 = vunpack.c.h.b16 %v367
    %v1570 = vunpack.c.l.b16 %v368
    %v1571 = vunpack.c.h.b16 %v368
    %v1572 = vunpack.c.l.b16 %v369
    %v1573 = vunpack.c.h.b16 %v369
    %v1574 = vunpack.c.l.b16 %v370
    %v1575 = vunpack.c.h.b16 %v370
    %v1576 = vunpack.c.l.b16 %v371
    %v1577 = vunpack.c.h.b16 %v371
    %v1578 = vunpack.c.l.b16 %v372
    %v1579 = vunpack.c.h.b16 %v372
    %v1580 = vunpack.c.l.b16 %v373
    %v1581 = vunpack.c.h.b16 %v373
    %v1582 = vunpack.c.l.b16 %v374
    %v1583 = vunpack.c.h.b16 %v374
    %v1584 = vunpack.c.l.b16 %v375
    %v1585 = vunpack.c.h.b16 %v375
    %v1586 = vunpack.c.l.b16 %v376
    %v1587 = vunpack.c.h.b16 %v376
    %v1588 = vunpack.c.l.b16 %v377
    %v1589 = vunpack.c.h.b16 %v377
    %v1590 = vunpack.c.l.b16 %v378
    %v1591 = vunpack.c.h.b16 %v378
    %v1592 = vunpack.c.l.b16 %v379
    %v1593 = vunpack.c.h.b16 %v379
    %v1594 = vunpack.c.l.b16 %v380
    %v1595 = vunpack.c.h.b16 %v380
    %v1596 = vunpack.c.l.b16 %v381
    %v1597 = vunpack.c.h.b16 %v381
    %v1598 = vunpack.c.l.b16 %v382
    %v1599 = vunpack.c.h.b16 %v382
    %v1600 = vunpack.c.l.b16 %v383
    %v1601 = vunpack.c.h.b16 %v383
    %v1602 = vunpack.c.l.b16 %v384
    %v1603 = vunpack.c.h.b16 %v384
    %v1604 = vunpack.c.l.b16 %v385
    %v1605 = vunpack.c.h.b16 %v385
    %v1606 = vunpack.c.l.b16 %v386
    %v1607 = vunpack.c.h.b16 %v386
    %v1608 = vunpack.c.l.b16 %v387
    %v1609 = vunpack.c.h.b16 %v387
    %v1610 = vunpack.c.l.b16 %v388
    %v1611 = vunpack.c.h.b16 %v388
    %v1612 = vunpack.c.l.b16 %v389
    %v1613 = vunpack.c.h.b16 %v389
    %v1614 = vunpack.c.l.b16 %v390
    %v1615 = vunpack.c.h.b16 %v390
    %v1616 = vunpack.c.l.b16 %v391
    %v1617 = vunpack.c.h.b16 %v391
    %v1618 = vunpack.c.l.b16 %v392
    %v1619 = vunpack.c.h.b16 %v392
    %v1620 = vunpack.c.l.b16 %v393
    %v1621 = vunpack.c.h.b16 %v393
    %v1622 = vunpack.c.l.b16 %v394
    %v1623 = vunpack.c.h.b16 %v394
    %v1624 = vunpack.c.l.b16 %v395
    %v1625 = vunpack.c.h.b16 %v395
    %v1626 = vunpack.c.l.b16 %v396
    %v1627 = vunpack.c.h.b16 %v396
    %v1628 = vunpack.c.l.b16 %v397
    %v1629 = vunpack.c.h.b16 %v397
    %v1630 = vunpack.c.l.b16 %v398
    %v1631 = vunpack.c.h.b16 %v398
    %v1632 = vunpack.c.l.b16 %v399
    %v1633 = vunpack.c.h.b16 %v399
    %v1634 = vunpack.c.l.b16 %v400
    %v1635 = vunpack.c.h.b16 %v400
    %v1636 = vunpack.c.l.b16 %v401
    %v1637 = vunpack.c.h.b16 %v401
    %v1638 = vunpack.c.l.b16 %v402
    %v1639 = vunpack.c.h.b16 %v402
    %v1640 = vunpack.c.l.b16 %v403
    %v1641 = vunpack.c.h.b16 %v403
    %v1642 = vunpack.c.l.b16 %v404
    %v1643 = vunpack.c.h.b16 %v404
    %v1644 = vunpack.c.l.b16 %v405
    %v1645 = vunpack.c.h.b16 %v405
    %v1646 = vunpack.c.l.b16 %v406
    %v1647 = vunpack.c.h.b16 %v406
    %v1648 = vunpack.c.l.b16 %v407
    %v1649 = vunpack.c.h.b16 %v407
    %v1650 = vunpack.c.l.b16 %v408
    %v1651 = vunpack.c.h.b16 %v408
    %v1652 = vunpack.c.l.b16 %v409
    %v1653 = vunpack.c.h.b16 %v409
    %v1654 = vunpack.c.l.b16 %v410
    %v1655 = vunpack.c.h.b16 %v410
    %v1656 = vunpack.c.l.b16 %v411
    %v1657 = vunpack.c.h.b16 %v411
    %v1658 = vunpack.c.l.b16 %v412
    %v1659 = vunpack.c.h.b16 %v412
    %v1660 = vunpack.c.l.b16 %v413
    %v1661 = vunpack.c.h.b16 %v413
    %v1662 = vunpack.c.l.b16 %v414
    %v1663 = vunpack.c.h.b16 %v414
    %v1664 = vunpack.c.l.b16 %v415
    %v1665 = vunpack.c.h.b16 %v415
    %v1666 = vunpack.c.l.b16 %v416
    %v1667 = vunpack.c.h.b16 %v416
    %v1668 = vunpack.c.l.b16 %v417
    %v1669 = vunpack.c.h.b16 %v417
    %v1670 = vunpack.c.l.b16 %v418
    %v1671 = vunpack.c.h.b16 %v418
    %v1672 = vunpack.c.l.b16 %v419
    %v1673 = vunpack.c.h.b16 %v419
    %v1674 = vunpack.c.l.b16 %v420
    %v1675 = vunpack.c.h.b16 %v420
    %v1676 = vunpack.c.l.b16 %v421
    %v1677 = vunpack.c.h.b16 %v421
    %v1678 = vunpack.c.l.b16 %v422
    %v1679 = vunpack.c.h.b16 %v422
    %v1680 = vunpack.c.l.b16 %v423
    %v1681 = vunpack.c.h.b16 %v423
    %v1682 = vunpack.c.l.b16 %v424
    %v1683 = vunpack.c.h.b16 %v424
    %v1684 = vunpack.c.l.b16 %v425
    %v1685 = vunpack.c.h.b16 %v425
    %v1686 = vunpack.c.l.b16 %v426
    %v1687 = vunpack.c.h.b16 %v426
    %v1688 = vunpack.c.l.b16 %v427
    %v1689 = vunpack.c.h.b16 %v427
    %v1690 = vunpack.c.l.b16 %v428
    %v1691 = vunpack.c.h.b16 %v428
    %v1692 = vunpack.c.l.b16 %v429
    %v1693 = vunpack.c.h.b16 %v429
    %v1694 = vpack.c.b16 %v942, %v926
    %v1695 = vpack.c.b16 %v943, %v927
    %v1696 = vpack.c.b16 %v944, %v928
    %v1697 = vpack.c.b16 %v945, %v929
    %v1698 = vpack.c.b16 %v946, %v930
    %v1699 = vpack.c.b16 %v947, %v931
    %v1700 = vpack.c.b16 %v948, %v932
    %v1701 = vpack.c.b16 %v949, %v933
    %v1702 = vpack.c.b16 %v950, %v934
    %v1703 = vpack.c.b16 %v951, %v935
    %v1704 = vpack.c.b16 %v952, %v936
    %v1705 = vpack.c.b16 %v953, %v937
    %v1706 = vpack.c.b16 %v954, %v938
    %v1707 = vpack.c.b16 %v955, %v939
    %v1708 = vpack.c.b16 %v956, %v940
    %v1709 = vpack.c.b16 %v957, %v941
    %v1710 = vpack.c.b16 %v974, %v958
    %v1711 = vpack.c.b16 %v975, %v959
    %v1712 = vpack.c.b16 %v976, %v960
    %v1713 = vpack.c.b16 %v977, %v961
    %v1714 = vpack.c.b16 %v978, %v962
    %v1715 = vpack.c.b16 %v979, %v963
    %v1716 = vpack.c.b16 %v980, %v964
    %v1717 = vpack.c.b16 %v981, %v965
    %v1718 = vpack.c.b16 %v982, %v966
    %v1719 = vpack.c.b16 %v983, %v967
    %v1720 = vpack.c.b16 %v984, %v968
    %v1721 = vpack.c.b16 %v985, %v969
    %v1722 = vpack.c.b16 %v986, %v970
    %v1723 = vpack.c.b16 %v987, %v971
    %v1724 = vpack.c.b16 %v988, %v972
    %v1725 = vpack.c.b16 %v989, %v973
    %v1726 = vpack.c.b16 %v1006, %v990
    %v1727 = vpack.c.b16 %v1007, %v991
    %v1728 = vpack.c.b16 %v1008, %v992
    %v1729 = vpack.c.b16 %v1009, %v993
    %v1730 = vpack.c.b16 %v1010, %v994
    %v1731 = vpack.c.b16 %v1011, %v995
    %v1732 = vpack.c.b16 %v1012, %v996
    %v1733 = vpack.c.b16 %v1013, %v997
    %v1734 = vpack.c.b16 %v1014, %v998
    %v1735 = vpack.c.b16 %v1015, %v999
    %v1736 = vpack.c.b16 %v1016, %v1000
    %v1737 = vpack.c.b16 %v1017, %v1001
    %v1738 = vpack.c.b16 %v1018, %v1002
    %v1739 = vpack.c.b16 %v1019, %v1003
    %v1740 = vpack.c.b16 %v1020, %v1004
    %v1741 = vpack.c.b16 %v1021, %v1005
    %v1742 = vpack.c.b16 %v1038, %v1022
    %v1743 = vpack.c.b16 %v1039, %v1023
    %v1744 = vpack.c.b16 %v1040, %v1024
    %v1745 = vpack.c.b16 %v1041, %v1025
    %v1746 = vpack.c.b16 %v1042, %v1026
    %v1747 = vpack.c.b16 %v1043, %v1027
    %v1748 = vpack.c.b16 %v1044, %v1028
    %v1749 = vpack.c.b16 %v1045, %v1029
    %v1750 = vpack.c.b16 %v1046, %v1030
    %v1751 = vpack.c.b16 %v1047, %v1031
    %v1752 = vpack.c.b16 %v1048, %v1032
    %v1753 = vpack.c.b16 %v1049, %v1033
    %v1754 = vpack.c.b16 %v1050, %v1034
    %v1755 = vpack.c.b16 %v1051, %v1035
    %v1756 = vpack.c.b16 %v1052, %v1036
    %v1757 = vpack.c.b16 %v1053, %v1037
    %v1758 = vpack.c.b16 %v1070, %v1054
    %v1759 = vpack.c.b16 %v1071, %v1055
    %v1760 = vpack.c.b16 %v1072, %v1056
    %v1761 = vpack.c.b16 %v1073, %v1057
    %v1762 = vpack.c.b16 %v1074, %v1058
    %v1763 = vpack.c.b16 %v1075, %v1059
    %v1764 = vpack.c.b16 %v1076, %v1060
    %v1765 = vpack.c.b16 %v1077, %v1061
    %v1766 = vpack.c.b16 %v1078, %v1062
    %v1767 = vpack.c.b16 %v1079, %v1063
    %v1768 = vpack.c.b16 %v1080, %v1064
    %v1769 = vpack.c.b16 %v1081, %v1065
    %v1770 = vpack.c.b16 %v1082, %v1066
    %v1771 = vpack.c.b16 %v1083, %v1067
    %v1772 = vpack.c.b16 %v1084, %v1068
    %v1773 = vpack.c.b16 %v1085, %v1069
    %v1774 = vpack.c.b16 %v1102, %v1086
    %v1775 = vpack.c.b16 %v1103, %v1087
    %v1776 = vpack.c.b16 %v1104, %v1088
    %v1777 = vpack.c.b16 %v1105, %v1089
    %v1778 = vpack.c.b16 %v1106, %v1090
    %v1779 = vpack.c.b16 %v1107, %v1091
    %v1780 = vpack.c.b16 %v1108, %v1092
    %v1781 = vpack.c.b16 %v1109, %v1093
    %v1782 = vpack.c.b16 %v1110, %v1094
    %v1783 = vpack.c.b16 %v1111, %v1095
    %v1784 = vpack.c.b16 %v1112, %v1096
    %v1785 = vpack.c.b16 %v1113, %v1097
    %v1786 = vpack.c.b16 %v1114, %v1098
    %v1787 = vpack.c.b16 %v1115, %v1099
    %v1788 = vpack.c.b16 %v1116, %v1100
    %v1789 = vpack.c.b16 %v1117, %v1101
    %v1790 = vpack.c.b16 %v1134, %v1118
    %v1791 = vpack.c.b16 %v1135, %v1119
    %v1792 = vpack.c.b16 %v1136, %v1120
    %v1793 = vpack.c.b16 %v1137, %v1121
    %v1794 = vpack.c.b16 %v1138, %v1122
    %v1795 = vpack.c.b16 %v1139, %v1123
    %v1796 = vpack.c.b16 %v1140, %v1124
    %v1797 = vpack.c.b16 %v1141, %v1125
    %v1798 = vpack.c.b16 %v1142, %v1126
    %v1799 = vpack.c.b16 %v1143, %v1127
    %v1800 = vpack.c.b16 %v1144, %v1128
    %v1801 = vpack.c.b16 %v1145, %v1129
    %v1802 = vpack.c.b16 %v1146, %v1130
    %v1803 = vpack.c.b16 %v1147, %v1131
    %v1804 = vpack.c.b16 %v1148, %v1132
    %v1805 = vpack.c.b16 %v1149, %v1133
    %v1806 = vpack.c.b16 %v1166, %v1150
    %v1807 = vpack.c.b16 %v1167, %v1151
    %v1808 = vpack.c.b16 %v1168, %v1152
    %v1809 = vpack.c.b16 %v1169, %v1153
    %v1810 = vpack.c.b16 %v1170, %v1154
    %v1811 = vpack.c.b16 %v1171, %v1155
    %v1812 = vpack.c.b16 %v1172, %v1156
    %v1813 = vpack.c.b16 %v1173, %v1157
    %v1814 = vpack.c.b16 %v1174, %v1158
    %v1815 = vpack.c.b16 %v1175, %v1159
    %v1816 = vpack.c.b16 %v1176, %v1160
    %v1817 = vpack.c.b16 %v1177, %v1161
    %v1818 = vpack.c.b16 %v1178, %v1162
    %v1819 = vpack.c.b16 %v1179, %v1163
    %v1820 = vpack.c.b16 %v1180, %v1164
    %v1821 = vpack.c.b16 %v1181, %v1165
    %v1822 = vpack.c.b16 %v1198, %v1182
    %v1823 = vpack.c.b16 %v1199, %v1183
    %v1824 = vpack.c.b16 %v1200, %v1184
    %v1825 = vpack.c.b16 %v1201, %v1185
    %v1826 = vpack.c.b16 %v1202, %v1186
    %v1827 = vpack.c.b16 %v1203, %v1187
    %v1828 = vpack.c.b16 %v1204, %v1188
    %v1829 = vpack.c.b16 %v1205, %v1189
    %v1830 = vpack.c.b16 %v1206, %v1190
    %v1831 = vpack.c.b16 %v1207, %v1191
    %v1832 = vpack.c.b16 %v1208, %v1192
    %v1833 = vpack.c.b16 %v1209, %v1193
    %v1834 = vpack.c.b16 %v1210, %v1194
    %v1835 = vpack.c.b16 %v1211, %v1195
    %v1836 = vpack.c.b16 %v1212, %v1196
    %v1837 = vpack.c.b16 %v1213, %v1197
    %v1838 = vpack.c.b16 %v1230, %v1214
    %v1839 = vpack.c.b16 %v1231, %v1215
    %v1840 = vpack.c.b16 %v1232, %v1216
    %v1841 = vpack.c.b16 %v1233, %v1217
    %v1842 = vpack.c.b16 %v1234, %v1218
    %v1843 = vpack.c.b16 %v1235, %v1219
    %v1844 = vpack.c.b16 %v1236, %v1220
    %v1845 = vpack.c.b16 %v1237, %v1221
    %v1846 = vpack.c.b16 %v1238, %v1222
    %v1847 = vpack.c.b16 %v1239, %v1223
    %v1848 = vpack.c.b16 %v1240, %v1224
    %v1849 = vpack.c.b16 %v1241, %v1225
    %v1850 = vpack.c.b16 %v1242, %v1226
    %v1851 = vpack.c.b16 %v1243, %v1227
    %v1852 = vpack.c.b16 %v1244, %v1228
    %v1853 = vpack.c.b16 %v1245, %v1229
    %v1854 = vpack.c.b16 %v1262, %v1246
    %v1855 = vpack.c.b16 %v1263, %v1247
    %v1856 = vpack.c.b16 %v1264, %v1248
    %v1857 = vpack.c.b16 %v1265, %v1249
    %v1858 = vpack.c.b16 %v1266, %v1250
    %v1859 = vpack.c.b16 %v1267, %v1251
    %v1860 = vpack.c.b16 %v1268, %v1252
    %v1861 = vpack.c.b16 %v1269, %v1253
    %v1862 = vpack.c.b16 %v1270, %v1254
    %v1863 = vpack.c.b16 %v1271, %v1255
    %v1864 = vpack.c.b16 %v1272, %v1256
    %v1865 = vpack.c.b16 %v1273, %v1257
    %v1866 = vpack.c.b16 %v1274, %v1258
    %v1867 = vpack.c.b16 %v1275, %v1259
    %v1868 = vpack.c.b16 %v1276, %v1260
    %v1869 = vpack.c.b16 %v1277, %v1261
    %v1870 = vpack.c.b16 %v1294, %v1278
    %v1871 = vpack.c.b16 %v1295, %v1279
    %v1872 = vpack.c.b16 %v1296, %v1280
    %v1873 = vpack.c.b16 %v1297, %v1281
    %v1874 = vpack.c.b16 %v1298, %v1282
    %v1875 = vpack.c.b16 %v1299, %v1283
    %v1876 = vpack.c.b16 %v1300, %v1284
    %v1877 = vpack.c.b16 %v1301, %v1285
    %v1878 = vpack.c.b16 %v1302, %v1286
    %v1879 = vpack.c.b16 %v1303, %v1287
    %v1880 = vpack.c.b16 %v1304, %v1288
    %v1881 = vpack.c.b16 %v1305, %v1289
    %v1882 = vpack.c.b16 %v1306, %v1290
    %v1883 = vpack.c.b16 %v1307, %v1291
    %v1884 = vpack.c.b16 %v1308, %v1292
    %v1885 = vpack.c.b16 %v1309, %v1293
    %v1886 = vpack.c.b16 %v1326, %v1310
    %v1887 = vpack.c.b16 %v1327, %v1311
    %v1888 = vpack.c.b16 %v1328, %v1312
    %v1889 = vpack.c.b16 %v1329, %v1313
    %v1890 = vpack.c.b16 %v1330, %v1314
    %v1891 = vpack.c.b16 %v1331, %v1315
    %v1892 = vpack.c.b16 %v1332, %v1316
    %v1893 = vpack.c.b16 %v1333, %v1317
    %v1894 = vpack.c.b16 %v1334, %v1318
    %v1895 = vpack.c.b16 %v1335, %v1319
    %v1896 = vpack.c.b16 %v1336, %v1320
    %v1897 = vpack.c.b16 %v1337, %v1321
    %v1898 = vpack.c.b16 %v1338, %v1322
    %v1899 = vpack.c.b16 %v1339, %v1323
    %v1900 = vpack.c.b16 %v1340, %v1324
    %v1901 = vpack.c.b16 %v1341, %v1325
    %v1902 = vpack.c.b16 %v1358, %v1342
    %v1903 = vpack.c.b16 %v1359, %v1343
    %v1904 = vpack.c.b16 %v1360, %v1344
    %v1905 = vpack.c.b16 %v1361, %v1345
    %v1906 = vpack.c.b16 %v1362, %v1346
    %v1907 = vpack.c.b16 %v1363, %v1347
    %v1908 = vpack.c.b16 %v1364, %v1348
    %v1909 = vpack.c.b16 %v1365, %v1349
    %v1910 = vpack.c.b16 %v1366, %v1350
    %v1911 = vpack.c.b16 %v1367, %v1351
    %v1912 = vpack.c.b16 %v1368, %v1352
    %v1913 = vpack.c.b16 %v1369, %v1353
    %v1914 = vpack.c.b16 %v1370, %v1354
    %v1915 = vpack.c.b16 %v1371, %v1355
    %v1916 = vpack.c.b16 %v1372, %v1356
    %v1917 = vpack.c.b16 %v1373, %v1357
    %v1918 = vpack.c.b16 %v1390, %v1374
    %v1919 = vpack.c.b16 %v1391, %v1375
    %v1920 = vpack.c.b16 %v1392, %v1376
    %v1921 = vpack.c.b16 %v1393, %v1377
    %v1922 = vpack.c.b16 %v1394, %v1378
    %v1923 = vpack.c.b16 %v1395, %v1379
    %v1924 = vpack.c.b16 %v1396, %v1380
    %v1925 = vpack.c.b16 %v1397, %v1381
    %v1926 = vpack.c.b16 %v1398, %v1382
    %v1927 = vpack.c.b16 %v1399, %v1383
    %v1928 = vpack.c.b16 %v1400, %v1384
    %v1929 = vpack.c.b16 %v1401, %v1385
    %v1930 = vpack.c.b16 %v1402, %v1386
    %v1931 = vpack.c.b16 %v1403, %v1387
    %v1932 = vpack.c.b16 %v1404, %v1388
    %v1933 = vpack.c.b16 %v1405, %v1389
    %v1934 = vpack.c.b16 %v1422, %v1406
    %v1935 = vpack.c.b16 %v1423, %v1407
    %v1936 = vpack.c.b16 %v1424, %v1408
    %v1937 = vpack.c.b16 %v1425, %v1409
    %v1938 = vpack.c.b16 %v1426, %v1410
    %v1939 = vpack.c.b16 %v1427, %v1411
    %v1940 = vpack.c.b16 %v1428, %v1412
    %v1941 = vpack.c.b16 %v1429, %v1413
    %v1942 = vpack.c.b16 %v1430, %v1414
    %v1943 = vpack.c.b16 %v1431, %v1415
    %v1944 = vpack.c.b16 %v1432, %v1416
    %v1945 = vpack.c.b16 %v1433, %v1417
    %v1946 = vpack.c.b16 %v1434, %v1418
    %v1947 = vpack.c.b16 %v1435, %v1419
    %v1948 = vpack.c.b16 %v1436, %v1420
    %v1949 = vpack.c.b16 %v1437, %v1421
    %v1950 = vpack.c.b16 %v1454, %v1438
    %v1951 = vpack.c.b16 %v1455, %v1439
    %v1952 = vpack.c.b16 %v1456, %v1440
    %v1953 = vpack.c.b16 %v1457, %v1441
    %v1954 = vpack.c.b16 %v1458, %v1442
    %v1955 = vpack.c.b16 %v1459, %v1443
    %v1956 = vpack.c.b16 %v1460, %v1444
    %v1957 = vpack.c.b16 %v1461, %v1445
    %v1958 = vpack.c.b16 %v1462, %v1446
    %v1959 = vpack.c.b16 %v1463, %v1447
    %v1960 = vpack.c.b16 %v1464, %v1448
    %v1961 = vpack.c.b16 %v1465, %v1449
    %v1962 = vpack.c.b16 %v1466, %v1450
    %v1963 = vpack.c.b16 %v1467, %v1451
    %v1964 = vpack.c.b16 %v1468, %v1452
    %v1965 = vpack.c.b16 %v1469, %v1453
    %v1966 = vpack.c.b16 %v1486, %v1470
    %v1967 = vpack.c.b16 %v1487, %v1471
    %v1968 = vpack.c.b16 %v1488, %v1472
    %v1969 = vpack.c.b16 %v1489, %v1473
    %v1970 = vpack.c.b16 %v1490, %v1474
    %v1971 = vpack.c.b16 %v1491, %v1475
    %v1972 = vpack.c.b16 %v1492, %v1476
    %v1973 = vpack.c.b16 %v1493, %v1477
    %v1974 = vpack.c.b16 %v1494, %v1478
    %v1975 = vpack.c.b16 %v1495, %v1479
    %v1976 = vpack.c.b16 %v1496, %v1480
    %v1977 = vpack.c.b16 %v1497, %v1481
    %v1978 = vpack.c.b16 %v1498, %v1482
    %v1979 = vpack.c.b16 %v1499, %v1483
    %v1980 = vpack.c.b16 %v1500, %v1484
    %v1981 = vpack.c.b16 %v1501, %v1485
    %v1982 = vpack.c.b16 %v1518, %v1502
    %v1983 = vpack.c.b16 %v1519, %v1503
    %v1984 = vpack.c.b16 %v1520, %v1504
    %v1985 = vpack.c.b16 %v1521, %v1505
    %v1986 = vpack.c.b16 %v1522, %v1506
    %v1987 = vpack.c.b16 %v1523, %v1507
    %v1988 = vpack.c.b16 %v1524, %v1508
    %v1989 = vpack.c.b16 %v1525, %v1509
    %v1990 = vpack.c.b16 %v1526, %v1510
    %v1991 = vpack.c.b16 %v1527, %v1511
    %v1992 = vpack.c.b16 %v1528, %v1512
    %v1993 = vpack.c.b16 %v1529, %v1513
    %v1994 = vpack.c.b16 %v1530, %v1514
    %v1995 = vpack.c.b16 %v1531, %v1515
    %v1996 = vpack.c.b16 %v1532, %v1516
    %v1997 = vpack.c.b16 %v1533, %v1517
    %v1998 = vpack.c.b16 %v1550, %v1534
    %v1999 = vpack.c.b16 %v1551, %v1535
    %v2000 = vpack.c.b16 %v1552, %v1536
    %v2001 = vpack.c.b16 %v1553, %v1537
    %v2002 = vpack.c.b16 %v1554, %v1538
    %v2003 = vpack.c.b16 %v1555, %v1539
    %v2004 = vpack.c.b16 %v1556, %v1540
    %v2005 = vpack.c.b16 %v1557, %v1541
    %v2006 = vpack.c.b16 %v1558, %v1542
    %v2007 = vpack.c.b16 %v1559, %v1543
    %v2008 = vpack.c.b16 %v1560, %v1544
    %v2009 = vpack.c.b16 %v1561, %v1545
    %v2010 = vpack.c.b16 %v1562, %v1546
    %v2011 = vpack.c.b16 %v1563, %v1547
    %v2012 = vpack.c.b16 %v1564, %v1548
    %v2013 = vpack.c.b16 %v1565, %v1549
    %v2014 = vpack.c.b16 %v1582, %v1566
    %v2015 = vpack.c.b16 %v1583, %v1567
    %v2016 = vpack.c.b16 %v1584, %v1568
    %v2017 = vpack.c.b16 %v1585, %v1569
    %v2018 = vpack.c.b16 %v1586, %v1570
    %v2019 = vpack.c.b16 %v1587, %v1571
    %v2020 = vpack.c.b16 %v1588, %v1572
    %v2021 = vpack.c.b16 %v1589, %v1573
    %v2022 = vpack.c.b16 %v1590, %v1574
    %v2023 = vpack.c.b16 %v1591, %v1575
    %v2024 = vpack.c.b16 %v1592, %v1576
    %v2025 = vpack.c.b16 %v1593, %v1577
    %v2026 = vpack.c.b16 %v1594, %v1578
    %v2027 = vpack.c.b16 %v1595, %v1579
    %v2028 = vpack.c.b16 %v1596, %v1580
    %v2029 = vpack.c.b16 %v1597, %v1581
    %v2030 = vpack.c.b16 %v1614, %v1598
    %v2031 = vpack.c.b16 %v1615, %v1599
    %v2032 = vpack.c.b16 %v1616, %v1600
    %v2033 = vpack.c.b16 %v1617, %v1601
    %v2034 = vpack.c.b16 %v1618, %v1602
    %v2035 = vpack.c.b16 %v1619, %v1603
    %v2036 = vpack.c.b16 %v1620, %v1604
    %v2037 = vpack.c.b16 %v1621, %v1605
    %v2038 = vpack.c.b16 %v1622, %v1606
    %v2039 = vpack.c.b16 %v1623, %v1607
    %v2040 = vpack.c.b16 %v1624, %v1608
    %v2041 = vpack.c.b16 %v1625, %v1609
    %v2042 = vpack.c.b16 %v1626, %v1610
    %v2043 = vpack.c.b16 %v1627, %v1611
    %v2044 = vpack.c.b16 %v1628, %v1612
    %v2045 = vpack.c.b16 %v1629, %v1613
    %v2046 = vpack.c.b16 %v1646, %v1630
    %v2047 = vpack.c.b16 %v1647, %v1631
    %v2048 = vpack.c.b16 %v1648, %v1632
    %v2049 = vpack.c.b16 %v1649, %v1633
    %v2050 = vpack.c.b16 %v1650, %v1634
    %v2051 = vpack.c.b16 %v1651, %v1635
    %v2052 = vpack.c.b16 %v1652, %v1636
    %v2053 = vpack.c.b16 %v1653, %v1637
    %v2054 = vpack.c.b16 %v1654, %v1638
    %v2055 = vpack.c.b16 %v1655, %v1639
    %v2056 = vpack.c.b16 %v1656, %v1640
    %v2057 = vpack.c.b16 %v1657, %v1641
    %v2058 = vpack.c.b16 %v1658, %v1642
    %v2059 = vpack.c.b16 %v1659, %v1643
    %v2060 = vpack.c.b16 %v1660, %v1644
    %v2061 = vpack.c.b16 %v1661, %v1645
    %v2062 = vpack.c.b16 %v1678, %v1662
    %v2063 = vpack.c.b16 %v1679, %v1663
    %v2064 = vpack.c.b16 %v1680, %v1664
    %v2065 = vpack.c.b16 %v1681, %v1665
    %v2066 = vpack.c.b16 %v1682, %v1666
    %v2067 = vpack.c.b16 %v1683, %v1667
    %v2068 = vpack.c.b16 %v1684, %v1668
    %v2069 = vpack.c.b16 %v1685, %v1669
    %v2070 = vpack.c.b16 %v1686, %v1670
    %v2071 = vpack.c.b16 %v1687, %v1671
    %v2072 = vpack.c.b16 %v1688, %v1672
    %v2073 = vpack.c.b16 %v1689, %v1673
    %v2074 = vpack.c.b16 %v1690, %v1674
    %v2075 = vpack.c.b16 %v1691, %v1675
    %v2076 = vpack.c.b16 %v1692, %v1676
    %v2077 = vpack.c.b16 %v1693, %v1677
    %2462 = vmatprep.subr.bf16.mxu0 %v1807
    %2463 = vmatpush1.bf16.msra.mxu0 %v1806
    %2464 = vmatprep.subr.bf16.mxu0 %v1791
    %2465 = vmatpush1.bf16.msra.mxu0 %v1790
    %2466 = vmatprep.subr.bf16.mxu0 %v1775
    %2467 = vmatpush1.bf16.msra.mxu0 %v1774
    %2468 = vmatprep.subr.bf16.mxu0 %v1759
    %2469 = vmatpush1.bf16.msra.mxu0 %v1758
    %2470 = vmatprep.subr.bf16.mxu0 %v1743
    %2471 = vmatpush1.bf16.msra.mxu0 %v1742
    %2472 = vmatprep.subr.bf16.mxu0 %v1727
    %2473 = vmatpush1.bf16.msra.mxu0 %v1726
    %2474 = vmatprep.subr.bf16.mxu0 %v1711
    %2475 = vmatpush1.bf16.msra.mxu0 %v1710
    %2476 = vmatprep.subr.bf16.mxu0 %v1695
    %2477 = vmatpush1.bf16.msra.mxu0 %v1694
    %2478 = vmatprep.subr.bf16.mxu0 %v1935
    %2479 = vmatpush2.bf16.msra.mxu0 %v1934
    %2480 = vmatprep.subr.bf16.mxu0 %v1919
    %2481 = vmatpush2.bf16.msra.mxu0 %v1918
    %2482 = vmatprep.subr.bf16.mxu0 %v1903
    %2483 = vmatpush2.bf16.msra.mxu0 %v1902
    %2484 = vmatprep.subr.bf16.mxu0 %v1887
    %2485 = vmatpush2.bf16.msra.mxu0 %v1886
    %2486 = vmatprep.subr.bf16.mxu0 %v1871
    %2487 = vmatpush2.bf16.msra.mxu0 %v1870
    %2488 = vmatprep.subr.bf16.mxu0 %v1855
    %2489 = vmatpush2.bf16.msra.mxu0 %v1854
    %2490 = vmatprep.subr.bf16.mxu0 %v1839
    %2491 = vmatpush2.bf16.msra.mxu0 %v1838
    %2492 = vmatprep.subr.bf16.mxu0 %v1823
    %2493 = vmatpush2.bf16.msra.mxu0 %v1822
    %2494 = vmatprep.mubr.bf16.mxu0 %v537
    %2495 = vmatmul.mubr.bf16.gmra.mxu0 %v530
    %v2496 = vpop.f32.mrf.mxu0
    %v2497 = vadd.f32 %v438, %v2496
    %v2498 = vpop.f32.mrf.mxu0
    %v2499 = vadd.f32 %v442, %v2498
    %v2500 = vpop.f32.mrf.mxu0
    %v2501 = vpop.f32.mrf.mxu0
    %2502 = vdwg.mxu0
    %2503 = vmatprep.subr.bf16.mxu0 %v2063
    %2504 = vmatpush1.bf16.msra.mxu0 %v2062
    %2505 = vmatprep.subr.bf16.mxu0 %v2047
    %2506 = vmatpush1.bf16.msra.mxu0 %v2046
    %2507 = vmatprep.subr.bf16.mxu0 %v2031
    %2508 = vmatpush1.bf16.msra.mxu0 %v2030
    %2509 = vmatprep.subr.bf16.mxu0 %v2015
    %2510 = vmatpush1.bf16.msra.mxu0 %v2014
    %2511 = vmatprep.subr.bf16.mxu0 %v1999
    %2512 = vmatpush1.bf16.msra.mxu0 %v1998
    %2513 = vmatprep.subr.bf16.mxu0 %v1983
    %2514 = vmatpush1.bf16.msra.mxu0 %v1982
    %2515 = vmatprep.subr.bf16.mxu0 %v1967
    %2516 = vmatpush1.bf16.msra.mxu0 %v1966
    %2517 = vmatprep.subr.bf16.mxu0 %v1951
    %2518 = vmatpush1.bf16.msra.mxu0 %v1950
    %2519 = vmatprep.subr.bf16.mxu0 0
    %2520 = vmatpush2.bf16.msra.mxu0 0
    %2521 = vmatprep.subr.bf16.mxu0 0
    %2522 = vmatpush2.bf16.msra.mxu0 0
    %2523 = vmatprep.subr.bf16.mxu0 0
    %2524 = vmatpush2.bf16.msra.mxu0 0
    %2525 = vmatprep.subr.bf16.mxu0 0
    %2526 = vmatpush2.bf16.msra.mxu0 0
    %2527 = vmatprep.subr.bf16.mxu0 0
    %2528 = vmatpush2.bf16.msra.mxu0 0
    %2529 = vmatprep.subr.bf16.mxu0 0
    %2530 = vmatpush2.bf16.msra.mxu0 0
    %2531 = vmatprep.subr.bf16.mxu0 0
    %2532 = vmatpush2.bf16.msra.mxu0 0
    %2533 = vmatprep.subr.bf16.mxu0 0
    %2534 = vmatpush2.bf16.msra.mxu0 0
    %2535 = vmatprep.mubr.bf16.mxu0 0
    %2536 = vmatmul.mubr.bf16.gmra.mxu0 %v538
    %v2537 = vpop.f32.mrf.mxu0
    %v2538 = vadd.f32 %v2497, %v2537
    %v2539 = vpop.f32.mrf.mxu0
    %v2540 = vadd.f32 %v2499, %v2539
    %v2541 = vpop.f32.mrf.mxu0
    %v2542 = vpop.f32.mrf.mxu0
    %2543 = vdwg.mxu0
    %2544 = vmatprep.subr.bf16.mxu0 %v1809
    %2545 = vmatpush1.bf16.msra.mxu0 %v1808
    %2546 = vmatprep.subr.bf16.mxu0 %v1793
    %2547 = vmatpush1.bf16.msra.mxu0 %v1792
    %2548 = vmatprep.subr.bf16.mxu0 %v1777
    %2549 = vmatpush1.bf16.msra.mxu0 %v1776
    %2550 = vmatprep.subr.bf16.mxu0 %v1761
    %2551 = vmatpush1.bf16.msra.mxu0 %v1760
    %2552 = vmatprep.subr.bf16.mxu0 %v1745
    %2553 = vmatpush1.bf16.msra.mxu0 %v1744
    %2554 = vmatprep.subr.bf16.mxu0 %v1729
    %2555 = vmatpush1.bf16.msra.mxu0 %v1728
    %2556 = vmatprep.subr.bf16.mxu0 %v1713
    %2557 = vmatpush1.bf16.msra.mxu0 %v1712
    %2558 = vmatprep.subr.bf16.mxu0 %v1697
    %2559 = vmatpush1.bf16.msra.mxu0 %v1696
    %2560 = vmatprep.subr.bf16.mxu0 %v1937
    %2561 = vmatpush2.bf16.msra.mxu0 %v1936
    %2562 = vmatprep.subr.bf16.mxu0 %v1921
    %2563 = vmatpush2.bf16.msra.mxu0 %v1920
    %2564 = vmatprep.subr.bf16.mxu0 %v1905
    %2565 = vmatpush2.bf16.msra.mxu0 %v1904
    %2566 = vmatprep.subr.bf16.mxu0 %v1889
    %2567 = vmatpush2.bf16.msra.mxu0 %v1888
    %2568 = vmatprep.subr.bf16.mxu0 %v1873
    %2569 = vmatpush2.bf16.msra.mxu0 %v1872
    %2570 = vmatprep.subr.bf16.mxu0 %v1857
    %2571 = vmatpush2.bf16.msra.mxu0 %v1856
    %2572 = vmatprep.subr.bf16.mxu0 %v1841
    %2573 = vmatpush2.bf16.msra.mxu0 %v1840
    %2574 = vmatprep.subr.bf16.mxu0 %v1825
    %2575 = vmatpush2.bf16.msra.mxu0 %v1824
    %2576 = vmatprep.mubr.bf16.mxu0 %v537
    %2577 = vmatmul.mubr.bf16.gmra.mxu0 %v530
    %v2578 = vpop.f32.mrf.mxu0
    %v2579 = vadd.f32 %v446, %v2578
    %v2580 = vpop.f32.mrf.mxu0
    %v2581 = vadd.f32 %v450, %v2580
    %v2582 = vpop.f32.mrf.mxu0
    %v2583 = vpop.f32.mrf.mxu0
    %2584 = vdwg.mxu0
    %2585 = vmatprep.subr.bf16.mxu0 %v2065
    %2586 = vmatpush1.bf16.msra.mxu0 %v2064
    %2587 = vmatprep.subr.bf16.mxu0 %v2049
    %2588 = vmatpush1.bf16.msra.mxu0 %v2048
    %2589 = vmatprep.subr.bf16.mxu0 %v2033
    %2590 = vmatpush1.bf16.msra.mxu0 %v2032
    %2591 = vmatprep.subr.bf16.mxu0 %v2017
    %2592 = vmatpush1.bf16.msra.mxu0 %v2016
    %2593 = vmatprep.subr.bf16.mxu0 %v2001
    %2594 = vmatpush1.bf16.msra.mxu0 %v2000
    %2595 = vmatprep.subr.bf16.mxu0 %v1985
    %2596 = vmatpush1.bf16.msra.mxu0 %v1984
    %2597 = vmatprep.subr.bf16.mxu0 %v1969
    %2598 = vmatpush1.bf16.msra.mxu0 %v1968
    %2599 = vmatprep.subr.bf16.mxu0 %v1953
    %2600 = vmatpush1.bf16.msra.mxu0 %v1952
    %2601 = vmatprep.subr.bf16.mxu0 0
    %2602 = vmatpush2.bf16.msra.mxu0 0
    %2603 = vmatprep.subr.bf16.mxu0 0
    %2604 = vmatpush2.bf16.msra.mxu0 0
    %2605 = vmatprep.subr.bf16.mxu0 0
    %2606 = vmatpush2.bf16.msra.mxu0 0
    %2607 = vmatprep.subr.bf16.mxu0 0
    %2608 = vmatpush2.bf16.msra.mxu0 0
    %2609 = vmatprep.subr.bf16.mxu0 0
    %2610 = vmatpush2.bf16.msra.mxu0 0
    %2611 = vmatprep.subr.bf16.mxu0 0
    %2612 = vmatpush2.bf16.msra.mxu0 0
    %2613 = vmatprep.subr.bf16.mxu0 0
    %2614 = vmatpush2.bf16.msra.mxu0 0
    %2615 = vmatprep.subr.bf16.mxu0 0
    %2616 = vmatpush2.bf16.msra.mxu0 0
    %2617 = vmatprep.mubr.bf16.mxu0 0
    %2618 = vmatmul.mubr.bf16.gmra.mxu0 %v538
    %v2619 = vpop.f32.mrf.mxu0
    %v2620 = vadd.f32 %v2579, %v2619
    %v2621 = vpop.f32.mrf.mxu0
    %v2622 = vadd.f32 %v2581, %v2621
    %v2623 = vpop.f32.mrf.mxu0
    %v2624 = vpop.f32.mrf.mxu0
    %2625 = vdwg.mxu0
    %2626 = vmatprep.subr.bf16.mxu0 %v1811
    %2627 = vmatpush1.bf16.msra.mxu0 %v1810
    %2628 = vmatprep.subr.bf16.mxu0 %v1795
    %2629 = vmatpush1.bf16.msra.mxu0 %v1794
    %2630 = vmatprep.subr.bf16.mxu0 %v1779
    %2631 = vmatpush1.bf16.msra.mxu0 %v1778
    %2632 = vmatprep.subr.bf16.mxu0 %v1763
    %2633 = vmatpush1.bf16.msra.mxu0 %v1762
    %2634 = vmatprep.subr.bf16.mxu0 %v1747
    %2635 = vmatpush1.bf16.msra.mxu0 %v1746
    %2636 = vmatprep.subr.bf16.mxu0 %v1731
    %2637 = vmatpush1.bf16.msra.mxu0 %v1730
    %2638 = vmatprep.subr.bf16.mxu0 %v1715
    %2639 = vmatpush1.bf16.msra.mxu0 %v1714
    %2640 = vmatprep.subr.bf16.mxu0 %v1699
    %2641 = vmatpush1.bf16.msra.mxu0 %v1698
    %2642 = vmatprep.subr.bf16.mxu0 %v1939
    %2643 = vmatpush2.bf16.msra.mxu0 %v1938
    %2644 = vmatprep.subr.bf16.mxu0 %v1923
    %2645 = vmatpush2.bf16.msra.mxu0 %v1922
    %2646 = vmatprep.subr.bf16.mxu0 %v1907
    %2647 = vmatpush2.bf16.msra.mxu0 %v1906
    %2648 = vmatprep.subr.bf16.mxu0 %v1891
    %2649 = vmatpush2.bf16.msra.mxu0 %v1890
    %2650 = vmatprep.subr.bf16.mxu0 %v1875
    %2651 = vmatpush2.bf16.msra.mxu0 %v1874
    %2652 = vmatprep.subr.bf16.mxu0 %v1859
    %2653 = vmatpush2.bf16.msra.mxu0 %v1858
    %2654 = vmatprep.subr.bf16.mxu0 %v1843
    %2655 = vmatpush2.bf16.msra.mxu0 %v1842
    %2656 = vmatprep.subr.bf16.mxu0 %v1827
    %2657 = vmatpush2.bf16.msra.mxu0 %v1826
    %2658 = vmatprep.mubr.bf16.mxu0 %v537
    %2659 = vmatmul.mubr.bf16.gmra.mxu0 %v530
    %v2660 = vpop.f32.mrf.mxu0
    %v2661 = vadd.f32 %v454, %v2660
    %v2662 = vpop.f32.mrf.mxu0
    %v2663 = vadd.f32 %v458, %v2662
    %v2664 = vpop.f32.mrf.mxu0
    %v2665 = vpop.f32.mrf.mxu0
    %2666 = vdwg.mxu0
    %2667 = vmatprep.subr.bf16.mxu0 %v2067
    %2668 = vmatpush1.bf16.msra.mxu0 %v2066
    %2669 = vmatprep.subr.bf16.mxu0 %v2051
    %2670 = vmatpush1.bf16.msra.mxu0 %v2050
    %2671 = vmatprep.subr.bf16.mxu0 %v2035
    %2672 = vmatpush1.bf16.msra.mxu0 %v2034
    %2673 = vmatprep.subr.bf16.mxu0 %v2019
    %2674 = vmatpush1.bf16.msra.mxu0 %v2018
    %2675 = vmatprep.subr.bf16.mxu0 %v2003
    %2676 = vmatpush1.bf16.msra.mxu0 %v2002
    %2677 = vmatprep.subr.bf16.mxu0 %v1987
    %2678 = vmatpush1.bf16.msra.mxu0 %v1986
    %2679 = vmatprep.subr.bf16.mxu0 %v1971
    %2680 = vmatpush1.bf16.msra.mxu0 %v1970
    %2681 = vmatprep.subr.bf16.mxu0 %v1955
    %2682 = vmatpush1.bf16.msra.mxu0 %v1954
    %2683 = vmatprep.subr.bf16.mxu0 0
    %2684 = vmatpush2.bf16.msra.mxu0 0
    %2685 = vmatprep.subr.bf16.mxu0 0
    %2686 = vmatpush2.bf16.msra.mxu0 0
    %2687 = vmatprep.subr.bf16.mxu0 0
    %2688 = vmatpush2.bf16.msra.mxu0 0
    %2689 = vmatprep.subr.bf16.mxu0 0
    %2690 = vmatpush2.bf16.msra.mxu0 0
    %2691 = vmatprep.subr.bf16.mxu0 0
    %2692 = vmatpush2.bf16.msra.mxu0 0
    %2693 = vmatprep.subr.bf16.mxu0 0
    %2694 = vmatpush2.bf16.msra.mxu0 0
    %2695 = vmatprep.subr.bf16.mxu0 0
    %2696 = vmatpush2.bf16.msra.mxu0 0
    %2697 = vmatprep.subr.bf16.mxu0 0
    %2698 = vmatpush2.bf16.msra.mxu0 0
    %2699 = vmatprep.mubr.bf16.mxu0 0
    %2700 = vmatmul.mubr.bf16.gmra.mxu0 %v538
    %v2701 = vpop.f32.mrf.mxu0
    %v2702 = vadd.f32 %v2661, %v2701
    %v2703 = vpop.f32.mrf.mxu0
    %v2704 = vadd.f32 %v2663, %v2703
    %v2705 = vpop.f32.mrf.mxu0
    %v2706 = vpop.f32.mrf.mxu0
    %2707 = vdwg.mxu0
    %2708 = vmatprep.subr.bf16.mxu0 %v1813
    %2709 = vmatpush1.bf16.msra.mxu0 %v1812
    %2710 = vmatprep.subr.bf16.mxu0 %v1797
    %2711 = vmatpush1.bf16.msra.mxu0 %v1796
    %2712 = vmatprep.subr.bf16.mxu0 %v1781
    %2713 = vmatpush1.bf16.msra.mxu0 %v1780
    %2714 = vmatprep.subr.bf16.mxu0 %v1765
    %2715 = vmatpush1.bf16.msra.mxu0 %v1764
    %2716 = vmatprep.subr.bf16.mxu0 %v1749
    %2717 = vmatpush1.bf16.msra.mxu0 %v1748
    %2718 = vmatprep.subr.bf16.mxu0 %v1733
    %2719 = vmatpush1.bf16.msra.mxu0 %v1732
    %2720 = vmatprep.subr.bf16.mxu0 %v1717
    %2721 = vmatpush1.bf16.msra.mxu0 %v1716
    %2722 = vmatprep.subr.bf16.mxu0 %v1701
    %2723 = vmatpush1.bf16.msra.mxu0 %v1700
    %2724 = vmatprep.subr.bf16.mxu0 %v1941
    %2725 = vmatpush2.bf16.msra.mxu0 %v1940
    %2726 = vmatprep.subr.bf16.mxu0 %v1925
    %2727 = vmatpush2.bf16.msra.mxu0 %v1924
    %2728 = vmatprep.subr.bf16.mxu0 %v1909
    %2729 = vmatpush2.bf16.msra.mxu0 %v1908
    %2730 = vmatprep.subr.bf16.mxu0 %v1893
    %2731 = vmatpush2.bf16.msra.mxu0 %v1892
    %2732 = vmatprep.subr.bf16.mxu0 %v1877
    %2733 = vmatpush2.bf16.msra.mxu0 %v1876
    %2734 = vmatprep.subr.bf16.mxu0 %v1861
    %2735 = vmatpush2.bf16.msra.mxu0 %v1860
    %2736 = vmatprep.subr.bf16.mxu0 %v1845
    %2737 = vmatpush2.bf16.msra.mxu0 %v1844
    %2738 = vmatprep.subr.bf16.mxu0 %v1829
    %2739 = vmatpush2.bf16.msra.mxu0 %v1828
    %2740 = vmatprep.mubr.bf16.mxu0 %v537
    %2741 = vmatmul.mubr.bf16.gmra.mxu0 %v530
    %v2742 = vpop.f32.mrf.mxu0
    %v2743 = vadd.f32 %v462, %v2742
    %v2744 = vpop.f32.mrf.mxu0
    %v2745 = vadd.f32 %v466, %v2744
    %v2746 = vpop.f32.mrf.mxu0
    %v2747 = vpop.f32.mrf.mxu0
    %2748 = vdwg.mxu0
    %2749 = vmatprep.subr.bf16.mxu0 %v2069
    %2750 = vmatpush1.bf16.msra.mxu0 %v2068
    %2751 = vmatprep.subr.bf16.mxu0 %v2053
    %2752 = vmatpush1.bf16.msra.mxu0 %v2052
    %2753 = vmatprep.subr.bf16.mxu0 %v2037
    %2754 = vmatpush1.bf16.msra.mxu0 %v2036
    %2755 = vmatprep.subr.bf16.mxu0 %v2021
    %2756 = vmatpush1.bf16.msra.mxu0 %v2020
    %2757 = vmatprep.subr.bf16.mxu0 %v2005
    %2758 = vmatpush1.bf16.msra.mxu0 %v2004
    %2759 = vmatprep.subr.bf16.mxu0 %v1989
    %2760 = vmatpush1.bf16.msra.mxu0 %v1988
    %2761 = vmatprep.subr.bf16.mxu0 %v1973
    %2762 = vmatpush1.bf16.msra.mxu0 %v1972
    %2763 = vmatprep.subr.bf16.mxu0 %v1957
    %2764 = vmatpush1.bf16.msra.mxu0 %v1956
    %2765 = vmatprep.subr.bf16.mxu0 0
    %2766 = vmatpush2.bf16.msra.mxu0 0
    %2767 = vmatprep.subr.bf16.mxu0 0
    %2768 = vmatpush2.bf16.msra.mxu0 0
    %2769 = vmatprep.subr.bf16.mxu0 0
    %2770 = vmatpush2.bf16.msra.mxu0 0
    %2771 = vmatprep.subr.bf16.mxu0 0
    %2772 = vmatpush2.bf16.msra.mxu0 0
    %2773 = vmatprep.subr.bf16.mxu0 0
    %2774 = vmatpush2.bf16.msra.mxu0 0
    %2775 = vmatprep.subr.bf16.mxu0 0
    %2776 = vmatpush2.bf16.msra.mxu0 0
    %2777 = vmatprep.subr.bf16.mxu0 0
    %2778 = vmatpush2.bf16.msra.mxu0 0
    %2779 = vmatprep.subr.bf16.mxu0 0
    %2780 = vmatpush2.bf16.msra.mxu0 0
    %2781 = vmatprep.mubr.bf16.mxu0 0
    %2782 = vmatmul.mubr.bf16.gmra.mxu0 %v538
    %v2783 = vpop.f32.mrf.mxu0
    %v2784 = vadd.f32 %v2743, %v2783
    %v2785 = vpop.f32.mrf.mxu0
    %v2786 = vadd.f32 %v2745, %v2785
    %v2787 = vpop.f32.mrf.mxu0
    %v2788 = vpop.f32.mrf.mxu0
    %2789 = vdwg.mxu0
    %2790 = vmatprep.subr.bf16.mxu0 %v1815
    %2791 = vmatpush1.bf16.msra.mxu0 %v1814
    %2792 = vmatprep.subr.bf16.mxu0 %v1799
    %2793 = vmatpush1.bf16.msra.mxu0 %v1798
    %2794 = vmatprep.subr.bf16.mxu0 %v1783
    %2795 = vmatpush1.bf16.msra.mxu0 %v1782
    %2796 = vmatprep.subr.bf16.mxu0 %v1767
    %2797 = vmatpush1.bf16.msra.mxu0 %v1766
    %2798 = vmatprep.subr.bf16.mxu0 %v1751
    %2799 = vmatpush1.bf16.msra.mxu0 %v1750
    %2800 = vmatprep.subr.bf16.mxu0 %v1735
    %2801 = vmatpush1.bf16.msra.mxu0 %v1734
    %2802 = vmatprep.subr.bf16.mxu0 %v1719
    %2803 = vmatpush1.bf16.msra.mxu0 %v1718
    %2804 = vmatprep.subr.bf16.mxu0 %v1703
    %2805 = vmatpush1.bf16.msra.mxu0 %v1702
    %2806 = vmatprep.subr.bf16.mxu0 %v1943
    %2807 = vmatpush2.bf16.msra.mxu0 %v1942
    %2808 = vmatprep.subr.bf16.mxu0 %v1927
    %2809 = vmatpush2.bf16.msra.mxu0 %v1926
    %2810 = vmatprep.subr.bf16.mxu0 %v1911
    %2811 = vmatpush2.bf16.msra.mxu0 %v1910
    %2812 = vmatprep.subr.bf16.mxu0 %v1895
    %2813 = vmatpush2.bf16.msra.mxu0 %v1894
    %2814 = vmatprep.subr.bf16.mxu0 %v1879
    %2815 = vmatpush2.bf16.msra.mxu0 %v1878
    %2816 = vmatprep.subr.bf16.mxu0 %v1863
    %2817 = vmatpush2.bf16.msra.mxu0 %v1862
    %2818 = vmatprep.subr.bf16.mxu0 %v1847
    %2819 = vmatpush2.bf16.msra.mxu0 %v1846
    %2820 = vmatprep.subr.bf16.mxu0 %v1831
    %2821 = vmatpush2.bf16.msra.mxu0 %v1830
    %2822 = vmatprep.mubr.bf16.mxu0 %v537
    %2823 = vmatmul.mubr.bf16.gmra.mxu0 %v530
    %v2824 = vpop.f32.mrf.mxu0
    %v2825 = vadd.f32 %v470, %v2824
    %v2826 = vpop.f32.mrf.mxu0
    %v2827 = vadd.f32 %v474, %v2826
    %v2828 = vpop.f32.mrf.mxu0
    %v2829 = vpop.f32.mrf.mxu0
    %2830 = vdwg.mxu0
    %2831 = vmatprep.subr.bf16.mxu0 %v2071
    %2832 = vmatpush1.bf16.msra.mxu0 %v2070
    %2833 = vmatprep.subr.bf16.mxu0 %v2055
    %2834 = vmatpush1.bf16.msra.mxu0 %v2054
    %2835 = vmatprep.subr.bf16.mxu0 %v2039
    %2836 = vmatpush1.bf16.msra.mxu0 %v2038
    %2837 = vmatprep.subr.bf16.mxu0 %v2023
    %2838 = vmatpush1.bf16.msra.mxu0 %v2022
    %2839 = vmatprep.subr.bf16.mxu0 %v2007
    %2840 = vmatpush1.bf16.msra.mxu0 %v2006
    %2841 = vmatprep.subr.bf16.mxu0 %v1991
    %2842 = vmatpush1.bf16.msra.mxu0 %v1990
    %2843 = vmatprep.subr.bf16.mxu0 %v1975
    %2844 = vmatpush1.bf16.msra.mxu0 %v1974
    %2845 = vmatprep.subr.bf16.mxu0 %v1959
    %2846 = vmatpush1.bf16.msra.mxu0 %v1958
    %2847 = vmatprep.subr.bf16.mxu0 0
    %2848 = vmatpush2.bf16.msra.mxu0 0
    %2849 = vmatprep.subr.bf16.mxu0 0
    %2850 = vmatpush2.bf16.msra.mxu0 0
    %2851 = vmatprep.subr.bf16.mxu0 0
    %2852 = vmatpush2.bf16.msra.mxu0 0
    %2853 = vmatprep.subr.bf16.mxu0 0
    %2854 = vmatpush2.bf16.msra.mxu0 0
    %2855 = vmatprep.subr.bf16.mxu0 0
    %2856 = vmatpush2.bf16.msra.mxu0 0
    %2857 = vmatprep.subr.bf16.mxu0 0
    %2858 = vmatpush2.bf16.msra.mxu0 0
    %2859 = vmatprep.subr.bf16.mxu0 0
    %2860 = vmatpush2.bf16.msra.mxu0 0
    %2861 = vmatprep.subr.bf16.mxu0 0
    %2862 = vmatpush2.bf16.msra.mxu0 0
    %2863 = vmatprep.mubr.bf16.mxu0 0
    %2864 = vmatmul.mubr.bf16.gmra.mxu0 %v538
    %v2865 = vpop.f32.mrf.mxu0
    %v2866 = vadd.f32 %v2825, %v2865
    %v2867 = vpop.f32.mrf.mxu0
    %v2868 = vadd.f32 %v2827, %v2867
    %v2869 = vpop.f32.mrf.mxu0
    %v2870 = vpop.f32.mrf.mxu0
    %2871 = vdwg.mxu0
    %2872 = vmatprep.subr.bf16.mxu0 %v1817
    %2873 = vmatpush1.bf16.msra.mxu0 %v1816
    %2874 = vmatprep.subr.bf16.mxu0 %v1801
    %2875 = vmatpush1.bf16.msra.mxu0 %v1800
    %2876 = vmatprep.subr.bf16.mxu0 %v1785
    %2877 = vmatpush1.bf16.msra.mxu0 %v1784
    %2878 = vmatprep.subr.bf16.mxu0 %v1769
    %2879 = vmatpush1.bf16.msra.mxu0 %v1768
    %2880 = vmatprep.subr.bf16.mxu0 %v1753
    %2881 = vmatpush1.bf16.msra.mxu0 %v1752
    %2882 = vmatprep.subr.bf16.mxu0 %v1737
    %2883 = vmatpush1.bf16.msra.mxu0 %v1736
    %2884 = vmatprep.subr.bf16.mxu0 %v1721
    %2885 = vmatpush1.bf16.msra.mxu0 %v1720
    %2886 = vmatprep.subr.bf16.mxu0 %v1705
    %2887 = vmatpush1.bf16.msra.mxu0 %v1704
    %2888 = vmatprep.subr.bf16.mxu0 %v1945
    %2889 = vmatpush2.bf16.msra.mxu0 %v1944
    %2890 = vmatprep.subr.bf16.mxu0 %v1929
    %2891 = vmatpush2.bf16.msra.mxu0 %v1928
    %2892 = vmatprep.subr.bf16.mxu0 %v1913
    %2893 = vmatpush2.bf16.msra.mxu0 %v1912
    %2894 = vmatprep.subr.bf16.mxu0 %v1897
    %2895 = vmatpush2.bf16.msra.mxu0 %v1896
    %2896 = vmatprep.subr.bf16.mxu0 %v1881
    %2897 = vmatpush2.bf16.msra.mxu0 %v1880
    %2898 = vmatprep.subr.bf16.mxu0 %v1865
    %2899 = vmatpush2.bf16.msra.mxu0 %v1864
    %2900 = vmatprep.subr.bf16.mxu0 %v1849
    %2901 = vmatpush2.bf16.msra.mxu0 %v1848
    %2902 = vmatprep.subr.bf16.mxu0 %v1833
    %2903 = vmatpush2.bf16.msra.mxu0 %v1832
    %2904 = vmatprep.mubr.bf16.mxu0 %v537
    %2905 = vmatmul.mubr.bf16.gmra.mxu0 %v530
    %v2906 = vpop.f32.mrf.mxu0
    %v2907 = vadd.f32 %v478, %v2906
    %v2908 = vpop.f32.mrf.mxu0
    %v2909 = vadd.f32 %v482, %v2908
    %v2910 = vpop.f32.mrf.mxu0
    %v2911 = vpop.f32.mrf.mxu0
    %2912 = vdwg.mxu0
    %2913 = vmatprep.subr.bf16.mxu0 %v2073
    %2914 = vmatpush1.bf16.msra.mxu0 %v2072
    %2915 = vmatprep.subr.bf16.mxu0 %v2057
    %2916 = vmatpush1.bf16.msra.mxu0 %v2056
    %2917 = vmatprep.subr.bf16.mxu0 %v2041
    %2918 = vmatpush1.bf16.msra.mxu0 %v2040
    %2919 = vmatprep.subr.bf16.mxu0 %v2025
    %2920 = vmatpush1.bf16.msra.mxu0 %v2024
    %2921 = vmatprep.subr.bf16.mxu0 %v2009
    %2922 = vmatpush1.bf16.msra.mxu0 %v2008
    %2923 = vmatprep.subr.bf16.mxu0 %v1993
    %2924 = vmatpush1.bf16.msra.mxu0 %v1992
    %2925 = vmatprep.subr.bf16.mxu0 %v1977
    %2926 = vmatpush1.bf16.msra.mxu0 %v1976
    %2927 = vmatprep.subr.bf16.mxu0 %v1961
    %2928 = vmatpush1.bf16.msra.mxu0 %v1960
    %2929 = vmatprep.subr.bf16.mxu0 0
    %2930 = vmatpush2.bf16.msra.mxu0 0
    %2931 = vmatprep.subr.bf16.mxu0 0
    %2932 = vmatpush2.bf16.msra.mxu0 0
    %2933 = vmatprep.subr.bf16.mxu0 0
    %2934 = vmatpush2.bf16.msra.mxu0 0
    %2935 = vmatprep.subr.bf16.mxu0 0
    %2936 = vmatpush2.bf16.msra.mxu0 0
    %2937 = vmatprep.subr.bf16.mxu0 0
    %2938 = vmatpush2.bf16.msra.mxu0 0
    %2939 = vmatprep.subr.bf16.mxu0 0
    %2940 = vmatpush2.bf16.msra.mxu0 0
    %2941 = vmatprep.subr.bf16.mxu0 0
    %2942 = vmatpush2.bf16.msra.mxu0 0
    %2943 = vmatprep.subr.bf16.mxu0 0
    %2944 = vmatpush2.bf16.msra.mxu0 0
    %2945 = vmatprep.mubr.bf16.mxu0 0
    %2946 = vmatmul.mubr.bf16.gmra.mxu0 %v538
    %v2947 = vpop.f32.mrf.mxu0
    %v2948 = vadd.f32 %v2907, %v2947
    %v2949 = vpop.f32.mrf.mxu0
    %v2950 = vadd.f32 %v2909, %v2949
    %v2951 = vpop.f32.mrf.mxu0
    %v2952 = vpop.f32.mrf.mxu0
    %2953 = vdwg.mxu0
    %2954 = vmatprep.subr.bf16.mxu0 %v1819
    %2955 = vmatpush1.bf16.msra.mxu0 %v1818
    %2956 = vmatprep.subr.bf16.mxu0 %v1803
    %2957 = vmatpush1.bf16.msra.mxu0 %v1802
    %2958 = vmatprep.subr.bf16.mxu0 %v1787
    %2959 = vmatpush1.bf16.msra.mxu0 %v1786
    %2960 = vmatprep.subr.bf16.mxu0 %v1771
    %2961 = vmatpush1.bf16.msra.mxu0 %v1770
    %2962 = vmatprep.subr.bf16.mxu0 %v1755
    %2963 = vmatpush1.bf16.msra.mxu0 %v1754
    %2964 = vmatprep.subr.bf16.mxu0 %v1739
    %2965 = vmatpush1.bf16.msra.mxu0 %v1738
    %2966 = vmatprep.subr.bf16.mxu0 %v1723
    %2967 = vmatpush1.bf16.msra.mxu0 %v1722
    %2968 = vmatprep.subr.bf16.mxu0 %v1707
    %2969 = vmatpush1.bf16.msra.mxu0 %v1706
    %2970 = vmatprep.subr.bf16.mxu0 %v1947
    %2971 = vmatpush2.bf16.msra.mxu0 %v1946
    %2972 = vmatprep.subr.bf16.mxu0 %v1931
    %2973 = vmatpush2.bf16.msra.mxu0 %v1930
    %2974 = vmatprep.subr.bf16.mxu0 %v1915
    %2975 = vmatpush2.bf16.msra.mxu0 %v1914
    %2976 = vmatprep.subr.bf16.mxu0 %v1899
    %2977 = vmatpush2.bf16.msra.mxu0 %v1898
    %2978 = vmatprep.subr.bf16.mxu0 %v1883
    %2979 = vmatpush2.bf16.msra.mxu0 %v1882
    %2980 = vmatprep.subr.bf16.mxu0 %v1867
    %2981 = vmatpush2.bf16.msra.mxu0 %v1866
    %2982 = vmatprep.subr.bf16.mxu0 %v1851
    %2983 = vmatpush2.bf16.msra.mxu0 %v1850
    %2984 = vmatprep.subr.bf16.mxu0 %v1835
    %2985 = vmatpush2.bf16.msra.mxu0 %v1834
    %2986 = vmatprep.mubr.bf16.mxu0 %v537
    %2987 = vmatmul.mubr.bf16.gmra.mxu0 %v530
    %v2988 = vpop.f32.mrf.mxu0
    %v2989 = vadd.f32 %v486, %v2988
    %v2990 = vpop.f32.mrf.mxu0
    %v2991 = vadd.f32 %v490, %v2990
    %v2992 = vpop.f32.mrf.mxu0
    %v2993 = vpop.f32.mrf.mxu0
    %2994 = vdwg.mxu0
    %2995 = vmatprep.subr.bf16.mxu0 %v2075
    %2996 = vmatpush1.bf16.msra.mxu0 %v2074
    %2997 = vmatprep.subr.bf16.mxu0 %v2059
    %2998 = vmatpush1.bf16.msra.mxu0 %v2058
    %2999 = vmatprep.subr.bf16.mxu0 %v2043
    %3000 = vmatpush1.bf16.msra.mxu0 %v2042
    %3001 = vmatprep.subr.bf16.mxu0 %v2027
    %3002 = vmatpush1.bf16.msra.mxu0 %v2026
    %3003 = vmatprep.subr.bf16.mxu0 %v2011
    %3004 = vmatpush1.bf16.msra.mxu0 %v2010
    %3005 = vmatprep.subr.bf16.mxu0 %v1995
    %3006 = vmatpush1.bf16.msra.mxu0 %v1994
    %3007 = vmatprep.subr.bf16.mxu0 %v1979
    %3008 = vmatpush1.bf16.msra.mxu0 %v1978
    %3009 = vmatprep.subr.bf16.mxu0 %v1963
    %3010 = vmatpush1.bf16.msra.mxu0 %v1962
    %3011 = vmatprep.subr.bf16.mxu0 0
    %3012 = vmatpush2.bf16.msra.mxu0 0
    %3013 = vmatprep.subr.bf16.mxu0 0
    %3014 = vmatpush2.bf16.msra.mxu0 0
    %3015 = vmatprep.subr.bf16.mxu0 0
    %3016 = vmatpush2.bf16.msra.mxu0 0
    %3017 = vmatprep.subr.bf16.mxu0 0
    %3018 = vmatpush2.bf16.msra.mxu0 0
    %3019 = vmatprep.subr.bf16.mxu0 0
    %3020 = vmatpush2.bf16.msra.mxu0 0
    %3021 = vmatprep.subr.bf16.mxu0 0
    %3022 = vmatpush2.bf16.msra.mxu0 0
    %3023 = vmatprep.subr.bf16.mxu0 0
    %3024 = vmatpush2.bf16.msra.mxu0 0
    %3025 = vmatprep.subr.bf16.mxu0 0
    %3026 = vmatpush2.bf16.msra.mxu0 0
    %3027 = vmatprep.mubr.bf16.mxu0 0
    %3028 = vmatmul.mubr.bf16.gmra.mxu0 %v538
    %v3029 = vpop.f32.mrf.mxu0
    %v3030 = vadd.f32 %v2989, %v3029
    %v3031 = vpop.f32.mrf.mxu0
    %v3032 = vadd.f32 %v2991, %v3031
    %v3033 = vpop.f32.mrf.mxu0
    %v3034 = vpop.f32.mrf.mxu0
    %3035 = vdwg.mxu0
    %3036 = vmatprep.subr.bf16.mxu0 %v1821
    %3037 = vmatpush1.bf16.msra.mxu0 %v1820
    %3038 = vmatprep.subr.bf16.mxu0 %v1805
    %3039 = vmatpush1.bf16.msra.mxu0 %v1804
    %3040 = vmatprep.subr.bf16.mxu0 %v1789
    %3041 = vmatpush1.bf16.msra.mxu0 %v1788
    %3042 = vmatprep.subr.bf16.mxu0 %v1773
    %3043 = vmatpush1.bf16.msra.mxu0 %v1772
    %3044 = vmatprep.subr.bf16.mxu0 %v1757
    %3045 = vmatpush1.bf16.msra.mxu0 %v1756
    %3046 = vmatprep.subr.bf16.mxu0 %v1741
    %3047 = vmatpush1.bf16.msra.mxu0 %v1740
    %3048 = vmatprep.subr.bf16.mxu0 %v1725
    %3049 = vmatpush1.bf16.msra.mxu0 %v1724
    %3050 = vmatprep.subr.bf16.mxu0 %v1709
    %3051 = vmatpush1.bf16.msra.mxu0 %v1708
    %3052 = vmatprep.subr.bf16.mxu0 %v1949
    %3053 = vmatpush2.bf16.msra.mxu0 %v1948
    %3054 = vmatprep.subr.bf16.mxu0 %v1933
    %3055 = vmatpush2.bf16.msra.mxu0 %v1932
    %3056 = vmatprep.subr.bf16.mxu0 %v1917
    %3057 = vmatpush2.bf16.msra.mxu0 %v1916
    %3058 = vmatprep.subr.bf16.mxu0 %v1901
    %3059 = vmatpush2.bf16.msra.mxu0 %v1900
    %3060 = vmatprep.subr.bf16.mxu0 %v1885
    %3061 = vmatpush2.bf16.msra.mxu0 %v1884
    %3062 = vmatprep.subr.bf16.mxu0 %v1869
    %3063 = vmatpush2.bf16.msra.mxu0 %v1868
    %3064 = vmatprep.subr.bf16.mxu0 %v1853
    %3065 = vmatpush2.bf16.msra.mxu0 %v1852
    %3066 = vmatprep.subr.bf16.mxu0 %v1837
    %3067 = vmatpush2.bf16.msra.mxu0 %v1836
    %3068 = vmatprep.mubr.bf16.mxu0 %v537
    %3069 = vmatmul.mubr.bf16.gmra.mxu0 %v530
    %v3070 = vpop.f32.mrf.mxu0
    %v3071 = vadd.f32 %v494, %v3070
    %v3072 = vpop.f32.mrf.mxu0
    %v3073 = vadd.f32 %v498, %v3072
    %v3074 = vpop.f32.mrf.mxu0
    %v3075 = vpop.f32.mrf.mxu0
    %3076 = vdwg.mxu0
    %3077 = vmatprep.subr.bf16.mxu0 %v2077
    %3078 = vmatpush1.bf16.msra.mxu0 %v2076
    %3079 = vmatprep.subr.bf16.mxu0 %v2061
    %3080 = vmatpush1.bf16.msra.mxu0 %v2060
    %3081 = vmatprep.subr.bf16.mxu0 %v2045
    %3082 = vmatpush1.bf16.msra.mxu0 %v2044
    %3083 = vmatprep.subr.bf16.mxu0 %v2029
    %3084 = vmatpush1.bf16.msra.mxu0 %v2028
    %3085 = vmatprep.subr.bf16.mxu0 %v2013
    %3086 = vmatpush1.bf16.msra.mxu0 %v2012
    %3087 = vmatprep.subr.bf16.mxu0 %v1997
    %3088 = vmatpush1.bf16.msra.mxu0 %v1996
    %3089 = vmatprep.subr.bf16.mxu0 %v1981
    %3090 = vmatpush1.bf16.msra.mxu0 %v1980
    %3091 = vmatprep.subr.bf16.mxu0 %v1965
    %3092 = vmatpush1.bf16.msra.mxu0 %v1964
    %3093 = vmatprep.subr.bf16.mxu0 0
    %3094 = vmatpush2.bf16.msra.mxu0 0
    %3095 = vmatprep.subr.bf16.mxu0 0
    %3096 = vmatpush2.bf16.msra.mxu0 0
    %3097 = vmatprep.subr.bf16.mxu0 0
    %3098 = vmatpush2.bf16.msra.mxu0 0
    %3099 = vmatprep.subr.bf16.mxu0 0
    %3100 = vmatpush2.bf16.msra.mxu0 0
    %3101 = vmatprep.subr.bf16.mxu0 0
    %3102 = vmatpush2.bf16.msra.mxu0 0
    %3103 = vmatprep.subr.bf16.mxu0 0
    %3104 = vmatpush2.bf16.msra.mxu0 0
    %3105 = vmatprep.subr.bf16.mxu0 0
    %3106 = vmatpush2.bf16.msra.mxu0 0
    %3107 = vmatprep.subr.bf16.mxu0 0
    %3108 = vmatpush2.bf16.msra.mxu0 0
    %3109 = vmatprep.mubr.bf16.mxu0 0
    %3110 = vmatmul.mubr.bf16.gmra.mxu0 %v538
    %v3111 = vpop.f32.mrf.mxu0
    %v3112 = vadd.f32 %v3071, %v3111
    %v3113 = vpop.f32.mrf.mxu0
    %v3114 = vadd.f32 %v3073, %v3113
    %v3115 = vpop.f32.mrf.mxu0
    %v3116 = vpop.f32.mrf.mxu0
    %3117 = vdwg.mxu0
    %v3118 = vmax.f32 %v2538, 0.0
    %v3119 = vmax.f32 %v2540, 0.0
    %v3120 = vmax.f32 %v2620, 0.0
    %v3121 = vmax.f32 %v2622, 0.0
    %v3122 = vmax.f32 %v2702, 0.0
    %v3123 = vmax.f32 %v2704, 0.0
    %v3124 = vmax.f32 %v2784, 0.0
    %v3125 = vmax.f32 %v2786, 0.0
    %v3126 = vmax.f32 %v2866, 0.0
    %v3127 = vmax.f32 %v2868, 0.0
    %v3128 = vmax.f32 %v2948, 0.0
    %v3129 = vmax.f32 %v2950, 0.0
    %v3130 = vmax.f32 %v3030, 0.0
    %v3131 = vmax.f32 %v3032, 0.0
    %v3132 = vmax.f32 %v3112, 0.0
    %v3133 = vmax.f32 %v3114, 0.0
    %s3134 = scalar_lea.vmem [#allocation5], 1
    %v3135 = vld [vmem:[%s3134] ss:$2 sm:$0xff]
    %s3136 = scalar_lea.vmem [#allocation5], 17
    %v3137 = vld [vmem:[%s3136] ss:$2 sm:$0xff]
    %v3140 = vlaneseq
    %v3141 = vshrl.u32 %v3140, 7
    %v3142 = vsub.s32 0, %v3141
    %v3143 = vrot.slane %v3135, %v3142
    %v3144 = vlaneseq
    %v3145 = vshrl.u32 %v3144, 7
    %v3146 = vsub.s32 1, %v3145
    %v3147 = vrot.slane %v3135, %v3146
    %v3148 = vlaneseq
    %v3149 = vshrl.u32 %v3148, 7
    %v3150 = vsub.s32 2, %v3149
    %v3151 = vrot.slane %v3135, %v3150
    %v3152 = vlaneseq
    %v3153 = vshrl.u32 %v3152, 7
    %v3154 = vsub.s32 3, %v3153
    %v3155 = vrot.slane %v3135, %v3154
    %v3156 = vlaneseq
    %v3157 = vshrl.u32 %v3156, 7
    %v3158 = vsub.s32 4, %v3157
    %v3159 = vrot.slane %v3135, %v3158
    %v3160 = vlaneseq
    %v3161 = vshrl.u32 %v3160, 7
    %v3162 = vsub.s32 5, %v3161
    %v3163 = vrot.slane %v3135, %v3162
    %v3164 = vlaneseq
    %v3165 = vshrl.u32 %v3164, 7
    %v3166 = vsub.s32 6, %v3165
    %v3167 = vrot.slane %v3135, %v3166
    %v3168 = vlaneseq
    %v3169 = vshrl.u32 %v3168, 7
    %v3170 = vsub.s32 7, %v3169
    %v3171 = vrot.slane %v3135, %v3170
    %v3172 = vlaneseq
    %v3173 = vshrl.u32 %v3172, 7
    %v3174 = vsub.s32 0, %v3173
    %v3175 = vrot.slane %v3137, %v3174
    %v3176 = vlaneseq
    %v3177 = vshrl.u32 %v3176, 7
    %v3178 = vsub.s32 1, %v3177
    %v3179 = vrot.slane %v3137, %v3178
    %v3180 = vlaneseq
    %v3181 = vshrl.u32 %v3180, 7
    %v3182 = vsub.s32 2, %v3181
    %v3183 = vrot.slane %v3137, %v3182
    %v3184 = vlaneseq
    %v3185 = vshrl.u32 %v3184, 7
    %v3186 = vsub.s32 3, %v3185
    %v3187 = vrot.slane %v3137, %v3186
    %v3188 = vlaneseq
    %v3189 = vshrl.u32 %v3188, 7
    %v3190 = vsub.s32 4, %v3189
    %v3191 = vrot.slane %v3137, %v3190
    %v3192 = vlaneseq
    %v3193 = vshrl.u32 %v3192, 7
    %v3194 = vsub.s32 5, %v3193
    %v3195 = vrot.slane %v3137, %v3194
    %v3196 = vlaneseq
    %v3197 = vshrl.u32 %v3196, 7
    %v3198 = vsub.s32 6, %v3197
    %v3199 = vrot.slane %v3137, %v3198
    %v3200 = vlaneseq
    %v3201 = vshrl.u32 %v3200, 7
    %v3202 = vsub.s32 7, %v3201
    %v3203 = vrot.slane %v3137, %v3202
    %v3220 = vmul.f32 %v3118, %v3143
    %v3221 = vmul.f32 %v3119, %v3147
    %v3222 = vmul.f32 %v3120, %v3151
    %v3223 = vmul.f32 %v3121, %v3155
    %v3224 = vmul.f32 %v3122, %v3159
    %v3225 = vmul.f32 %v3123, %v3163
    %v3226 = vmul.f32 %v3124, %v3167
    %v3227 = vmul.f32 %v3125, %v3171
    %v3228 = vmul.f32 %v3126, %v3175
    %v3229 = vmul.f32 %v3127, %v3179
    %v3230 = vmul.f32 %v3128, %v3183
    %v3231 = vmul.f32 %v3129, %v3187
    %v3232 = vmul.f32 %v3130, %v3191
    %v3233 = vmul.f32 %v3131, %v3195
    %v3234 = vmul.f32 %v3132, %v3199
    %v3235 = vmul.f32 %v3133, %v3203
    %v3236 = vpack.c.bf16 %v3220, %v3220
    %v3237 = vpack.c.bf16 %v3221, %v3221
    %v3238 = vpack.c.bf16 %v3222, %v3222
    %v3239 = vpack.c.bf16 %v3223, %v3223
    %v3240 = vpack.c.bf16 %v3224, %v3224
    %v3241 = vpack.c.bf16 %v3225, %v3225
    %v3242 = vpack.c.bf16 %v3226, %v3226
    %v3243 = vpack.c.bf16 %v3227, %v3227
    %v3244 = vpack.c.bf16 %v3228, %v3228
    %v3245 = vpack.c.bf16 %v3229, %v3229
    %v3246 = vpack.c.bf16 %v3230, %v3230
    %v3247 = vpack.c.bf16 %v3231, %v3231
    %v3248 = vpack.c.bf16 %v3232, %v3232
    %v3249 = vpack.c.bf16 %v3233, %v3233
    %v3250 = vpack.c.bf16 %v3234, %v3234
    %v3251 = vpack.c.bf16 %v3235, %v3235
    %v3268 = vcombine.low %v3236, %v3237
    %v3269 = vcombine.low %v3238, %v3239
    %v3270 = vcombine.low %v3240, %v3241
    %v3271 = vcombine.low %v3242, %v3243
    %v3273 = vunpack.c.l.s4 1966171168
    %v3274 = vunpack.c.0.s8 %v3273
    %v3275 = vlaneseq
    %v3276 = vshrl.u32 %v3275, 7
    %v3277 = vsub.s32 %v3274, %v3276
    %v3278 = vrot.slane %v3268, %v3277
    %v3280 = vunpack.c.l.s4 1966171168
    %v3281 = vunpack.c.0.s8 %v3280
    %v3282 = vlaneseq
    %v3283 = vshrl.u32 %v3282, 7
    %v3284 = vsub.s32 %v3281, %v3283
    %v3285 = vrot.slane %v3269, %v3284
    %v3287 = vunpack.c.l.s4 1966171168
    %v3288 = vunpack.c.0.s8 %v3287
    %v3289 = vlaneseq
    %v3290 = vshrl.u32 %v3289, 7
    %v3291 = vsub.s32 %v3288, %v3290
    %v3292 = vrot.slane %v3270, %v3291
    %v3294 = vunpack.c.l.s4 1966171168
    %v3295 = vunpack.c.0.s8 %v3294
    %v3296 = vlaneseq
    %v3297 = vshrl.u32 %v3296, 7
    %v3298 = vsub.s32 %v3295, %v3297
    %v3299 = vrot.slane %v3271, %v3298
    %v3300 = vcombine.low %v3278, %v3285
    %v3301 = vcombine.low %v3292, %v3299
    %v3303 = vunpack.c.l.s4 1966171168
    %v3304 = vunpack.c.0.s8 %v3303
    %v3305 = vlaneseq
    %v3306 = vshrl.u32 %v3305, 7
    %v3307 = vsub.s32 %v3304, %v3306
    %v3308 = vrot.slane %v3300, %v3307
    %v3310 = vunpack.c.l.s4 1966171168
    %v3311 = vunpack.c.0.s8 %v3310
    %v3312 = vlaneseq
    %v3313 = vshrl.u32 %v3312, 7
    %v3314 = vsub.s32 %v3311, %v3313
    %v3315 = vrot.slane %v3301, %v3314
    %v3316 = vcombine.low %v3308, %v3315
    %v3317 = vcombine.low %v3244, %v3245
    %v3318 = vcombine.low %v3246, %v3247
    %v3319 = vcombine.low %v3248, %v3249
    %v3320 = vcombine.low %v3250, %v3251
    %v3322 = vunpack.c.l.s4 1966171168
    %v3323 = vunpack.c.0.s8 %v3322
    %v3324 = vlaneseq
    %v3325 = vshrl.u32 %v3324, 7
    %v3326 = vsub.s32 %v3323, %v3325
    %v3327 = vrot.slane %v3317, %v3326
    %v3329 = vunpack.c.l.s4 1966171168
    %v3330 = vunpack.c.0.s8 %v3329
    %v3331 = vlaneseq
    %v3332 = vshrl.u32 %v3331, 7
    %v3333 = vsub.s32 %v3330, %v3332
    %v3334 = vrot.slane %v3318, %v3333
    %v3336 = vunpack.c.l.s4 1966171168
    %v3337 = vunpack.c.0.s8 %v3336
    %v3338 = vlaneseq
    %v3339 = vshrl.u32 %v3338, 7
    %v3340 = vsub.s32 %v3337, %v3339
    %v3341 = vrot.slane %v3319, %v3340
    %v3343 = vunpack.c.l.s4 1966171168
    %v3344 = vunpack.c.0.s8 %v3343
    %v3345 = vlaneseq
    %v3346 = vshrl.u32 %v3345, 7
    %v3347 = vsub.s32 %v3344, %v3346
    %v3348 = vrot.slane %v3320, %v3347
    %v3349 = vcombine.low %v3327, %v3334
    %v3350 = vcombine.low %v3341, %v3348
    %v3352 = vunpack.c.l.s4 1966171168
    %v3353 = vunpack.c.0.s8 %v3352
    %v3354 = vlaneseq
    %v3355 = vshrl.u32 %v3354, 7
    %v3356 = vsub.s32 %v3353, %v3355
    %v3357 = vrot.slane %v3349, %v3356
    %v3359 = vunpack.c.l.s4 1966171168
    %v3360 = vunpack.c.0.s8 %v3359
    %v3361 = vlaneseq
    %v3362 = vshrl.u32 %v3361, 7
    %v3363 = vsub.s32 %v3360, %v3362
    %v3364 = vrot.slane %v3350, %v3363
    %v3365 = vcombine.low %v3357, %v3364
    %v3366 = vunpack.i.l.s16 %v3316
    %v3367 = vunpack.i.l.s16 %v3365
    %v3368 = vunpack.i.h.s16 %v3316
    %v3369 = vunpack.i.h.s16 %v3365
    %v3370 = vld [vmem:[%s3] sm:$0xff]
    %v3371 = vld [vmem:[%s3 + $0x8] sm:$0xff]
    %v3372 = vld [vmem:[%s3 + $0x10] sm:$0xff]
    %v3373 = vld [vmem:[%s3 + $0x18] sm:$0xff]
    %v3374 = vld [vmem:[%s3 + $0x20] sm:$0xff]
    %v3375 = vld [vmem:[%s3 + $0x28] sm:$0xff]
    %v3376 = vld [vmem:[%s3 + $0x30] sm:$0xff]
    %v3377 = vld [vmem:[%s3 + $0x38] sm:$0xff]
    %v3378 = vpack.i.b16 %v3366, %v3366
    %v3379 = vpack.i.b16 %v3367, %v3367
    %v3380 = vlaneseq
    %v3381 = vshrl.u32 %v3380, 7
    %v3382 = vsub.s32 0, %v3381
    %v3383 = vrot.slane %v3378, %v3382
    %v3384 = vlaneseq
    %v3385 = vshrl.u32 %v3384, 7
    %v3386 = vsub.s32 1, %v3385
    %v3387 = vrot.slane %v3378, %v3386
    %v3388 = vlaneseq
    %v3389 = vshrl.u32 %v3388, 7
    %v3390 = vsub.s32 2, %v3389
    %v3391 = vrot.slane %v3378, %v3390
    %v3392 = vlaneseq
    %v3393 = vshrl.u32 %v3392, 7
    %v3394 = vsub.s32 3, %v3393
    %v3395 = vrot.slane %v3378, %v3394
    %v3396 = vlaneseq
    %v3397 = vshrl.u32 %v3396, 7
    %v3398 = vsub.s32 4, %v3397
    %v3399 = vrot.slane %v3378, %v3398
    %v3400 = vlaneseq
    %v3401 = vshrl.u32 %v3400, 7
    %v3402 = vsub.s32 5, %v3401
    %v3403 = vrot.slane %v3378, %v3402
    %v3404 = vlaneseq
    %v3405 = vshrl.u32 %v3404, 7
    %v3406 = vsub.s32 6, %v3405
    %v3407 = vrot.slane %v3378, %v3406
    %v3408 = vlaneseq
    %v3409 = vshrl.u32 %v3408, 7
    %v3410 = vsub.s32 7, %v3409
    %v3411 = vrot.slane %v3378, %v3410
    %v3412 = vlaneseq
    %v3413 = vshrl.u32 %v3412, 7
    %v3414 = vsub.s32 0, %v3413
    %v3415 = vrot.slane %v3379, %v3414
    %v3416 = vlaneseq
    %v3417 = vshrl.u32 %v3416, 7
    %v3418 = vsub.s32 1, %v3417
    %v3419 = vrot.slane %v3379, %v3418
    %v3420 = vlaneseq
    %v3421 = vshrl.u32 %v3420, 7
    %v3422 = vsub.s32 2, %v3421
    %v3423 = vrot.slane %v3379, %v3422
    %v3424 = vlaneseq
    %v3425 = vshrl.u32 %v3424, 7
    %v3426 = vsub.s32 3, %v3425
    %v3427 = vrot.slane %v3379, %v3426
    %v3428 = vlaneseq
    %v3429 = vshrl.u32 %v3428, 7
    %v3430 = vsub.s32 4, %v3429
    %v3431 = vrot.slane %v3379, %v3430
    %v3432 = vlaneseq
    %v3433 = vshrl.u32 %v3432, 7
    %v3434 = vsub.s32 5, %v3433
    %v3435 = vrot.slane %v3379, %v3434
    %v3436 = vlaneseq
    %v3437 = vshrl.u32 %v3436, 7
    %v3438 = vsub.s32 6, %v3437
    %v3439 = vrot.slane %v3379, %v3438
    %v3440 = vlaneseq
    %v3441 = vshrl.u32 %v3440, 7
    %v3442 = vsub.s32 7, %v3441
    %v3443 = vrot.slane %v3379, %v3442
    %v3464 = vcombine.high %v3370, %v3370
    %v3466 = vunpack.c.l.s4 1983009808
    %v3467 = vunpack.c.0.s8 %v3466
    %v3468 = vlaneseq
    %v3469 = vshrl.u32 %v3468, 7
    %v3470 = vsub.s32 %v3467, %v3469
    %v3471 = vrot.slane %v3370, %v3470
    %v3473 = vunpack.c.l.s4 1983009808
    %v3474 = vunpack.c.0.s8 %v3473
    %v3475 = vlaneseq
    %v3476 = vshrl.u32 %v3475, 7
    %v3477 = vsub.s32 %v3474, %v3476
    %v3478 = vrot.slane %v3464, %v3477
    %v3479 = vcombine.high %v3471, %v3471
    %v3480 = vcombine.high %v3478, %v3478
    %v3481 = vcombine.high %v3371, %v3371
    %v3483 = vunpack.c.l.s4 1983009808
    %v3484 = vunpack.c.0.s8 %v3483
    %v3485 = vlaneseq
    %v3486 = vshrl.u32 %v3485, 7
    %v3487 = vsub.s32 %v3484, %v3486
    %v3488 = vrot.slane %v3371, %v3487
    %v3490 = vunpack.c.l.s4 1983009808
    %v3491 = vunpack.c.0.s8 %v3490
    %v3492 = vlaneseq
    %v3493 = vshrl.u32 %v3492, 7
    %v3494 = vsub.s32 %v3491, %v3493
    %v3495 = vrot.slane %v3481, %v3494
    %v3496 = vcombine.high %v3488, %v3488
    %v3497 = vcombine.high %v3495, %v3495
    %v3498 = vcombine.high %v3372, %v3372
    %v3500 = vunpack.c.l.s4 1983009808
    %v3501 = vunpack.c.0.s8 %v3500
    %v3502 = vlaneseq
    %v3503 = vshrl.u32 %v3502, 7
    %v3504 = vsub.s32 %v3501, %v3503
    %v3505 = vrot.slane %v3372, %v3504
    %v3507 = vunpack.c.l.s4 1983009808
    %v3508 = vunpack.c.0.s8 %v3507
    %v3509 = vlaneseq
    %v3510 = vshrl.u32 %v3509, 7
    %v3511 = vsub.s32 %v3508, %v3510
    %v3512 = vrot.slane %v3498, %v3511
    %v3513 = vcombine.high %v3505, %v3505
    %v3514 = vcombine.high %v3512, %v3512
    %v3515 = vcombine.high %v3373, %v3373
    %v3517 = vunpack.c.l.s4 1983009808
    %v3518 = vunpack.c.0.s8 %v3517
    %v3519 = vlaneseq
    %v3520 = vshrl.u32 %v3519, 7
    %v3521 = vsub.s32 %v3518, %v3520
    %v3522 = vrot.slane %v3373, %v3521
    %v3524 = vunpack.c.l.s4 1983009808
    %v3525 = vunpack.c.0.s8 %v3524
    %v3526 = vlaneseq
    %v3527 = vshrl.u32 %v3526, 7
    %v3528 = vsub.s32 %v3525, %v3527
    %v3529 = vrot.slane %v3515, %v3528
    %v3530 = vcombine.high %v3522, %v3522
    %v3531 = vcombine.high %v3529, %v3529
    %3548 = vmatprep.subr.bf16.mxu0 0
    %3549 = vmatpush1.bf16.xpose.msra.mxu0 0
    %3550 = vmatprep.subr.bf16.mxu0 0
    %3551 = vmatpush1.bf16.xpose.msra.mxu0 0
    %3552 = vmatprep.subr.bf16.mxu0 0
    %3553 = vmatpush1.bf16.xpose.msra.mxu0 0
    %3554 = vmatprep.subr.bf16.mxu0 0
    %3555 = vmatpush1.bf16.xpose.msra.mxu0 0
    %3556 = vmatprep.subr.bf16.mxu0 0
    %3557 = vmatpush1.bf16.xpose.msra.mxu0 0
    %3558 = vmatprep.subr.bf16.mxu0 0
    %3559 = vmatpush1.bf16.xpose.msra.mxu0 0
    %3560 = vmatprep.subr.bf16.mxu0 0
    %3561 = vmatpush1.bf16.xpose.msra.mxu0 0
    %3562 = vmatprep.subr.bf16.mxu0 %v3479
    %3563 = vmatpush1.bf16.xpose.msra.mxu0 %v3471
    %3564 = vmatprep.subr.bf16.mxu0 0
    %3565 = vmatpush2.bf16.xpose.msra.mxu0 0
    %3566 = vmatprep.subr.bf16.mxu0 0
    %3567 = vmatpush2.bf16.xpose.msra.mxu0 0
    %3568 = vmatprep.subr.bf16.mxu0 0
    %3569 = vmatpush2.bf16.xpose.msra.mxu0 0
    %3570 = vmatprep.subr.bf16.mxu0 0
    %3571 = vmatpush2.bf16.xpose.msra.mxu0 0
    %3572 = vmatprep.subr.bf16.mxu0 0
    %3573 = vmatpush2.bf16.xpose.msra.mxu0 0
    %3574 = vmatprep.subr.bf16.mxu0 0
    %3575 = vmatpush2.bf16.xpose.msra.mxu0 0
    %3576 = vmatprep.subr.bf16.mxu0 0
    %3577 = vmatpush2.bf16.xpose.msra.mxu0 0
    %3578 = vmatprep.subr.bf16.mxu0 0
    %3579 = vmatpush2.bf16.xpose.msra.mxu0 0
    %3580 = vmatprep.mubr.bf16.mxu0 %v3387
    %3581 = vmatmul.mubr.bf16.gmra.mxu0 %v3383
    %v3582 = vpop.f32.mrf.mxu0
    %v3583 = vadd.f32 0.0, %v3582
    %v3584 = vpop.f32.mrf.mxu0
    %v3585 = vpop.f32.mrf.mxu0
    %v3586 = vpop.f32.mrf.mxu0
    %3587 = vdwg.mxu0
    %3588 = vmatprep.subr.bf16.mxu0 0
    %3589 = vmatpush1.bf16.xpose.msra.mxu0 0
    %3590 = vmatprep.subr.bf16.mxu0 0
    %3591 = vmatpush1.bf16.xpose.msra.mxu0 0
    %3592 = vmatprep.subr.bf16.mxu0 0
    %3593 = vmatpush1.bf16.xpose.msra.mxu0 0
    %3594 = vmatprep.subr.bf16.mxu0 0
    %3595 = vmatpush1.bf16.xpose.msra.mxu0 0
    %3596 = vmatprep.subr.bf16.mxu0 0
    %3597 = vmatpush1.bf16.xpose.msra.mxu0 0
    %3598 = vmatprep.subr.bf16.mxu0 0
    %3599 = vmatpush1.bf16.xpose.msra.mxu0 0
    %3600 = vmatprep.subr.bf16.mxu0 0
    %3601 = vmatpush1.bf16.xpose.msra.mxu0 0
    %3602 = vmatprep.subr.bf16.mxu0 %v3480
    %3603 = vmatpush1.bf16.xpose.msra.mxu0 %v3478
    %3604 = vmatprep.subr.bf16.mxu0 0
    %3605 = vmatpush2.bf16.xpose.msra.mxu0 0
    %3606 = vmatprep.subr.bf16.mxu0 0
    %3607 = vmatpush2.bf16.xpose.msra.mxu0 0
    %3608 = vmatprep.subr.bf16.mxu0 0
    %3609 = vmatpush2.bf16.xpose.msra.mxu0 0
    %3610 = vmatprep.subr.bf16.mxu0 0
    %3611 = vmatpush2.bf16.xpose.msra.mxu0 0
    %3612 = vmatprep.subr.bf16.mxu0 0
    %3613 = vmatpush2.bf16.xpose.msra.mxu0 0
    %3614 = vmatprep.subr.bf16.mxu0 0
    %3615 = vmatpush2.bf16.xpose.msra.mxu0 0
    %3616 = vmatprep.subr.bf16.mxu0 0
    %3617 = vmatpush2.bf16.xpose.msra.mxu0 0
    %3618 = vmatprep.subr.bf16.mxu0 0
    %3619 = vmatpush2.bf16.xpose.msra.mxu0 0
    %3620 = vmatprep.mubr.bf16.mxu0 %v3395
    %3621 = vmatmul.mubr.bf16.gmra.mxu0 %v3391
    %v3622 = vpop.f32.mrf.mxu0
    %v3623 = vadd.f32 %v3583, %v3622
    %v3624 = vpop.f32.mrf.mxu0
    %v3625 = vpop.f32.mrf.mxu0
    %v3626 = vpop.f32.mrf.mxu0
    %3627 = vdwg.mxu0
    %3628 = vmatprep.subr.bf16.mxu0 0
    %3629 = vmatpush1.bf16.xpose.msra.mxu0 0
    %3630 = vmatprep.subr.bf16.mxu0 0
    %3631 = vmatpush1.bf16.xpose.msra.mxu0 0
    %3632 = vmatprep.subr.bf16.mxu0 0
    %3633 = vmatpush1.bf16.xpose.msra.mxu0 0
    %3634 = vmatprep.subr.bf16.mxu0 0
    %3635 = vmatpush1.bf16.xpose.msra.mxu0 0
    %3636 = vmatprep.subr.bf16.mxu0 0
    %3637 = vmatpush1.bf16.xpose.msra.mxu0 0
    %3638 = vmatprep.subr.bf16.mxu0 0
    %3639 = vmatpush1.bf16.xpose.msra.mxu0 0
    %3640 = vmatprep.subr.bf16.mxu0 0
    %3641 = vmatpush1.bf16.xpose.msra.mxu0 0
    %3642 = vmatprep.subr.bf16.mxu0 %v3496
    %3643 = vmatpush1.bf16.xpose.msra.mxu0 %v3488
    %3644 = vmatprep.subr.bf16.mxu0 0
    %3645 = vmatpush2.bf16.xpose.msra.mxu0 0
    %3646 = vmatprep.subr.bf16.mxu0 0
    %3647 = vmatpush2.bf16.xpose.msra.mxu0 0
    %3648 = vmatprep.subr.bf16.mxu0 0
    %3649 = vmatpush2.bf16.xpose.msra.mxu0 0
    %3650 = vmatprep.subr.bf16.mxu0 0
    %3651 = vmatpush2.bf16.xpose.msra.mxu0 0
    %3652 = vmatprep.subr.bf16.mxu0 0
    %3653 = vmatpush2.bf16.xpose.msra.mxu0 0
    %3654 = vmatprep.subr.bf16.mxu0 0
    %3655 = vmatpush2.bf16.xpose.msra.mxu0 0
    %3656 = vmatprep.subr.bf16.mxu0 0
    %3657 = vmatpush2.bf16.xpose.msra.mxu0 0
    %3658 = vmatprep.subr.bf16.mxu0 0
    %3659 = vmatpush2.bf16.xpose.msra.mxu0 0
    %3660 = vmatprep.mubr.bf16.mxu0 %v3403
    %3661 = vmatmul.mubr.bf16.gmra.mxu0 %v3399
    %v3662 = vpop.f32.mrf.mxu0
    %v3663 = vadd.f32 %v3623, %v3662
    %v3664 = vpop.f32.mrf.mxu0
    %v3665 = vpop.f32.mrf.mxu0
    %v3666 = vpop.f32.mrf.mxu0
    %3667 = vdwg.mxu0
    %3668 = vmatprep.subr.bf16.mxu0 0
    %3669 = vmatpush1.bf16.xpose.msra.mxu0 0
    %3670 = vmatprep.subr.bf16.mxu0 0
    %3671 = vmatpush1.bf16.xpose.msra.mxu0 0
    %3672 = vmatprep.subr.bf16.mxu0 0
    %3673 = vmatpush1.bf16.xpose.msra.mxu0 0
    %3674 = vmatprep.subr.bf16.mxu0 0
    %3675 = vmatpush1.bf16.xpose.msra.mxu0 0
    %3676 = vmatprep.subr.bf16.mxu0 0
    %3677 = vmatpush1.bf16.xpose.msra.mxu0 0
    %3678 = vmatprep.subr.bf16.mxu0 0
    %3679 = vmatpush1.bf16.xpose.msra.mxu0 0
    %3680 = vmatprep.subr.bf16.mxu0 0
    %3681 = vmatpush1.bf16.xpose.msra.mxu0 0
    %3682 = vmatprep.subr.bf16.mxu0 %v3497
    %3683 = vmatpush1.bf16.xpose.msra.mxu0 %v3495
    %3684 = vmatprep.subr.bf16.mxu0 0
    %3685 = vmatpush2.bf16.xpose.msra.mxu0 0
    %3686 = vmatprep.subr.bf16.mxu0 0
    %3687 = vmatpush2.bf16.xpose.msra.mxu0 0
    %3688 = vmatprep.subr.bf16.mxu0 0
    %3689 = vmatpush2.bf16.xpose.msra.mxu0 0
    %3690 = vmatprep.subr.bf16.mxu0 0
    %3691 = vmatpush2.bf16.xpose.msra.mxu0 0
    %3692 = vmatprep.subr.bf16.mxu0 0
    %3693 = vmatpush2.bf16.xpose.msra.mxu0 0
    %3694 = vmatprep.subr.bf16.mxu0 0
    %3695 = vmatpush2.bf16.xpose.msra.mxu0 0
    %3696 = vmatprep.subr.bf16.mxu0 0
    %3697 = vmatpush2.bf16.xpose.msra.mxu0 0
    %3698 = vmatprep.subr.bf16.mxu0 0
    %3699 = vmatpush2.bf16.xpose.msra.mxu0 0
    %3700 = vmatprep.mubr.bf16.mxu0 %v3411
    %3701 = vmatmul.mubr.bf16.gmra.mxu0 %v3407
    %v3702 = vpop.f32.mrf.mxu0
    %v3703 = vadd.f32 %v3663, %v3702
    %v3704 = vpop.f32.mrf.mxu0
    %v3705 = vpop.f32.mrf.mxu0
    %v3706 = vpop.f32.mrf.mxu0
    %3707 = vdwg.mxu0
    %3708 = vmatprep.subr.bf16.mxu0 0
    %3709 = vmatpush1.bf16.xpose.msra.mxu0 0
    %3710 = vmatprep.subr.bf16.mxu0 0
    %3711 = vmatpush1.bf16.xpose.msra.mxu0 0
    %3712 = vmatprep.subr.bf16.mxu0 0
    %3713 = vmatpush1.bf16.xpose.msra.mxu0 0
    %3714 = vmatprep.subr.bf16.mxu0 0
    %3715 = vmatpush1.bf16.xpose.msra.mxu0 0
    %3716 = vmatprep.subr.bf16.mxu0 0
    %3717 = vmatpush1.bf16.xpose.msra.mxu0 0
    %3718 = vmatprep.subr.bf16.mxu0 0
    %3719 = vmatpush1.bf16.xpose.msra.mxu0 0
    %3720 = vmatprep.subr.bf16.mxu0 0
    %3721 = vmatpush1.bf16.xpose.msra.mxu0 0
    %3722 = vmatprep.subr.bf16.mxu0 %v3513
    %3723 = vmatpush1.bf16.xpose.msra.mxu0 %v3505
    %3724 = vmatprep.subr.bf16.mxu0 0
    %3725 = vmatpush2.bf16.xpose.msra.mxu0 0
    %3726 = vmatprep.subr.bf16.mxu0 0
    %3727 = vmatpush2.bf16.xpose.msra.mxu0 0
    %3728 = vmatprep.subr.bf16.mxu0 0
    %3729 = vmatpush2.bf16.xpose.msra.mxu0 0
    %3730 = vmatprep.subr.bf16.mxu0 0
    %3731 = vmatpush2.bf16.xpose.msra.mxu0 0
    %3732 = vmatprep.subr.bf16.mxu0 0
    %3733 = vmatpush2.bf16.xpose.msra.mxu0 0
    %3734 = vmatprep.subr.bf16.mxu0 0
    %3735 = vmatpush2.bf16.xpose.msra.mxu0 0
    %3736 = vmatprep.subr.bf16.mxu0 0
    %3737 = vmatpush2.bf16.xpose.msra.mxu0 0
    %3738 = vmatprep.subr.bf16.mxu0 0
    %3739 = vmatpush2.bf16.xpose.msra.mxu0 0
    %3740 = vmatprep.mubr.bf16.mxu0 %v3419
    %3741 = vmatmul.mubr.bf16.gmra.mxu0 %v3415
    %v3742 = vpop.f32.mrf.mxu0
    %v3743 = vadd.f32 %v3703, %v3742
    %v3744 = vpop.f32.mrf.mxu0
    %v3745 = vpop.f32.mrf.mxu0
    %v3746 = vpop.f32.mrf.mxu0
    %3747 = vdwg.mxu0
    %3748 = vmatprep.subr.bf16.mxu0 0
    %3749 = vmatpush1.bf16.xpose.msra.mxu0 0
    %3750 = vmatprep.subr.bf16.mxu0 0
    %3751 = vmatpush1.bf16.xpose.msra.mxu0 0
    %3752 = vmatprep.subr.bf16.mxu0 0
    %3753 = vmatpush1.bf16.xpose.msra.mxu0 0
    %3754 = vmatprep.subr.bf16.mxu0 0
    %3755 = vmatpush1.bf16.xpose.msra.mxu0 0
    %3756 = vmatprep.subr.bf16.mxu0 0
    %3757 = vmatpush1.bf16.xpose.msra.mxu0 0
    %3758 = vmatprep.subr.bf16.mxu0 0
    %3759 = vmatpush1.bf16.xpose.msra.mxu0 0
    %3760 = vmatprep.subr.bf16.mxu0 0
    %3761 = vmatpush1.bf16.xpose.msra.mxu0 0
    %3762 = vmatprep.subr.bf16.mxu0 %v3514
    %3763 = vmatpush1.bf16.xpose.msra.mxu0 %v3512
    %3764 = vmatprep.subr.bf16.mxu0 0
    %3765 = vmatpush2.bf16.xpose.msra.mxu0 0
    %3766 = vmatprep.subr.bf16.mxu0 0
    %3767 = vmatpush2.bf16.xpose.msra.mxu0 0
    %3768 = vmatprep.subr.bf16.mxu0 0
    %3769 = vmatpush2.bf16.xpose.msra.mxu0 0
    %3770 = vmatprep.subr.bf16.mxu0 0
    %3771 = vmatpush2.bf16.xpose.msra.mxu0 0
    %3772 = vmatprep.subr.bf16.mxu0 0
    %3773 = vmatpush2.bf16.xpose.msra.mxu0 0
    %3774 = vmatprep.subr.bf16.mxu0 0
    %3775 = vmatpush2.bf16.xpose.msra.mxu0 0
    %3776 = vmatprep.subr.bf16.mxu0 0
    %3777 = vmatpush2.bf16.xpose.msra.mxu0 0
    %3778 = vmatprep.subr.bf16.mxu0 0
    %3779 = vmatpush2.bf16.xpose.msra.mxu0 0
    %3780 = vmatprep.mubr.bf16.mxu0 %v3427
    %3781 = vmatmul.mubr.bf16.gmra.mxu0 %v3423
    %v3782 = vpop.f32.mrf.mxu0
    %v3783 = vadd.f32 %v3743, %v3782
    %v3784 = vpop.f32.mrf.mxu0
    %v3785 = vpop.f32.mrf.mxu0
    %v3786 = vpop.f32.mrf.mxu0
    %3787 = vdwg.mxu0
    %3788 = vmatprep.subr.bf16.mxu0 0
    %3789 = vmatpush1.bf16.xpose.msra.mxu0 0
    %3790 = vmatprep.subr.bf16.mxu0 0
    %3791 = vmatpush1.bf16.xpose.msra.mxu0 0
    %3792 = vmatprep.subr.bf16.mxu0 0
    %3793 = vmatpush1.bf16.xpose.msra.mxu0 0
    %3794 = vmatprep.subr.bf16.mxu0 0
    %3795 = vmatpush1.bf16.xpose.msra.mxu0 0
    %3796 = vmatprep.subr.bf16.mxu0 0
    %3797 = vmatpush1.bf16.xpose.msra.mxu0 0
    %3798 = vmatprep.subr.bf16.mxu0 0
    %3799 = vmatpush1.bf16.xpose.msra.mxu0 0
    %3800 = vmatprep.subr.bf16.mxu0 0
    %3801 = vmatpush1.bf16.xpose.msra.mxu0 0
    %3802 = vmatprep.subr.bf16.mxu0 %v3530
    %3803 = vmatpush1.bf16.xpose.msra.mxu0 %v3522
    %3804 = vmatprep.subr.bf16.mxu0 0
    %3805 = vmatpush2.bf16.xpose.msra.mxu0 0
    %3806 = vmatprep.subr.bf16.mxu0 0
    %3807 = vmatpush2.bf16.xpose.msra.mxu0 0
    %3808 = vmatprep.subr.bf16.mxu0 0
    %3809 = vmatpush2.bf16.xpose.msra.mxu0 0
    %3810 = vmatprep.subr.bf16.mxu0 0
    %3811 = vmatpush2.bf16.xpose.msra.mxu0 0
    %3812 = vmatprep.subr.bf16.mxu0 0
    %3813 = vmatpush2.bf16.xpose.msra.mxu0 0
    %3814 = vmatprep.subr.bf16.mxu0 0
    %3815 = vmatpush2.bf16.xpose.msra.mxu0 0
    %3816 = vmatprep.subr.bf16.mxu0 0
    %3817 = vmatpush2.bf16.xpose.msra.mxu0 0
    %3818 = vmatprep.subr.bf16.mxu0 0
    %3819 = vmatpush2.bf16.xpose.msra.mxu0 0
    %3820 = vmatprep.mubr.bf16.mxu0 %v3435
    %3821 = vmatmul.mubr.bf16.gmra.mxu0 %v3431
    %v3822 = vpop.f32.mrf.mxu0
    %v3823 = vadd.f32 %v3783, %v3822
    %v3824 = vpop.f32.mrf.mxu0
    %v3825 = vpop.f32.mrf.mxu0
    %v3826 = vpop.f32.mrf.mxu0
    %3827 = vdwg.mxu0
    %3828 = vmatprep.subr.bf16.mxu0 0
    %3829 = vmatpush1.bf16.xpose.msra.mxu0 0
    %3830 = vmatprep.subr.bf16.mxu0 0
    %3831 = vmatpush1.bf16.xpose.msra.mxu0 0
    %3832 = vmatprep.subr.bf16.mxu0 0
    %3833 = vmatpush1.bf16.xpose.msra.mxu0 0
    %3834 = vmatprep.subr.bf16.mxu0 0
    %3835 = vmatpush1.bf16.xpose.msra.mxu0 0
    %3836 = vmatprep.subr.bf16.mxu0 0
    %3837 = vmatpush1.bf16.xpose.msra.mxu0 0
    %3838 = vmatprep.subr.bf16.mxu0 0
    %3839 = vmatpush1.bf16.xpose.msra.mxu0 0
    %3840 = vmatprep.subr.bf16.mxu0 0
    %3841 = vmatpush1.bf16.xpose.msra.mxu0 0
    %3842 = vmatprep.subr.bf16.mxu0 %v3531
    %3843 = vmatpush1.bf16.xpose.msra.mxu0 %v3529
    %3844 = vmatprep.subr.bf16.mxu0 0
    %3845 = vmatpush2.bf16.xpose.msra.mxu0 0
    %3846 = vmatprep.subr.bf16.mxu0 0
    %3847 = vmatpush2.bf16.xpose.msra.mxu0 0
    %3848 = vmatprep.subr.bf16.mxu0 0
    %3849 = vmatpush2.bf16.xpose.msra.mxu0 0
    %3850 = vmatprep.subr.bf16.mxu0 0
    %3851 = vmatpush2.bf16.xpose.msra.mxu0 0
    %3852 = vmatprep.subr.bf16.mxu0 0
    %3853 = vmatpush2.bf16.xpose.msra.mxu0 0
    %3854 = vmatprep.subr.bf16.mxu0 0
    %3855 = vmatpush2.bf16.xpose.msra.mxu0 0
    %3856 = vmatprep.subr.bf16.mxu0 0
    %3857 = vmatpush2.bf16.xpose.msra.mxu0 0
    %3858 = vmatprep.subr.bf16.mxu0 0
    %3859 = vmatpush2.bf16.xpose.msra.mxu0 0
    %3860 = vmatprep.mubr.bf16.mxu0 %v3443
    %3861 = vmatmul.mubr.bf16.gmra.mxu0 %v3439
    %v3862 = vpop.f32.mrf.mxu0
    %v3863 = vadd.f32 %v3823, %v3862
    %v3864 = vpop.f32.mrf.mxu0
    %v3865 = vpop.f32.mrf.mxu0
    %v3866 = vpop.f32.mrf.mxu0
    %3867 = vdwg.mxu0
    %v3868 = vpack.i.b16 %v3368, %v3368
    %v3869 = vpack.i.b16 %v3369, %v3369
    %v3870 = vlaneseq
    %v3871 = vshrl.u32 %v3870, 7
    %v3872 = vsub.s32 0, %v3871
    %v3873 = vrot.slane %v3868, %v3872
    %v3874 = vlaneseq
    %v3875 = vshrl.u32 %v3874, 7
    %v3876 = vsub.s32 1, %v3875
    %v3877 = vrot.slane %v3868, %v3876
    %v3878 = vlaneseq
    %v3879 = vshrl.u32 %v3878, 7
    %v3880 = vsub.s32 2, %v3879
    %v3881 = vrot.slane %v3868, %v3880
    %v3882 = vlaneseq
    %v3883 = vshrl.u32 %v3882, 7
    %v3884 = vsub.s32 3, %v3883
    %v3885 = vrot.slane %v3868, %v3884
    %v3886 = vlaneseq
    %v3887 = vshrl.u32 %v3886, 7
    %v3888 = vsub.s32 4, %v3887
    %v3889 = vrot.slane %v3868, %v3888
    %v3890 = vlaneseq
    %v3891 = vshrl.u32 %v3890, 7
    %v3892 = vsub.s32 5, %v3891
    %v3893 = vrot.slane %v3868, %v3892
    %v3894 = vlaneseq
    %v3895 = vshrl.u32 %v3894, 7
    %v3896 = vsub.s32 6, %v3895
    %v3897 = vrot.slane %v3868, %v3896
    %v3898 = vlaneseq
    %v3899 = vshrl.u32 %v3898, 7
    %v3900 = vsub.s32 7, %v3899
    %v3901 = vrot.slane %v3868, %v3900
    %v3902 = vlaneseq
    %v3903 = vshrl.u32 %v3902, 7
    %v3904 = vsub.s32 0, %v3903
    %v3905 = vrot.slane %v3869, %v3904
    %v3906 = vlaneseq
    %v3907 = vshrl.u32 %v3906, 7
    %v3908 = vsub.s32 1, %v3907
    %v3909 = vrot.slane %v3869, %v3908
    %v3910 = vlaneseq
    %v3911 = vshrl.u32 %v3910, 7
    %v3912 = vsub.s32 2, %v3911
    %v3913 = vrot.slane %v3869, %v3912
    %v3914 = vlaneseq
    %v3915 = vshrl.u32 %v3914, 7
    %v3916 = vsub.s32 3, %v3915
    %v3917 = vrot.slane %v3869, %v3916
    %v3918 = vlaneseq
    %v3919 = vshrl.u32 %v3918, 7
    %v3920 = vsub.s32 4, %v3919
    %v3921 = vrot.slane %v3869, %v3920
    %v3922 = vlaneseq
    %v3923 = vshrl.u32 %v3922, 7
    %v3924 = vsub.s32 5, %v3923
    %v3925 = vrot.slane %v3869, %v3924
    %v3926 = vlaneseq
    %v3927 = vshrl.u32 %v3926, 7
    %v3928 = vsub.s32 6, %v3927
    %v3929 = vrot.slane %v3869, %v3928
    %v3930 = vlaneseq
    %v3931 = vshrl.u32 %v3930, 7
    %v3932 = vsub.s32 7, %v3931
    %v3933 = vrot.slane %v3869, %v3932
    %v3954 = vcombine.high %v3374, %v3374
    %v3956 = vunpack.c.l.s4 1983009808
    %v3957 = vunpack.c.0.s8 %v3956
    %v3958 = vlaneseq
    %v3959 = vshrl.u32 %v3958, 7
    %v3960 = vsub.s32 %v3957, %v3959
    %v3961 = vrot.slane %v3374, %v3960
    %v3963 = vunpack.c.l.s4 1983009808
    %v3964 = vunpack.c.0.s8 %v3963
    %v3965 = vlaneseq
    %v3966 = vshrl.u32 %v3965, 7
    %v3967 = vsub.s32 %v3964, %v3966
    %v3968 = vrot.slane %v3954, %v3967
    %v3969 = vcombine.high %v3961, %v3961
    %v3970 = vcombine.high %v3968, %v3968
    %v3971 = vcombine.high %v3375, %v3375
    %v3973 = vunpack.c.l.s4 1983009808
    %v3974 = vunpack.c.0.s8 %v3973
    %v3975 = vlaneseq
    %v3976 = vshrl.u32 %v3975, 7
    %v3977 = vsub.s32 %v3974, %v3976
    %v3978 = vrot.slane %v3375, %v3977
    %v3980 = vunpack.c.l.s4 1983009808
    %v3981 = vunpack.c.0.s8 %v3980
    %v3982 = vlaneseq
    %v3983 = vshrl.u32 %v3982, 7
    %v3984 = vsub.s32 %v3981, %v3983
    %v3985 = vrot.slane %v3971, %v3984
    %v3986 = vcombine.high %v3978, %v3978
    %v3987 = vcombine.high %v3985, %v3985
    %v3988 = vcombine.high %v3376, %v3376
    %v3990 = vunpack.c.l.s4 1983009808
    %v3991 = vunpack.c.0.s8 %v3990
    %v3992 = vlaneseq
    %v3993 = vshrl.u32 %v3992, 7
    %v3994 = vsub.s32 %v3991, %v3993
    %v3995 = vrot.slane %v3376, %v3994
    %v3997 = vunpack.c.l.s4 1983009808
    %v3998 = vunpack.c.0.s8 %v3997
    %v3999 = vlaneseq
    %v4000 = vshrl.u32 %v3999, 7
    %v4001 = vsub.s32 %v3998, %v4000
    %v4002 = vrot.slane %v3988, %v4001
    %v4003 = vcombine.high %v3995, %v3995
    %v4004 = vcombine.high %v4002, %v4002
    %v4005 = vcombine.high %v3377, %v3377
    %v4007 = vunpack.c.l.s4 1983009808
    %v4008 = vunpack.c.0.s8 %v4007
    %v4009 = vlaneseq
    %v4010 = vshrl.u32 %v4009, 7
    %v4011 = vsub.s32 %v4008, %v4010
    %v4012 = vrot.slane %v3377, %v4011
    %v4014 = vunpack.c.l.s4 1983009808
    %v4015 = vunpack.c.0.s8 %v4014
    %v4016 = vlaneseq
    %v4017 = vshrl.u32 %v4016, 7
    %v4018 = vsub.s32 %v4015, %v4017
    %v4019 = vrot.slane %v4005, %v4018
    %v4020 = vcombine.high %v4012, %v4012
    %v4021 = vcombine.high %v4019, %v4019
    %4038 = vmatprep.subr.bf16.mxu0 0
    %4039 = vmatpush1.bf16.xpose.msra.mxu0 0
    %4040 = vmatprep.subr.bf16.mxu0 0
    %4041 = vmatpush1.bf16.xpose.msra.mxu0 0
    %4042 = vmatprep.subr.bf16.mxu0 0
    %4043 = vmatpush1.bf16.xpose.msra.mxu0 0
    %4044 = vmatprep.subr.bf16.mxu0 0
    %4045 = vmatpush1.bf16.xpose.msra.mxu0 0
    %4046 = vmatprep.subr.bf16.mxu0 0
    %4047 = vmatpush1.bf16.xpose.msra.mxu0 0
    %4048 = vmatprep.subr.bf16.mxu0 0
    %4049 = vmatpush1.bf16.xpose.msra.mxu0 0
    %4050 = vmatprep.subr.bf16.mxu0 0
    %4051 = vmatpush1.bf16.xpose.msra.mxu0 0
    %4052 = vmatprep.subr.bf16.mxu0 %v3969
    %4053 = vmatpush1.bf16.xpose.msra.mxu0 %v3961
    %4054 = vmatprep.subr.bf16.mxu0 0
    %4055 = vmatpush2.bf16.xpose.msra.mxu0 0
    %4056 = vmatprep.subr.bf16.mxu0 0
    %4057 = vmatpush2.bf16.xpose.msra.mxu0 0
    %4058 = vmatprep.subr.bf16.mxu0 0
    %4059 = vmatpush2.bf16.xpose.msra.mxu0 0
    %4060 = vmatprep.subr.bf16.mxu0 0
    %4061 = vmatpush2.bf16.xpose.msra.mxu0 0
    %4062 = vmatprep.subr.bf16.mxu0 0
    %4063 = vmatpush2.bf16.xpose.msra.mxu0 0
    %4064 = vmatprep.subr.bf16.mxu0 0
    %4065 = vmatpush2.bf16.xpose.msra.mxu0 0
    %4066 = vmatprep.subr.bf16.mxu0 0
    %4067 = vmatpush2.bf16.xpose.msra.mxu0 0
    %4068 = vmatprep.subr.bf16.mxu0 0
    %4069 = vmatpush2.bf16.xpose.msra.mxu0 0
    %4070 = vmatprep.mubr.bf16.mxu0 %v3877
    %4071 = vmatmul.mubr.bf16.gmra.mxu0 %v3873
    %v4072 = vpop.f32.mrf.mxu0
    %v4073 = vadd.f32 0.0, %v4072
    %v4074 = vpop.f32.mrf.mxu0
    %v4075 = vpop.f32.mrf.mxu0
    %v4076 = vpop.f32.mrf.mxu0
    %4077 = vdwg.mxu0
    %4078 = vmatprep.subr.bf16.mxu0 0
    %4079 = vmatpush1.bf16.xpose.msra.mxu0 0
    %4080 = vmatprep.subr.bf16.mxu0 0
    %4081 = vmatpush1.bf16.xpose.msra.mxu0 0
    %4082 = vmatprep.subr.bf16.mxu0 0
    %4083 = vmatpush1.bf16.xpose.msra.mxu0 0
    %4084 = vmatprep.subr.bf16.mxu0 0
    %4085 = vmatpush1.bf16.xpose.msra.mxu0 0
    %4086 = vmatprep.subr.bf16.mxu0 0
    %4087 = vmatpush1.bf16.xpose.msra.mxu0 0
    %4088 = vmatprep.subr.bf16.mxu0 0
    %4089 = vmatpush1.bf16.xpose.msra.mxu0 0
    %4090 = vmatprep.subr.bf16.mxu0 0
    %4091 = vmatpush1.bf16.xpose.msra.mxu0 0
    %4092 = vmatprep.subr.bf16.mxu0 %v3970
    %4093 = vmatpush1.bf16.xpose.msra.mxu0 %v3968
    %4094 = vmatprep.subr.bf16.mxu0 0
    %4095 = vmatpush2.bf16.xpose.msra.mxu0 0
    %4096 = vmatprep.subr.bf16.mxu0 0
    %4097 = vmatpush2.bf16.xpose.msra.mxu0 0
    %4098 = vmatprep.subr.bf16.mxu0 0
    %4099 = vmatpush2.bf16.xpose.msra.mxu0 0
    %4100 = vmatprep.subr.bf16.mxu0 0
    %4101 = vmatpush2.bf16.xpose.msra.mxu0 0
    %4102 = vmatprep.subr.bf16.mxu0 0
    %4103 = vmatpush2.bf16.xpose.msra.mxu0 0
    %4104 = vmatprep.subr.bf16.mxu0 0
    %4105 = vmatpush2.bf16.xpose.msra.mxu0 0
    %4106 = vmatprep.subr.bf16.mxu0 0
    %4107 = vmatpush2.bf16.xpose.msra.mxu0 0
    %4108 = vmatprep.subr.bf16.mxu0 0
    %4109 = vmatpush2.bf16.xpose.msra.mxu0 0
    %4110 = vmatprep.mubr.bf16.mxu0 %v3885
    %4111 = vmatmul.mubr.bf16.gmra.mxu0 %v3881
    %v4112 = vpop.f32.mrf.mxu0
    %v4113 = vadd.f32 %v4073, %v4112
    %v4114 = vpop.f32.mrf.mxu0
    %v4115 = vpop.f32.mrf.mxu0
    %v4116 = vpop.f32.mrf.mxu0
    %4117 = vdwg.mxu0
    %4118 = vmatprep.subr.bf16.mxu0 0
    %4119 = vmatpush1.bf16.xpose.msra.mxu0 0
    %4120 = vmatprep.subr.bf16.mxu0 0
    %4121 = vmatpush1.bf16.xpose.msra.mxu0 0
    %4122 = vmatprep.subr.bf16.mxu0 0
    %4123 = vmatpush1.bf16.xpose.msra.mxu0 0
    %4124 = vmatprep.subr.bf16.mxu0 0
    %4125 = vmatpush1.bf16.xpose.msra.mxu0 0
    %4126 = vmatprep.subr.bf16.mxu0 0
    %4127 = vmatpush1.bf16.xpose.msra.mxu0 0
    %4128 = vmatprep.subr.bf16.mxu0 0
    %4129 = vmatpush1.bf16.xpose.msra.mxu0 0
    %4130 = vmatprep.subr.bf16.mxu0 0
    %4131 = vmatpush1.bf16.xpose.msra.mxu0 0
    %4132 = vmatprep.subr.bf16.mxu0 %v3986
    %4133 = vmatpush1.bf16.xpose.msra.mxu0 %v3978
    %4134 = vmatprep.subr.bf16.mxu0 0
    %4135 = vmatpush2.bf16.xpose.msra.mxu0 0
    %4136 = vmatprep.subr.bf16.mxu0 0
    %4137 = vmatpush2.bf16.xpose.msra.mxu0 0
    %4138 = vmatprep.subr.bf16.mxu0 0
    %4139 = vmatpush2.bf16.xpose.msra.mxu0 0
    %4140 = vmatprep.subr.bf16.mxu0 0
    %4141 = vmatpush2.bf16.xpose.msra.mxu0 0
    %4142 = vmatprep.subr.bf16.mxu0 0
    %4143 = vmatpush2.bf16.xpose.msra.mxu0 0
    %4144 = vmatprep.subr.bf16.mxu0 0
    %4145 = vmatpush2.bf16.xpose.msra.mxu0 0
    %4146 = vmatprep.subr.bf16.mxu0 0
    %4147 = vmatpush2.bf16.xpose.msra.mxu0 0
    %4148 = vmatprep.subr.bf16.mxu0 0
    %4149 = vmatpush2.bf16.xpose.msra.mxu0 0
    %4150 = vmatprep.mubr.bf16.mxu0 %v3893
    %4151 = vmatmul.mubr.bf16.gmra.mxu0 %v3889
    %v4152 = vpop.f32.mrf.mxu0
    %v4153 = vadd.f32 %v4113, %v4152
    %v4154 = vpop.f32.mrf.mxu0
    %v4155 = vpop.f32.mrf.mxu0
    %v4156 = vpop.f32.mrf.mxu0
    %4157 = vdwg.mxu0
    %4158 = vmatprep.subr.bf16.mxu0 0
    %4159 = vmatpush1.bf16.xpose.msra.mxu0 0
    %4160 = vmatprep.subr.bf16.mxu0 0
    %4161 = vmatpush1.bf16.xpose.msra.mxu0 0
    %4162 = vmatprep.subr.bf16.mxu0 0
    %4163 = vmatpush1.bf16.xpose.msra.mxu0 0
    %4164 = vmatprep.subr.bf16.mxu0 0
    %4165 = vmatpush1.bf16.xpose.msra.mxu0 0
    %4166 = vmatprep.subr.bf16.mxu0 0
    %4167 = vmatpush1.bf16.xpose.msra.mxu0 0
    %4168 = vmatprep.subr.bf16.mxu0 0
    %4169 = vmatpush1.bf16.xpose.msra.mxu0 0
    %4170 = vmatprep.subr.bf16.mxu0 0
    %4171 = vmatpush1.bf16.xpose.msra.mxu0 0
    %4172 = vmatprep.subr.bf16.mxu0 %v3987
    %4173 = vmatpush1.bf16.xpose.msra.mxu0 %v3985
    %4174 = vmatprep.subr.bf16.mxu0 0
    %4175 = vmatpush2.bf16.xpose.msra.mxu0 0
    %4176 = vmatprep.subr.bf16.mxu0 0
    %4177 = vmatpush2.bf16.xpose.msra.mxu0 0
    %4178 = vmatprep.subr.bf16.mxu0 0
    %4179 = vmatpush2.bf16.xpose.msra.mxu0 0
    %4180 = vmatprep.subr.bf16.mxu0 0
    %4181 = vmatpush2.bf16.xpose.msra.mxu0 0
    %4182 = vmatprep.subr.bf16.mxu0 0
    %4183 = vmatpush2.bf16.xpose.msra.mxu0 0
    %4184 = vmatprep.subr.bf16.mxu0 0
    %4185 = vmatpush2.bf16.xpose.msra.mxu0 0
    %4186 = vmatprep.subr.bf16.mxu0 0
    %4187 = vmatpush2.bf16.xpose.msra.mxu0 0
    %4188 = vmatprep.subr.bf16.mxu0 0
    %4189 = vmatpush2.bf16.xpose.msra.mxu0 0
    %4190 = vmatprep.mubr.bf16.mxu0 %v3901
    %4191 = vmatmul.mubr.bf16.gmra.mxu0 %v3897
    %v4192 = vpop.f32.mrf.mxu0
    %v4193 = vadd.f32 %v4153, %v4192
    %v4194 = vpop.f32.mrf.mxu0
    %v4195 = vpop.f32.mrf.mxu0
    %v4196 = vpop.f32.mrf.mxu0
    %4197 = vdwg.mxu0
    %4198 = vmatprep.subr.bf16.mxu0 0
    %4199 = vmatpush1.bf16.xpose.msra.mxu0 0
    %4200 = vmatprep.subr.bf16.mxu0 0
    %4201 = vmatpush1.bf16.xpose.msra.mxu0 0
    %4202 = vmatprep.subr.bf16.mxu0 0
    %4203 = vmatpush1.bf16.xpose.msra.mxu0 0
    %4204 = vmatprep.subr.bf16.mxu0 0
    %4205 = vmatpush1.bf16.xpose.msra.mxu0 0
    %4206 = vmatprep.subr.bf16.mxu0 0
    %4207 = vmatpush1.bf16.xpose.msra.mxu0 0
    %4208 = vmatprep.subr.bf16.mxu0 0
    %4209 = vmatpush1.bf16.xpose.msra.mxu0 0
    %4210 = vmatprep.subr.bf16.mxu0 0
    %4211 = vmatpush1.bf16.xpose.msra.mxu0 0
    %4212 = vmatprep.subr.bf16.mxu0 %v4003
    %4213 = vmatpush1.bf16.xpose.msra.mxu0 %v3995
    %4214 = vmatprep.subr.bf16.mxu0 0
    %4215 = vmatpush2.bf16.xpose.msra.mxu0 0
    %4216 = vmatprep.subr.bf16.mxu0 0
    %4217 = vmatpush2.bf16.xpose.msra.mxu0 0
    %4218 = vmatprep.subr.bf16.mxu0 0
    %4219 = vmatpush2.bf16.xpose.msra.mxu0 0
    %4220 = vmatprep.subr.bf16.mxu0 0
    %4221 = vmatpush2.bf16.xpose.msra.mxu0 0
    %4222 = vmatprep.subr.bf16.mxu0 0
    %4223 = vmatpush2.bf16.xpose.msra.mxu0 0
    %4224 = vmatprep.subr.bf16.mxu0 0
    %4225 = vmatpush2.bf16.xpose.msra.mxu0 0
    %4226 = vmatprep.subr.bf16.mxu0 0
    %4227 = vmatpush2.bf16.xpose.msra.mxu0 0
    %4228 = vmatprep.subr.bf16.mxu0 0
    %4229 = vmatpush2.bf16.xpose.msra.mxu0 0
    %4230 = vmatprep.mubr.bf16.mxu0 %v3909
    %4231 = vmatmul.mubr.bf16.gmra.mxu0 %v3905
    %v4232 = vpop.f32.mrf.mxu0
    %v4233 = vadd.f32 %v4193, %v4232
    %v4234 = vpop.f32.mrf.mxu0
    %v4235 = vpop.f32.mrf.mxu0
    %v4236 = vpop.f32.mrf.mxu0
    %4237 = vdwg.mxu0
    %4238 = vmatprep.subr.bf16.mxu0 0
    %4239 = vmatpush1.bf16.xpose.msra.mxu0 0
    %4240 = vmatprep.subr.bf16.mxu0 0
    %4241 = vmatpush1.bf16.xpose.msra.mxu0 0
    %4242 = vmatprep.subr.bf16.mxu0 0
    %4243 = vmatpush1.bf16.xpose.msra.mxu0 0
    %4244 = vmatprep.subr.bf16.mxu0 0
    %4245 = vmatpush1.bf16.xpose.msra.mxu0 0
    %4246 = vmatprep.subr.bf16.mxu0 0
    %4247 = vmatpush1.bf16.xpose.msra.mxu0 0
    %4248 = vmatprep.subr.bf16.mxu0 0
    %4249 = vmatpush1.bf16.xpose.msra.mxu0 0
    %4250 = vmatprep.subr.bf16.mxu0 0
    %4251 = vmatpush1.bf16.xpose.msra.mxu0 0
    %4252 = vmatprep.subr.bf16.mxu0 %v4004
    %4253 = vmatpush1.bf16.xpose.msra.mxu0 %v4002
    %4254 = vmatprep.subr.bf16.mxu0 0
    %4255 = vmatpush2.bf16.xpose.msra.mxu0 0
    %4256 = vmatprep.subr.bf16.mxu0 0
    %4257 = vmatpush2.bf16.xpose.msra.mxu0 0
    %4258 = vmatprep.subr.bf16.mxu0 0
    %4259 = vmatpush2.bf16.xpose.msra.mxu0 0
    %4260 = vmatprep.subr.bf16.mxu0 0
    %4261 = vmatpush2.bf16.xpose.msra.mxu0 0
    %4262 = vmatprep.subr.bf16.mxu0 0
    %4263 = vmatpush2.bf16.xpose.msra.mxu0 0
    %4264 = vmatprep.subr.bf16.mxu0 0
    %4265 = vmatpush2.bf16.xpose.msra.mxu0 0
    %4266 = vmatprep.subr.bf16.mxu0 0
    %4267 = vmatpush2.bf16.xpose.msra.mxu0 0
    %4268 = vmatprep.subr.bf16.mxu0 0
    %4269 = vmatpush2.bf16.xpose.msra.mxu0 0
    %4270 = vmatprep.mubr.bf16.mxu0 %v3917
    %4271 = vmatmul.mubr.bf16.gmra.mxu0 %v3913
    %v4272 = vpop.f32.mrf.mxu0
    %v4273 = vadd.f32 %v4233, %v4272
    %v4274 = vpop.f32.mrf.mxu0
    %v4275 = vpop.f32.mrf.mxu0
    %v4276 = vpop.f32.mrf.mxu0
    %4277 = vdwg.mxu0
    %4278 = vmatprep.subr.bf16.mxu0 0
    %4279 = vmatpush1.bf16.xpose.msra.mxu0 0
    %4280 = vmatprep.subr.bf16.mxu0 0
    %4281 = vmatpush1.bf16.xpose.msra.mxu0 0
    %4282 = vmatprep.subr.bf16.mxu0 0
    %4283 = vmatpush1.bf16.xpose.msra.mxu0 0
    %4284 = vmatprep.subr.bf16.mxu0 0
    %4285 = vmatpush1.bf16.xpose.msra.mxu0 0
    %4286 = vmatprep.subr.bf16.mxu0 0
    %4287 = vmatpush1.bf16.xpose.msra.mxu0 0
    %4288 = vmatprep.subr.bf16.mxu0 0
    %4289 = vmatpush1.bf16.xpose.msra.mxu0 0
    %4290 = vmatprep.subr.bf16.mxu0 0
    %4291 = vmatpush1.bf16.xpose.msra.mxu0 0
    %4292 = vmatprep.subr.bf16.mxu0 %v4020
    %4293 = vmatpush1.bf16.xpose.msra.mxu0 %v4012
    %4294 = vmatprep.subr.bf16.mxu0 0
    %4295 = vmatpush2.bf16.xpose.msra.mxu0 0
    %4296 = vmatprep.subr.bf16.mxu0 0
    %4297 = vmatpush2.bf16.xpose.msra.mxu0 0
    %4298 = vmatprep.subr.bf16.mxu0 0
    %4299 = vmatpush2.bf16.xpose.msra.mxu0 0
    %4300 = vmatprep.subr.bf16.mxu0 0
    %4301 = vmatpush2.bf16.xpose.msra.mxu0 0
    %4302 = vmatprep.subr.bf16.mxu0 0
    %4303 = vmatpush2.bf16.xpose.msra.mxu0 0
    %4304 = vmatprep.subr.bf16.mxu0 0
    %4305 = vmatpush2.bf16.xpose.msra.mxu0 0
    %4306 = vmatprep.subr.bf16.mxu0 0
    %4307 = vmatpush2.bf16.xpose.msra.mxu0 0
    %4308 = vmatprep.subr.bf16.mxu0 0
    %4309 = vmatpush2.bf16.xpose.msra.mxu0 0
    %4310 = vmatprep.mubr.bf16.mxu0 %v3925
    %4311 = vmatmul.mubr.bf16.gmra.mxu0 %v3921
    %v4312 = vpop.f32.mrf.mxu0
    %v4313 = vadd.f32 %v4273, %v4312
    %v4314 = vpop.f32.mrf.mxu0
    %v4315 = vpop.f32.mrf.mxu0
    %v4316 = vpop.f32.mrf.mxu0
    %4317 = vdwg.mxu0
    %4318 = vmatprep.subr.bf16.mxu0 0
    %4319 = vmatpush1.bf16.xpose.msra.mxu0 0
    %4320 = vmatprep.subr.bf16.mxu0 0
    %4321 = vmatpush1.bf16.xpose.msra.mxu0 0
    %4322 = vmatprep.subr.bf16.mxu0 0
    %4323 = vmatpush1.bf16.xpose.msra.mxu0 0
    %4324 = vmatprep.subr.bf16.mxu0 0
    %4325 = vmatpush1.bf16.xpose.msra.mxu0 0
    %4326 = vmatprep.subr.bf16.mxu0 0
    %4327 = vmatpush1.bf16.xpose.msra.mxu0 0
    %4328 = vmatprep.subr.bf16.mxu0 0
    %4329 = vmatpush1.bf16.xpose.msra.mxu0 0
    %4330 = vmatprep.subr.bf16.mxu0 0
    %4331 = vmatpush1.bf16.xpose.msra.mxu0 0
    %4332 = vmatprep.subr.bf16.mxu0 %v4021
    %4333 = vmatpush1.bf16.xpose.msra.mxu0 %v4019
    %4334 = vmatprep.subr.bf16.mxu0 0
    %4335 = vmatpush2.bf16.xpose.msra.mxu0 0
    %4336 = vmatprep.subr.bf16.mxu0 0
    %4337 = vmatpush2.bf16.xpose.msra.mxu0 0
    %4338 = vmatprep.subr.bf16.mxu0 0
    %4339 = vmatpush2.bf16.xpose.msra.mxu0 0
    %4340 = vmatprep.subr.bf16.mxu0 0
    %4341 = vmatpush2.bf16.xpose.msra.mxu0 0
    %4342 = vmatprep.subr.bf16.mxu0 0
    %4343 = vmatpush2.bf16.xpose.msra.mxu0 0
    %4344 = vmatprep.subr.bf16.mxu0 0
    %4345 = vmatpush2.bf16.xpose.msra.mxu0 0
    %4346 = vmatprep.subr.bf16.mxu0 0
    %4347 = vmatpush2.bf16.xpose.msra.mxu0 0
    %4348 = vmatprep.subr.bf16.mxu0 0
    %4349 = vmatpush2.bf16.xpose.msra.mxu0 0
    %4350 = vmatprep.mubr.bf16.mxu0 %v3933
    %4351 = vmatmul.mubr.bf16.gmra.mxu0 %v3929
    %v4352 = vpop.f32.mrf.mxu0
    %v4353 = vadd.f32 %v4313, %v4352
    %v4354 = vpop.f32.mrf.mxu0
    %v4355 = vpop.f32.mrf.mxu0
    %v4356 = vpop.f32.mrf.mxu0
    %4357 = vdwg.mxu0
    %v4360 = vrot.slane %v4353, 7
    %vm4361 = vcmask 1041409
    %v4362 = vsel %vm4361, %v4360, %v3863
    %vm4364 = vcmask 25600
    %4365 = vst.msk [vmem:[#allocation7] sm:$0x3] %vm4364, %v4362
    // Predicated region
    $region26: #{model_forward.1} parent=1 // pred_check
      _
    $region27: #{model_forward.1} parent=1 // pred_check_branch
      %4367 = sbr.rel (0) target = $region29
    $region28: #{model_forward.1} parent=1 // pred_region
      %s4369 = ssub.s32 32, 32
      %4370 = vsyncadd [#allocation4], %s4369
      %s4372 = sshll.u32 [#allocation7], 4
      %s4373 = int_to_ptr.vmem [resolvable:$true] %s4372
      %4375 = dma.vmem_to_hbm [thread:$0]  %s4373, 32, %s4, [#allocation4]
    $region29: #{model_forward.1} parent=1 // pred_fallthru
      _
    // Predicated region
    $region30: #{model_forward.1} parent=1 // pred_check
      _
    $region31: #{model_forward.1} parent=1 // pred_check_branch
      %4377 = sbr.rel (0) target = $region33
    $region32: #{model_forward.1} parent=1 // pred_region
      %4378 = dma.done [#allocation4], 32
    $region33: #{model_forward.1} parent=1 // pred_fallthru
      _
    %4379 = vsyncpa [#allocation3], 1
    %4380 = vsyncpa [#allocation6], 1
    %4381 = vsyncpa [#allocation4], 1

</llo_original>
